<compile_context>
chip_gen: v6e
topology: v6e:2x2x1
jax: 0.10.0
libtpu: 0.0.40
codegen_flags: <defaults>
</compile_context>

<pallas_src>
import functools
import math

import jax
import jax.numpy as jnp
from jax import lax
from jax.experimental import pallas as pl
from jax.experimental.pallas import tpu as pltpu

# Module hyper-parameters (audio_ft == 'audiofeat_wav2vec2').
VIS_DIM = 1408
AUD_DIM = 768                     # wav2vec2 feature width
CONCAT_DIM = VIS_DIM + AUD_DIM    # 2176
FC_DIM = 512                      # feat_fc output channels
HID = 128                         # hidden width of both heads
NUM_CLASSES = 1
BN_EPS = 1e-5


def _round_up(x, m):
    return (x + m - 1) // m * m


# ------------------------------------------------------------------
# Single fused kernel: feat_fc + vhead + ahead (+ tanh), one row-tile per step.
# ------------------------------------------------------------------
def mlp_kernel(vis_ref, aud_ref,
               wfcv_ref, wfca_ref, sfc_ref, bfc_ref,
               v1w_ref, v1b_ref, v2w_ref, v2b_ref,
               a1wv_ref, a1wa_ref, sa1_ref, a1b_ref, a2w_ref, a2b_ref,
               out_ref):
    f32 = jnp.float32
    bf16 = jnp.bfloat16

    vis = vis_ref[...]                        # (tb, 1408) bf16
    aud = aud_ref[...]                        # (tb, 768)  bf16

    # feat_fc: Conv1d(2176, 512, k=1) == matmul over the concat dim; the concat
    # is folded into two partial dots.  int8 weights are cast to bf16 for the
    # MXU; the per-output-column scale is applied to the f32 accumulator
    # (exactly equivalent to dequantizing the full weight, but much cheaper).
    vfeat = (jnp.dot(vis, wfcv_ref[...].astype(bf16), preferred_element_type=f32)
             + jnp.dot(aud, wfca_ref[...].astype(bf16), preferred_element_type=f32))
    vfeat = vfeat * sfc_ref[...] + bfc_ref[...]                     # (tb, 512) f32

    # vhead: Linear(512,128) -> LeakyReLU(0.1) -> [BN folded] -> Linear(128,1)
    v = jnp.dot(vfeat.astype(bf16), v1w_ref[...],
                preferred_element_type=f32) + v1b_ref[...]          # (tb, 128)
    v = jnp.where(v > 0, v, 0.1 * v)                                # LeakyReLU(0.1)
    vout = jnp.dot(v.astype(bf16), v2w_ref[...],
                   preferred_element_type=f32) + v2b_ref[...]       # (tb, 1)

    # ahead: Linear(2176,128) -> [BN folded] -> Linear(128,1)
    a = (jnp.dot(vis, a1wv_ref[...].astype(bf16), preferred_element_type=f32)
         + jnp.dot(aud, a1wa_ref[...].astype(bf16), preferred_element_type=f32))
    a = a * sa1_ref[...] + a1b_ref[...]                             # (tb, 128)
    aout = jnp.dot(a.astype(bf16), a2w_ref[...],
                   preferred_element_type=f32) + a2b_ref[...]       # (tb, 1)

    # Single lane-packed output: [vout, aout, tanh(vout), tanh(aout)]
    out_ref[...] = jnp.concatenate(
        [vout, aout, jnp.tanh(vout), jnp.tanh(aout)], axis=1)


# ------------------------------------------------------------------
# Wrapper
# ------------------------------------------------------------------
def mlp_forward(vis_feat, aud_feat, params, tile_b=256):
    assert aud_feat is not None, (
        "audio_ft='audiofeat_wav2vec2' requires aud_feat (the None branch is "
        "shape-incompatible with feat_fc in the reference module)")

    B = vis_feat.shape[0]
    vis = vis_feat.astype(jnp.bfloat16)
    aud = aud_feat.astype(jnp.bfloat16)

    tile_b = min(tile_b, _round_up(B, 8))      # sublane-friendly row tile
    b_pad = _round_up(B, tile_b)
    if b_pad != B:
        vis = jnp.pad(vis, ((0, b_pad - B), (0, 0)))
        aud = jnp.pad(aud, ((0, b_pad - B), (0, 0)))

    weights = (params['wfc_v'], params['wfc_a'], params['sfc'], params['bfc'],
               params['v1w'], params['v1b'], params['v2w'], params['v2b'],
               params['a1w_v'], params['a1w_a'], params['sa1'], params['a1b'],
               params['a2w'], params['a2b'])

    def row_spec(d):
        return pl.BlockSpec((tile_b, d), lambda i: (i, 0))

    def pinned_spec(arr):
        # Whole weight as one block with a constant block index: DMA'd once,
        # stays VMEM resident while the batch row-tiles stream through.
        return pl.BlockSpec(arr.shape, lambda i: (0, 0))

    out = pl.pallas_call(
        mlp_kernel,
        out_shape=jax.ShapeDtypeStruct((b_pad, 4), jnp.float32),
        grid=(b_pad // tile_b,),
        in_specs=[row_spec(VIS_DIM), row_spec(AUD_DIM)]
                 + [pinned_spec(w) for w in weights],
        out_specs=pl.BlockSpec((tile_b, 4), lambda i: (i, 0)),
        compiler_params=pltpu.CompilerParams(
            dimension_semantics=("parallel",)),
    )(vis, aud, *weights)

    out = out[:B]
    vout, aout = out[:, 0:1], out[:, 1:2]
    vtanh, atanh = out[:, 2:3], out[:, 3:4]
    return vout, aout, vtanh, atanh


# ------------------------------------------------------------------
# Parameters: float32 master params (PyTorch-style fan-in uniform init),
# then prep for the kernel: int8 per-column quantization of the two big
# weights, BN folding into the following Linear, bf16 for the small weights.
# ------------------------------------------------------------------
def init_master_params(key):
    ks = jax.random.split(key, 10)

    def u(k, shape, fan_in):
        lim = 1.0 / math.sqrt(fan_in)
        return jax.random.uniform(k, shape, jnp.float32, -lim, lim)

    def bn_fresh():
        return dict(gamma=jnp.ones((HID,), jnp.float32),
                    beta=jnp.zeros((HID,), jnp.float32),
                    mean=jnp.zeros((HID,), jnp.float32),
                    var=jnp.ones((HID,), jnp.float32))

    return {
        # feat_fc: Conv1d(2176, 512, 1); weight stored transposed as (in, out)
        'wfc': u(ks[0], (CONCAT_DIM, FC_DIM), CONCAT_DIM),
        'bfc': u(ks[1], (1, FC_DIM), CONCAT_DIM),
        # vhead
        'v1w': u(ks[2], (FC_DIM, HID), FC_DIM),
        'v1b': u(ks[3], (1, HID), FC_DIM),
        'vbn': bn_fresh(),
        'v2w': u(ks[4], (HID, NUM_CLASSES), HID),
        'v2b': u(ks[5], (1, NUM_CLASSES), HID),
        # ahead
        'a1w': u(ks[6], (CONCAT_DIM, HID), CONCAT_DIM),
        'a1b': u(ks[7], (1, HID), CONCAT_DIM),
        'abn': bn_fresh(),
        'a2w': u(ks[8], (HID, NUM_CLASSES), HID),
        'a2b': u(ks[9], (1, NUM_CLASSES), HID),
    }


def _quantize_per_col(w):
    """Symmetric int8 quantization with one f32 scale per output column."""
    amax = jnp.max(jnp.abs(w), axis=0, keepdims=True)
    scale = jnp.maximum(amax, 1e-8) / 127.0
    q = jnp.clip(jnp.round(w / scale), -127, 127).astype(jnp.int8)
    return q, scale.astype(jnp.float32)


def _fold_bn_into_next_linear(bn, w, b):
    """BN(x) @ W + b  ==  x @ (s[:,None]*W) + (t @ W + b), s/t from eval BN."""
    s = bn['gamma'] * lax.rsqrt(bn['var'] + BN_EPS)          # (HID,)
    t = bn['beta'] - bn['mean'] * s                          # (HID,)
    w_f = w * s[:, None]                                     # (HID, out)
    b_f = b + t[None, :] @ w                                 # (1, out)
    return w_f, b_f


def prepare_kernel_params(mp):
    wfc_q, sfc = _quantize_per_col(mp['wfc'])
    a1w_q, sa1 = _quantize_per_col(mp['a1w'])
    v2w_f, v2b_f = _fold_bn_into_next_linear(mp['vbn'], mp['v2w'], mp['v2b'])
    a2w_f, a2b_f = _fold_bn_into_next_linear(mp['abn'], mp['a2w'], mp['a2b'])
    return {
        # feat_fc (int8, pre-split so the 2176-wide concat never materializes)
        'wfc_v': wfc_q[:VIS_DIM],                  # (1408, 512) int8
        'wfc_a': wfc_q[VIS_DIM:],                  # (768, 512)  int8
        'sfc':   sfc,                              # (1, 512)    f32
        'bfc':   mp['bfc'],                        # (1, 512)    f32
        # vhead (BN folded into v2w/v2b)
        'v1w': mp['v1w'].astype(jnp.bfloat16),     # (512, 128) bf16
        'v1b': mp['v1b'],                          # (1, 128)   f32
        'v2w': v2w_f.astype(jnp.bfloat16),         # (128, 1)   bf16
        'v2b': v2b_f,                              # (1, 1)     f32
        # ahead (int8 first Linear pre-split; BN folded into a2w/a2b)
        'a1w_v': a1w_q[:VIS_DIM],                  # (1408, 128) int8
        'a1w_a': a1w_q[VIS_DIM:],                  # (768, 128)  int8
        'sa1':   sa1,                              # (1, 128)    f32
        'a1b':   mp['a1b'],                        # (1, 128)    f32
        'a2w':   a2w_f.astype(jnp.bfloat16),       # (128, 1)    bf16
        'a2b':   a2b_f,                            # (1, 1)      f32
    }


# ------------------------------------------------------------------
# Pure-JAX float32 reference of the original module (eval mode).
# ------------------------------------------------------------------
def reference_forward(vis, aud, mp):
    def bn(x, p):
        return ((x - p['mean']) * lax.rsqrt(p['var'] + BN_EPS)
                * p['gamma'] + p['beta'])

    feat = jnp.concatenate([vis, aud], axis=1)                 # (B, 2176)
    vfeat = feat @ mp['wfc'] + mp['bfc']                       # feat_fc (k=1)
    v = vfeat @ mp['v1w'] + mp['v1b']
    v = jnp.where(v > 0, v, 0.1 * v)
    v = bn(v, mp['vbn'])
    vout = v @ mp['v2w'] + mp['v2b']
    a = feat @ mp['a1w'] + mp['a1b']
    a = bn(a, mp['abn'])
    aout = a @ mp['a2w'] + mp['a2b']
    return vout, aout, jnp.tanh(vout), jnp.tanh(aout)


if __name__ == "__main__":
    key = jax.random.PRNGKey(0)
    k_vis, k_aud, k_par = jax.random.split(key, 3)

    B = 8   # samples (becomes the Conv1d "length" axis after the transpose)
    vis_feat = jax.random.normal(k_vis, (B, VIS_DIM), jnp.float32)
    aud_feat = jax.random.normal(k_aud, (B, AUD_DIM), jnp.float32)

    master = init_master_params(k_par)
    params = prepare_kernel_params(master)

    fwd = jax.jit(functools.partial(mlp_forward, params=params))
    vout, aout, vtanh, atanh = fwd(vis_feat, aud_feat)
    jax.block_until_ready((vout, aout, vtanh, atanh))

    # Shape / internal-consistency checks.
    assert vout.shape == (B, NUM_CLASSES) and aout.shape == (B, NUM_CLASSES)
    assert vtanh.shape == (B, NUM_CLASSES) and atanh.shape == (B, NUM_CLASSES)
    for t in (vout, aout, vtanh, atanh):
        assert bool(jnp.all(jnp.isfinite(t)))
    assert bool(jnp.allclose(vtanh, jnp.tanh(vout), atol=2e-3))
    assert bool(jnp.allclose(atanh, jnp.tanh(aout), atol=2e-3))

    # Numerical check vs. the float32 reference (loose tolerance: int8 weights
    # for the two big matmuls + bf16 MXU inputs).
    rv, ra, rvt, rat = reference_forward(vis_feat, aud_feat, master)
    assert bool(jnp.allclose(vout, rv, atol=5e-2))
    assert bool(jnp.allclose(aout, ra, atol=5e-2))
    assert bool(jnp.allclose(vtanh, rvt, atol=5e-2))
    assert bool(jnp.allclose(atanh, rat, atol=5e-2))

    print("KERNEL_OK")
</pallas_src>

<mosaic_0001>
module attributes {stable_mosaic.version = 11 : i64} {
  func.func @mlp_kernel(%arg0: i32, %arg1: memref<8x1408xbf16, #tpu.memory_space<vmem>>, %arg2: memref<8x768xbf16, #tpu.memory_space<vmem>>, %arg3: memref<1408x512xi8, #tpu.memory_space<vmem>>, %arg4: memref<768x512xi8, #tpu.memory_space<vmem>>, %arg5: memref<1x512xf32, #tpu.memory_space<vmem>>, %arg6: memref<1x512xf32, #tpu.memory_space<vmem>>, %arg7: memref<512x128xbf16, #tpu.memory_space<vmem>>, %arg8: memref<1x128xf32, #tpu.memory_space<vmem>>, %arg9: memref<128x1xbf16, #tpu.memory_space<vmem>>, %arg10: memref<1x1xf32, #tpu.memory_space<vmem>>, %arg11: memref<1408x128xi8, #tpu.memory_space<vmem>>, %arg12: memref<768x128xi8, #tpu.memory_space<vmem>>, %arg13: memref<1x128xf32, #tpu.memory_space<vmem>>, %arg14: memref<1x128xf32, #tpu.memory_space<vmem>>, %arg15: memref<128x1xbf16, #tpu.memory_space<vmem>>, %arg16: memref<1x1xf32, #tpu.memory_space<vmem>>, %arg17: memref<8x4xf32, #tpu.memory_space<vmem>>) attributes {dimension_semantics = [#tpu.dimension_semantics<parallel>], iteration_bounds = array<i64: 1>, scalar_prefetch = 0 : i64, scratch_operands = 0 : i64, tpu.core_type = #tpu.core_type<tc>, window_params = [{transform_indices = @transform_0, window_bounds = array<i64: 8, 1408>}, {transform_indices = @transform_1, window_bounds = array<i64: 8, 768>}, {pipeline_mode = #tpu.pipeline_mode<synchronous>, transform_indices = @transform_2, window_bounds = array<i64: 1408, 512>}, {pipeline_mode = #tpu.pipeline_mode<synchronous>, transform_indices = @transform_3, window_bounds = array<i64: 768, 512>}, {pipeline_mode = #tpu.pipeline_mode<synchronous>, transform_indices = @transform_4, window_bounds = array<i64: 1, 512>}, {pipeline_mode = #tpu.pipeline_mode<synchronous>, transform_indices = @transform_5, window_bounds = array<i64: 1, 512>}, {pipeline_mode = #tpu.pipeline_mode<synchronous>, transform_indices = @transform_6, window_bounds = array<i64: 512, 128>}, {pipeline_mode = #tpu.pipeline_mode<synchronous>, transform_indices = @transform_7, window_bounds = array<i64: 1, 128>}, {pipeline_mode = #tpu.pipeline_mode<synchronous>, transform_indices = @transform_8, window_bounds = array<i64: 128, 1>}, {pipeline_mode = #tpu.pipeline_mode<synchronous>, transform_indices = @transform_9, window_bounds = array<i64: 1, 1>}, {pipeline_mode = #tpu.pipeline_mode<synchronous>, transform_indices = @transform_10, window_bounds = array<i64: 1408, 128>}, {pipeline_mode = #tpu.pipeline_mode<synchronous>, transform_indices = @transform_11, window_bounds = array<i64: 768, 128>}, {pipeline_mode = #tpu.pipeline_mode<synchronous>, transform_indices = @transform_12, window_bounds = array<i64: 1, 128>}, {pipeline_mode = #tpu.pipeline_mode<synchronous>, transform_indices = @transform_13, window_bounds = array<i64: 1, 128>}, {pipeline_mode = #tpu.pipeline_mode<synchronous>, transform_indices = @transform_14, window_bounds = array<i64: 128, 1>}, {pipeline_mode = #tpu.pipeline_mode<synchronous>, transform_indices = @transform_15, window_bounds = array<i64: 1, 1>}, {transform_indices = @transform_16, window_bounds = array<i64: 8, 4>}]} {
    %c0 = arith.constant 0 : index
    %c0_0 = arith.constant 0 : index
    %0 = vector.load %arg1[%c0, %c0_0] : memref<8x1408xbf16, #tpu.memory_space<vmem>>, vector<8x1408xbf16>
    %c0_1 = arith.constant 0 : index
    %c0_2 = arith.constant 0 : index
    %1 = vector.load %arg2[%c0_1, %c0_2] : memref<8x768xbf16, #tpu.memory_space<vmem>>, vector<8x768xbf16>
    %c0_3 = arith.constant 0 : index
    %c0_4 = arith.constant 0 : index
    %2 = vector.load %arg3[%c0_3, %c0_4] : memref<1408x512xi8, #tpu.memory_space<vmem>>, vector<1408x512xi8>
    %3 = arith.sitofp %2 : vector<1408x512xi8> to vector<1408x512xbf16>
    %cst = arith.constant dense<0.000000e+00> : vector<8x512xf32>
    %4 = tpu.matmul %0, %3, %cst {dimension_numbers = #tpu.dot_dimension_numbers<[1], [0], [0], [1], [0, 0, 1, 1], [], []>} : vector<8x1408xbf16>, vector<1408x512xbf16>, vector<8x512xf32> -> vector<8x512xf32>
    %c0_5 = arith.constant 0 : index
    %c0_6 = arith.constant 0 : index
    %5 = vector.load %arg4[%c0_5, %c0_6] : memref<768x512xi8, #tpu.memory_space<vmem>>, vector<768x512xi8>
    %6 = arith.sitofp %5 : vector<768x512xi8> to vector<768x512xbf16>
    %cst_7 = arith.constant dense<0.000000e+00> : vector<8x512xf32>
    %7 = tpu.matmul %1, %6, %cst_7 {dimension_numbers = #tpu.dot_dimension_numbers<[1], [0], [0], [1], [0, 0, 1, 1], [], []>} : vector<8x768xbf16>, vector<768x512xbf16>, vector<8x512xf32> -> vector<8x512xf32>
    %8 = arith.addf %4, %7 : vector<8x512xf32>
    %c0_8 = arith.constant 0 : index
    %c0_9 = arith.constant 0 : index
    %9 = vector.load %arg5[%c0_8, %c0_9] : memref<1x512xf32, #tpu.memory_space<vmem>>, vector<1x512xf32>
    %10 = vector.broadcast %9 : vector<1x512xf32> to vector<8x512xf32>
    %11 = arith.mulf %8, %10 : vector<8x512xf32>
    %c0_10 = arith.constant 0 : index
    %c0_11 = arith.constant 0 : index
    %12 = vector.load %arg6[%c0_10, %c0_11] : memref<1x512xf32, #tpu.memory_space<vmem>>, vector<1x512xf32>
    %13 = vector.broadcast %12 : vector<1x512xf32> to vector<8x512xf32>
    %14 = arith.addf %11, %13 : vector<8x512xf32>
    %15 = arith.truncf %14 : vector<8x512xf32> to vector<8x512xbf16>
    %c0_12 = arith.constant 0 : index
    %c0_13 = arith.constant 0 : index
    %16 = vector.load %arg7[%c0_12, %c0_13] : memref<512x128xbf16, #tpu.memory_space<vmem>>, vector<512x128xbf16>
    %cst_14 = arith.constant dense<0.000000e+00> : vector<8x128xf32>
    %17 = tpu.matmul %15, %16, %cst_14 {dimension_numbers = #tpu.dot_dimension_numbers<[1], [0], [0], [1], [0, 0, 1, 1], [], []>} : vector<8x512xbf16>, vector<512x128xbf16>, vector<8x128xf32> -> vector<8x128xf32>
    %c0_15 = arith.constant 0 : index
    %c0_16 = arith.constant 0 : index
    %18 = vector.load %arg8[%c0_15, %c0_16] : memref<1x128xf32, #tpu.memory_space<vmem>>, vector<1x128xf32>
    %19 = vector.broadcast %18 : vector<1x128xf32> to vector<8x128xf32>
    %20 = arith.addf %17, %19 : vector<8x128xf32>
    %cst_17 = arith.constant 0.000000e+00 : f32
    %21 = vector.broadcast %cst_17 : f32 to vector<8x128xf32>
    %22 = arith.cmpf ogt, %20, %21 : vector<8x128xf32>
    %cst_18 = arith.constant 1.000000e-01 : f32
    %23 = vector.broadcast %cst_18 : f32 to vector<8x128xf32>
    %24 = arith.mulf %23, %20 : vector<8x128xf32>
    %25 = arith.select %22, %20, %24 : vector<8x128xi1>, vector<8x128xf32>
    %26 = arith.truncf %25 : vector<8x128xf32> to vector<8x128xbf16>
    %c0_19 = arith.constant 0 : index
    %c0_20 = arith.constant 0 : index
    %27 = vector.load %arg9[%c0_19, %c0_20] : memref<128x1xbf16, #tpu.memory_space<vmem>>, vector<128x1xbf16>
    %cst_21 = arith.constant dense<0.000000e+00> : vector<8x1xf32>
    %28 = tpu.matmul %26, %27, %cst_21 {dimension_numbers = #tpu.dot_dimension_numbers<[1], [0], [0], [1], [0, 0, 1, 1], [], []>} : vector<8x128xbf16>, vector<128x1xbf16>, vector<8x1xf32> -> vector<8x1xf32>
    %c0_22 = arith.constant 0 : index
    %c0_23 = arith.constant 0 : index
    %29 = vector.load %arg10[%c0_22, %c0_23] : memref<1x1xf32, #tpu.memory_space<vmem>>, vector<1x1xf32>
    %30 = vector.broadcast %29 : vector<1x1xf32> to vector<8x1xf32>
    %31 = arith.addf %28, %30 : vector<8x1xf32>
    %c0_24 = arith.constant 0 : index
    %c0_25 = arith.constant 0 : index
    %32 = vector.load %arg11[%c0_24, %c0_25] : memref<1408x128xi8, #tpu.memory_space<vmem>>, vector<1408x128xi8>
    %33 = arith.sitofp %32 : vector<1408x128xi8> to vector<1408x128xbf16>
    %cst_26 = arith.constant dense<0.000000e+00> : vector<8x128xf32>
    %34 = tpu.matmul %0, %33, %cst_26 {dimension_numbers = #tpu.dot_dimension_numbers<[1], [0], [0], [1], [0, 0, 1, 1], [], []>} : vector<8x1408xbf16>, vector<1408x128xbf16>, vector<8x128xf32> -> vector<8x128xf32>
    %c0_27 = arith.constant 0 : index
    %c0_28 = arith.constant 0 : index
    %35 = vector.load %arg12[%c0_27, %c0_28] : memref<768x128xi8, #tpu.memory_space<vmem>>, vector<768x128xi8>
    %36 = arith.sitofp %35 : vector<768x128xi8> to vector<768x128xbf16>
    %cst_29 = arith.constant dense<0.000000e+00> : vector<8x128xf32>
    %37 = tpu.matmul %1, %36, %cst_29 {dimension_numbers = #tpu.dot_dimension_numbers<[1], [0], [0], [1], [0, 0, 1, 1], [], []>} : vector<8x768xbf16>, vector<768x128xbf16>, vector<8x128xf32> -> vector<8x128xf32>
    %38 = arith.addf %34, %37 : vector<8x128xf32>
    %c0_30 = arith.constant 0 : index
    %c0_31 = arith.constant 0 : index
    %39 = vector.load %arg13[%c0_30, %c0_31] : memref<1x128xf32, #tpu.memory_space<vmem>>, vector<1x128xf32>
    %40 = vector.broadcast %39 : vector<1x128xf32> to vector<8x128xf32>
    %41 = arith.mulf %38, %40 : vector<8x128xf32>
    %c0_32 = arith.constant 0 : index
    %c0_33 = arith.constant 0 : index
    %42 = vector.load %arg14[%c0_32, %c0_33] : memref<1x128xf32, #tpu.memory_space<vmem>>, vector<1x128xf32>
    %43 = vector.broadcast %42 : vector<1x128xf32> to vector<8x128xf32>
    %44 = arith.addf %41, %43 : vector<8x128xf32>
    %45 = arith.truncf %44 : vector<8x128xf32> to vector<8x128xbf16>
    %c0_34 = arith.constant 0 : index
    %c0_35 = arith.constant 0 : index
    %46 = vector.load %arg15[%c0_34, %c0_35] : memref<128x1xbf16, #tpu.memory_space<vmem>>, vector<128x1xbf16>
    %cst_36 = arith.constant dense<0.000000e+00> : vector<8x1xf32>
    %47 = tpu.matmul %45, %46, %cst_36 {dimension_numbers = #tpu.dot_dimension_numbers<[1], [0], [0], [1], [0, 0, 1, 1], [], []>} : vector<8x128xbf16>, vector<128x1xbf16>, vector<8x1xf32> -> vector<8x1xf32>
    %c0_37 = arith.constant 0 : index
    %c0_38 = arith.constant 0 : index
    %48 = vector.load %arg16[%c0_37, %c0_38] : memref<1x1xf32, #tpu.memory_space<vmem>>, vector<1x1xf32>
    %49 = vector.broadcast %48 : vector<1x1xf32> to vector<8x1xf32>
    %50 = arith.addf %47, %49 : vector<8x1xf32>
    %51 = math.tanh %31 : vector<8x1xf32>
    %52 = math.tanh %50 : vector<8x1xf32>
    %53 = tpu.concatenate %31, %50, %51, %52 in 1 : vector<8x1xf32>, vector<8x1xf32>, vector<8x1xf32>, vector<8x1xf32> -> vector<8x4xf32>
    %c0_39 = arith.constant 0 : index
    %c0_40 = arith.constant 0 : index
    %54 = vector.load %arg17[%c0_39, %c0_40] : memref<8x4xf32, #tpu.memory_space<vmem>>, vector<8x4xf32>
    tpu.vector_store %arg17[%c0_39, %c0_40], %53 {strides = array<i32>} : memref<8x4xf32, #tpu.memory_space<vmem>>, vector<8x4xf32>,
    return
  }
  func.func @transform_0(%arg0: i32) -> (i32, i32) {
    %c0_i32 = arith.constant 0 : i32
    %c0_i32_0 = arith.constant 0 : i32
    return %arg0, %c0_i32 : i32, i32
  }
  func.func @transform_1(%arg0: i32) -> (i32, i32) {
    %c0_i32 = arith.constant 0 : i32
    %c0_i32_0 = arith.constant 0 : i32
    return %arg0, %c0_i32 : i32, i32
  }
  func.func @transform_2(%arg0: i32) -> (i32, i32) {
    %c0_i32 = arith.constant 0 : i32
    %c0_i32_0 = arith.constant 0 : i32
    %c0_i32_1 = arith.constant 0 : i32
    return %c0_i32, %c0_i32_0 : i32, i32
  }
  func.func @transform_3(%arg0: i32) -> (i32, i32) {
    %c0_i32 = arith.constant 0 : i32
    %c0_i32_0 = arith.constant 0 : i32
    %c0_i32_1 = arith.constant 0 : i32
    return %c0_i32, %c0_i32_0 : i32, i32
  }
  func.func @transform_4(%arg0: i32) -> (i32, i32) {
    %c0_i32 = arith.constant 0 : i32
    %c0_i32_0 = arith.constant 0 : i32
    %c0_i32_1 = arith.constant 0 : i32
    return %c0_i32, %c0_i32_0 : i32, i32
  }
  func.func @transform_5(%arg0: i32) -> (i32, i32) {
    %c0_i32 = arith.constant 0 : i32
    %c0_i32_0 = arith.constant 0 : i32
    %c0_i32_1 = arith.constant 0 : i32
    return %c0_i32, %c0_i32_0 : i32, i32
  }
  func.func @transform_6(%arg0: i32) -> (i32, i32) {
    %c0_i32 = arith.constant 0 : i32
    %c0_i32_0 = arith.constant 0 : i32
    %c0_i32_1 = arith.constant 0 : i32
    return %c0_i32, %c0_i32_0 : i32, i32
  }
  func.func @transform_7(%arg0: i32) -> (i32, i32) {
    %c0_i32 = arith.constant 0 : i32
    %c0_i32_0 = arith.constant 0 : i32
    %c0_i32_1 = arith.constant 0 : i32
    return %c0_i32, %c0_i32_0 : i32, i32
  }
  func.func @transform_8(%arg0: i32) -> (i32, i32) {
    %c0_i32 = arith.constant 0 : i32
    %c0_i32_0 = arith.constant 0 : i32
    %c0_i32_1 = arith.constant 0 : i32
    return %c0_i32, %c0_i32_0 : i32, i32
  }
  func.func @transform_9(%arg0: i32) -> (i32, i32) {
    %c0_i32 = arith.constant 0 : i32
    %c0_i32_0 = arith.constant 0 : i32
    %c0_i32_1 = arith.constant 0 : i32
    return %c0_i32, %c0_i32_0 : i32, i32
  }
  func.func @transform_10(%arg0: i32) -> (i32, i32) {
    %c0_i32 = arith.constant 0 : i32
    %c0_i32_0 = arith.constant 0 : i32
    %c0_i32_1 = arith.constant 0 : i32
    return %c0_i32, %c0_i32_0 : i32, i32
  }
  func.func @transform_11(%arg0: i32) -> (i32, i32) {
    %c0_i32 = arith.constant 0 : i32
    %c0_i32_0 = arith.constant 0 : i32
    %c0_i32_1 = arith.constant 0 : i32
    return %c0_i32, %c0_i32_0 : i32, i32
  }
  func.func @transform_12(%arg0: i32) -> (i32, i32) {
    %c0_i32 = arith.constant 0 : i32
    %c0_i32_0 = arith.constant 0 : i32
    %c0_i32_1 = arith.constant 0 : i32
    return %c0_i32, %c0_i32_0 : i32, i32
  }
  func.func @transform_13(%arg0: i32) -> (i32, i32) {
    %c0_i32 = arith.constant 0 : i32
    %c0_i32_0 = arith.constant 0 : i32
    %c0_i32_1 = arith.constant 0 : i32
    return %c0_i32, %c0_i32_0 : i32, i32
  }
  func.func @transform_14(%arg0: i32) -> (i32, i32) {
    %c0_i32 = arith.constant 0 : i32
    %c0_i32_0 = arith.constant 0 : i32
    %c0_i32_1 = arith.constant 0 : i32
    return %c0_i32, %c0_i32_0 : i32, i32
  }
  func.func @transform_15(%arg0: i32) -> (i32, i32) {
    %c0_i32 = arith.constant 0 : i32
    %c0_i32_0 = arith.constant 0 : i32
    %c0_i32_1 = arith.constant 0 : i32
    return %c0_i32, %c0_i32_0 : i32, i32
  }
  func.func @transform_16(%arg0: i32) -> (i32, i32) {
    %c0_i32 = arith.constant 0 : i32
    %c0_i32_0 = arith.constant 0 : i32
    return %arg0, %c0_i32 : i32, i32
  }
}

</mosaic_0001>

<llo_original>
// kernel: mlp_forward.1
$region0: #{mlp_forward.1}
  #allocation0 [shape = 'u32[]', space=smem, size = 0x4, offset = 0x4, fixed_abs, tag = 'smem constant byte address 0x4 - core index']
  #allocation1 [shape = 'u32[144,128]{1,0:T(1,128)}', space=vmem, size = 0x12000, scoped, tag = 'internal scratch']
  #allocation2 [shape = 'f32[1,1]{1,0:T(1,128)S(1)}', space=vmem, size = 0x200, scoped, tag = 'scoped memory for mlp_forward.1']
  #allocation3 [shape = 'f32[1,1]{1,0:T(1,128)S(1)}', space=vmem, size = 0x200, scoped, tag = 'scoped memory for mlp_forward.1']
  %s0 = inlined_call_operand.vmem [shape: bf16[8,1408], index: 0, kind: input, shape index: {}]
  %s1 = inlined_call_operand.vmem [shape: bf16[8,768], index: 1, kind: input, shape index: {}]
  %s2 = inlined_call_operand.hbm [shape: s8[1408,512], index: 2, kind: input, shape index: {}]
  %s3 = inlined_call_operand.hbm [shape: s8[768,512], index: 3, kind: input, shape index: {}]
  %s4 = inlined_call_operand.vmem [shape: f32[1,512], index: 4, kind: input, shape index: {}]
  %s5 = inlined_call_operand.vmem [shape: f32[1,512], index: 5, kind: input, shape index: {}]
  %s6 = inlined_call_operand.hbm [shape: bf16[512,128], index: 6, kind: input, shape index: {}]
  %s7 = inlined_call_operand.vmem [shape: f32[1,128], index: 7, kind: input, shape index: {}]
  %s8 = inlined_call_operand.hbm [shape: bf16[128,1], index: 8, kind: input, shape index: {}]
  %s9 = inlined_call_operand.<no memory space> [shape: f32[1,1], index: 9, kind: input, shape index: {}]
  %s10 = inlined_call_operand.hbm [shape: s8[1408,128], index: 10, kind: input, shape index: {}]
  %s11 = inlined_call_operand.vmem [shape: s8[768,128], index: 11, kind: input, shape index: {}]
  %s12 = inlined_call_operand.vmem [shape: f32[1,128], index: 12, kind: input, shape index: {}]
  %s13 = inlined_call_operand.vmem [shape: f32[1,128], index: 13, kind: input, shape index: {}]
  %s14 = inlined_call_operand.hbm [shape: bf16[128,1], index: 14, kind: input, shape index: {}]
  %s15 = inlined_call_operand.<no memory space> [shape: f32[1,1], index: 15, kind: input, shape index: {}]
  %s16 = inlined_call_operand.vmem [shape: f32[8,4], index: 16, kind: output, shape index: {}]
  %s17 = sld [smem:[#allocation0]]
  $region98: #{mlp_forward.1} parent=0
    _
  %s19 = ssub.s32 1, %s17
  %s20 = scalar_select 0, %s19, %s17
  %v21 = vstv %s9
  %22 = vst [vmem:[#allocation2] sm:$0x1] %v21
  %v23 = vstv %s15
  %24 = vst [vmem:[#allocation3] sm:$0x1] %v23
  $region1: #{mlp_forward.1} parent=0
    #allocation4 [shape = 'u8[720896]{0}', space=vmem, size = 0xb0000, scoped, tag = 'input window, operand 2, single buffered']
    #allocation5 [shape = 's32[1]{0}', space=sflag, size = 0x4, scoped, tag = 'scoped memory for mlp_forward.1']
    #allocation6 [shape = 'u8[393216]{0}', space=vmem, size = 0x60000, scoped, tag = 'input window, operand 3, single buffered']
    #allocation7 [shape = 's32[1]{0}', space=sflag, size = 0x4, scoped, tag = 'scoped memory for mlp_forward.1']
    #allocation8 [shape = 'u8[131072]{0}', space=vmem, size = 0x20000, scoped, tag = 'input window, operand 6, single buffered']
    #allocation9 [shape = 'u8[32768]{0}', space=vmem, size = 0x8000, scoped, tag = 'input window, operand 8, single buffered']
    #allocation10 [shape = 's32[1]{0}', space=sflag, size = 0x4, scoped, tag = 'scoped memory for mlp_forward.1']
    #allocation11 [shape = 'u8[180224]{0}', space=vmem, size = 0x2c000, scoped, tag = 'input window, operand 10, single buffered']
    #allocation12 [shape = 'u8[32768]{0}', space=vmem, size = 0x8000, scoped, tag = 'input window, operand 14, single buffered']
    #allocation13 [shape = 's32[1]{0}', space=sflag, size = 0x4, scoped, tag = 'scoped memory for mlp_forward.1']
    %25 = vsyncpa [#allocation5], 0
    %26 = vsyncpa [#allocation7], 0
    %27 = vsyncpa [#allocation10], 0
    %28 = vsyncpa [#allocation13], 0
    // Predicated region
    $region2: #{mlp_forward.1} parent=1 // pred_check
      _
    $region3: #{mlp_forward.1} parent=1 // pred_check_branch
      %30 = sbr.rel (0) target = $region5
    $region4: #{mlp_forward.1} parent=1 // pred_region
      _
    $region5: #{mlp_forward.1} parent=1 // pred_fallthru
      _
    // Predicated region
    $region6: #{mlp_forward.1} parent=1 // pred_check
      _
    $region7: #{mlp_forward.1} parent=1 // pred_check_branch
      %32 = sbr.rel (0) target = $region9
    $region8: #{mlp_forward.1} parent=1 // pred_region
      _
    $region9: #{mlp_forward.1} parent=1 // pred_fallthru
      _
    // Predicated region
    $region10: #{mlp_forward.1} parent=1 // pred_check
      _
    $region11: #{mlp_forward.1} parent=1 // pred_check_branch
      %34 = sbr.rel (0) target = $region13
    $region12: #{mlp_forward.1} parent=1 // pred_region
      %s36 = ssub.s32 22528, 22528
      %37 = vsyncadd [#allocation5], %s36
      %s38 = sshll.u32 [#allocation4], 4
      %s39 = int_to_ptr.vmem [resolvable:$true] %s38
      %44 = dma.hbm_to_vmem [thread:$0]  %s2, 22528, %s39, [#allocation5], 512, 512, 32
    $region13: #{mlp_forward.1} parent=1 // pred_fallthru
      _
    // Predicated region
    $region14: #{mlp_forward.1} parent=1 // pred_check
      _
    $region15: #{mlp_forward.1} parent=1 // pred_check_branch
      %46 = sbr.rel (0) target = $region17
    $region16: #{mlp_forward.1} parent=1 // pred_region
      %s48 = ssub.s32 12288, 12288
      %49 = vsyncadd [#allocation7], %s48
      %s50 = sshll.u32 [#allocation6], 4
      %s51 = int_to_ptr.vmem [resolvable:$true] %s50
      %56 = dma.hbm_to_vmem [thread:$0]  %s3, 12288, %s51, [#allocation7], 512, 512, 32
    $region17: #{mlp_forward.1} parent=1 // pred_fallthru
      _
    // Predicated region
    $region18: #{mlp_forward.1} parent=1 // pred_check
      _
    $region19: #{mlp_forward.1} parent=1 // pred_check_branch
      %58 = sbr.rel (0) target = $region21
    $region20: #{mlp_forward.1} parent=1 // pred_region
      _
    $region21: #{mlp_forward.1} parent=1 // pred_fallthru
      _
    // Predicated region
    $region22: #{mlp_forward.1} parent=1 // pred_check
      _
    $region23: #{mlp_forward.1} parent=1 // pred_check_branch
      %60 = sbr.rel (0) target = $region25
    $region24: #{mlp_forward.1} parent=1 // pred_region
      _
    $region25: #{mlp_forward.1} parent=1 // pred_fallthru
      _
    // Predicated region
    $region26: #{mlp_forward.1} parent=1 // pred_check
      _
    $region27: #{mlp_forward.1} parent=1 // pred_check_branch
      %62 = sbr.rel (0) target = $region29
    $region28: #{mlp_forward.1} parent=1 // pred_region
      %s64 = ssub.s32 4096, 4096
      %65 = vsyncadd [#allocation7], %s64
      %s66 = sshll.u32 [#allocation8], 4
      %s67 = int_to_ptr.vmem [resolvable:$true] %s66
      %72 = dma.hbm_to_vmem [thread:$0]  %s6, 4096, %s67, [#allocation7], 64, 64, 4
    $region29: #{mlp_forward.1} parent=1 // pred_fallthru
      _
    // Predicated region
    $region30: #{mlp_forward.1} parent=1 // pred_check
      _
    $region31: #{mlp_forward.1} parent=1 // pred_check_branch
      %74 = sbr.rel (0) target = $region33
    $region32: #{mlp_forward.1} parent=1 // pred_region
      _
    $region33: #{mlp_forward.1} parent=1 // pred_fallthru
      _
    // Predicated region
    $region34: #{mlp_forward.1} parent=1 // pred_check
      _
    $region35: #{mlp_forward.1} parent=1 // pred_check_branch
      %76 = sbr.rel (0) target = $region37
    $region36: #{mlp_forward.1} parent=1 // pred_region
      %s78 = ssub.s32 1024, 1024
      %79 = vsyncadd [#allocation10], %s78
      %s80 = sshll.u32 [#allocation9], 4
      %s81 = int_to_ptr.vmem [resolvable:$true] %s80
      %86 = dma.hbm_to_vmem [thread:$0]  %s8, 1024, %s81, [#allocation10], 64, 64, 4
    $region37: #{mlp_forward.1} parent=1 // pred_fallthru
      _
    // Predicated region
    $region38: #{mlp_forward.1} parent=1 // pred_check
      _
    $region39: #{mlp_forward.1} parent=1 // pred_check_branch
      %88 = sbr.rel (0) target = $region41
    $region40: #{mlp_forward.1} parent=1 // pred_region
      _
    $region41: #{mlp_forward.1} parent=1 // pred_fallthru
      _
    // Predicated region
    $region42: #{mlp_forward.1} parent=1 // pred_check
      _
    $region43: #{mlp_forward.1} parent=1 // pred_check_branch
      %90 = sbr.rel (0) target = $region45
    $region44: #{mlp_forward.1} parent=1 // pred_region
      %s92 = ssub.s32 5632, 5632
      %93 = vsyncadd [#allocation10], %s92
      %s94 = sshll.u32 [#allocation11], 4
      %s95 = int_to_ptr.vmem [resolvable:$true] %s94
      %100 = dma.hbm_to_vmem [thread:$0]  %s10, 5632, %s95, [#allocation10], 128, 128, 8
    $region45: #{mlp_forward.1} parent=1 // pred_fallthru
      _
    // Predicated region
    $region46: #{mlp_forward.1} parent=1 // pred_check
      _
    $region47: #{mlp_forward.1} parent=1 // pred_check_branch
      %102 = sbr.rel (0) target = $region49
    $region48: #{mlp_forward.1} parent=1 // pred_region
      _
    $region49: #{mlp_forward.1} parent=1 // pred_fallthru
      _
    // Predicated region
    $region50: #{mlp_forward.1} parent=1 // pred_check
      _
    $region51: #{mlp_forward.1} parent=1 // pred_check_branch
      %104 = sbr.rel (0) target = $region53
    $region52: #{mlp_forward.1} parent=1 // pred_region
      _
    $region53: #{mlp_forward.1} parent=1 // pred_fallthru
      _
    // Predicated region
    $region54: #{mlp_forward.1} parent=1 // pred_check
      _
    $region55: #{mlp_forward.1} parent=1 // pred_check_branch
      %106 = sbr.rel (0) target = $region57
    $region56: #{mlp_forward.1} parent=1 // pred_region
      _
    $region57: #{mlp_forward.1} parent=1 // pred_fallthru
      _
    // Predicated region
    $region58: #{mlp_forward.1} parent=1 // pred_check
      _
    $region59: #{mlp_forward.1} parent=1 // pred_check_branch
      %108 = sbr.rel (0) target = $region61
    $region60: #{mlp_forward.1} parent=1 // pred_region
      %s110 = ssub.s32 1024, 1024
      %111 = vsyncadd [#allocation13], %s110
      %s112 = sshll.u32 [#allocation12], 4
      %s113 = int_to_ptr.vmem [resolvable:$true] %s112
      %118 = dma.hbm_to_vmem [thread:$0]  %s14, 1024, %s113, [#allocation13], 64, 64, 4
    $region61: #{mlp_forward.1} parent=1 // pred_fallthru
      _
    // Predicated region
    $region62: #{mlp_forward.1} parent=1 // pred_check
      _
    $region63: #{mlp_forward.1} parent=1 // pred_check_branch
      %120 = sbr.rel (0) target = $region65
    $region64: #{mlp_forward.1} parent=1 // pred_region
      _
    $region65: #{mlp_forward.1} parent=1 // pred_fallthru
      _
    // Predicated region
    $region66: #{mlp_forward.1} parent=1 // pred_check
      _
    $region67: #{mlp_forward.1} parent=1 // pred_check_branch
      %122 = sbr.rel (0) target = $region69
    $region68: #{mlp_forward.1} parent=1 // pred_region
      %123 = dma.done [#allocation5], 22528
    $region69: #{mlp_forward.1} parent=1 // pred_fallthru
      _
    // Predicated region
    $region70: #{mlp_forward.1} parent=1 // pred_check
      _
    $region71: #{mlp_forward.1} parent=1 // pred_check_branch
      %125 = sbr.rel (0) target = $region73
    $region72: #{mlp_forward.1} parent=1 // pred_region
      %126 = dma.done [#allocation7], 12288
    $region73: #{mlp_forward.1} parent=1 // pred_fallthru
      _
    // Predicated region
    $region74: #{mlp_forward.1} parent=1 // pred_check
      _
    $region75: #{mlp_forward.1} parent=1 // pred_check_branch
      %128 = sbr.rel (0) target = $region77
    $region76: #{mlp_forward.1} parent=1 // pred_region
      %129 = dma.done [#allocation7], 4096
    $region77: #{mlp_forward.1} parent=1 // pred_fallthru
      _
    // Predicated region
    $region78: #{mlp_forward.1} parent=1 // pred_check
      _
    $region79: #{mlp_forward.1} parent=1 // pred_check_branch
      %131 = sbr.rel (0) target = $region81
    $region80: #{mlp_forward.1} parent=1 // pred_region
      %132 = dma.done [#allocation10], 1024
    $region81: #{mlp_forward.1} parent=1 // pred_fallthru
      _
    // Predicated region
    $region82: #{mlp_forward.1} parent=1 // pred_check
      _
    $region83: #{mlp_forward.1} parent=1 // pred_check_branch
      %134 = sbr.rel (0) target = $region85
    $region84: #{mlp_forward.1} parent=1 // pred_region
      %135 = dma.done [#allocation10], 5632
    $region85: #{mlp_forward.1} parent=1 // pred_fallthru
      _
    // Predicated region
    $region86: #{mlp_forward.1} parent=1 // pred_check
      _
    $region87: #{mlp_forward.1} parent=1 // pred_check_branch
      %137 = sbr.rel (0) target = $region89
    $region88: #{mlp_forward.1} parent=1 // pred_region
      %138 = dma.done [#allocation13], 1024
    $region89: #{mlp_forward.1} parent=1 // pred_fallthru
      _
    %v140 = vld [vmem:[%s0] sm:$0xff]
    %v141 = vld [vmem:[%s0 + $0x8] sm:$0xff]
    %v142 = vld [vmem:[%s0 + $0x10] sm:$0xff]
    %v143 = vld [vmem:[%s0 + $0x18] sm:$0xff]
    %v144 = vld [vmem:[%s0 + $0x20] sm:$0xff]
    %v145 = vld [vmem:[%s0 + $0x28] sm:$0xf]
    %v146 = vld [vmem:[%s1] sm:$0xff]
    %v147 = vld [vmem:[%s1 + $0x8] sm:$0xff]
    %v148 = vld [vmem:[%s1 + $0x10] sm:$0xff]
    %v149 = vld [vmem:[#allocation4] sm:$0xff]
    %v150 = vld [vmem:[#allocation4 + $0x8] sm:$0xff]
    %v151 = vld [vmem:[#allocation4 + $0x10] sm:$0xff]
    %v152 = vld [vmem:[#allocation4 + $0x18] sm:$0xff]
    %v153 = vld [vmem:[#allocation4 + $0x20] sm:$0xff]
    %v154 = vld [vmem:[#allocation4 + $0x28] sm:$0xff]
    %v155 = vld [vmem:[#allocation4 + $0x30] sm:$0xff]
    %v156 = vld [vmem:[#allocation4 + $0x38] sm:$0xff]
    %v157 = vld [vmem:[#allocation4 + $0x40] sm:$0xff]
    %v158 = vld [vmem:[#allocation4 + $0x48] sm:$0xff]
    %v159 = vld [vmem:[#allocation4 + $0x50] sm:$0xff]
    %v160 = vld [vmem:[#allocation4 + $0x58] sm:$0xff]
    %v161 = vld [vmem:[#allocation4 + $0x60] sm:$0xff]
    %v162 = vld [vmem:[#allocation4 + $0x68] sm:$0xff]
    %v163 = vld [vmem:[#allocation4 + $0x70] sm:$0xff]
    %v164 = vld [vmem:[#allocation4 + $0x78] sm:$0xff]
    %v165 = vld [vmem:[#allocation4 + $0x80] sm:$0xff]
    %v166 = vld [vmem:[#allocation4 + $0x88] sm:$0xff]
    %v167 = vld [vmem:[#allocation4 + $0x90] sm:$0xff]
    %v168 = vld [vmem:[#allocation4 + $0x98] sm:$0xff]
    %v169 = vld [vmem:[#allocation4 + $0xa0] sm:$0xff]
    %v170 = vld [vmem:[#allocation4 + $0xa8] sm:$0xff]
    %v171 = vld [vmem:[#allocation4 + $0xb0] sm:$0xff]
    %v172 = vld [vmem:[#allocation4 + $0xb8] sm:$0xff]
    %v173 = vld [vmem:[#allocation4 + $0xc0] sm:$0xff]
    %v174 = vld [vmem:[#allocation4 + $0xc8] sm:$0xff]
    %v175 = vld [vmem:[#allocation4 + $0xd0] sm:$0xff]
    %v176 = vld [vmem:[#allocation4 + $0xd8] sm:$0xff]
    %v177 = vld [vmem:[#allocation4 + $0xe0] sm:$0xff]
    %v178 = vld [vmem:[#allocation4 + $0xe8] sm:$0xff]
    %v179 = vld [vmem:[#allocation4 + $0xf0] sm:$0xff]
    %v180 = vld [vmem:[#allocation4 + $0xf8] sm:$0xff]
    %v181 = vld [vmem:[#allocation4 + $0x100] sm:$0xff]
    %v182 = vld [vmem:[#allocation4 + $0x108] sm:$0xff]
    %v183 = vld [vmem:[#allocation4 + $0x110] sm:$0xff]
    %v184 = vld [vmem:[#allocation4 + $0x118] sm:$0xff]
    %v185 = vld [vmem:[#allocation4 + $0x120] sm:$0xff]
    %v186 = vld [vmem:[#allocation4 + $0x128] sm:$0xff]
    %v187 = vld [vmem:[#allocation4 + $0x130] sm:$0xff]
    %v188 = vld [vmem:[#allocation4 + $0x138] sm:$0xff]
    %v189 = vld [vmem:[#allocation4 + $0x140] sm:$0xff]
    %v190 = vld [vmem:[#allocation4 + $0x148] sm:$0xff]
    %v191 = vld [vmem:[#allocation4 + $0x150] sm:$0xff]
    %v192 = vld [vmem:[#allocation4 + $0x158] sm:$0xff]
    %v193 = vld [vmem:[#allocation4 + $0x160] sm:$0xff]
    %v194 = vld [vmem:[#allocation4 + $0x168] sm:$0xff]
    %v195 = vld [vmem:[#allocation4 + $0x170] sm:$0xff]
    %v196 = vld [vmem:[#allocation4 + $0x178] sm:$0xff]
    %v197 = vld [vmem:[#allocation4 + $0x180] sm:$0xff]
    %v198 = vld [vmem:[#allocation4 + $0x188] sm:$0xff]
    %v199 = vld [vmem:[#allocation4 + $0x190] sm:$0xff]
    %v200 = vld [vmem:[#allocation4 + $0x198] sm:$0xff]
    %v201 = vld [vmem:[#allocation4 + $0x1a0] sm:$0xff]
    %v202 = vld [vmem:[#allocation4 + $0x1a8] sm:$0xff]
    %v203 = vld [vmem:[#allocation4 + $0x1b0] sm:$0xff]
    %v204 = vld [vmem:[#allocation4 + $0x1b8] sm:$0xff]
    %v205 = vld [vmem:[#allocation4 + $0x1c0] sm:$0xff]
    %v206 = vld [vmem:[#allocation4 + $0x1c8] sm:$0xff]
    %v207 = vld [vmem:[#allocation4 + $0x1d0] sm:$0xff]
    %v208 = vld [vmem:[#allocation4 + $0x1d8] sm:$0xff]
    %v209 = vld [vmem:[#allocation4 + $0x1e0] sm:$0xff]
    %v210 = vld [vmem:[#allocation4 + $0x1e8] sm:$0xff]
    %v211 = vld [vmem:[#allocation4 + $0x1f0] sm:$0xff]
    %v212 = vld [vmem:[#allocation4 + $0x1f8] sm:$0xff]
    %v213 = vld [vmem:[#allocation4 + $0x200] sm:$0xff]
    %v214 = vld [vmem:[#allocation4 + $0x208] sm:$0xff]
    %v215 = vld [vmem:[#allocation4 + $0x210] sm:$0xff]
    %v216 = vld [vmem:[#allocation4 + $0x218] sm:$0xff]
    %v217 = vld [vmem:[#allocation4 + $0x220] sm:$0xff]
    %v218 = vld [vmem:[#allocation4 + $0x228] sm:$0xff]
    %v219 = vld [vmem:[#allocation4 + $0x230] sm:$0xff]
    %v220 = vld [vmem:[#allocation4 + $0x238] sm:$0xff]
    %v221 = vld [vmem:[#allocation4 + $0x240] sm:$0xff]
    %v222 = vld [vmem:[#allocation4 + $0x248] sm:$0xff]
    %v223 = vld [vmem:[#allocation4 + $0x250] sm:$0xff]
    %v224 = vld [vmem:[#allocation4 + $0x258] sm:$0xff]
    %v225 = vld [vmem:[#allocation4 + $0x260] sm:$0xff]
    %v226 = vld [vmem:[#allocation4 + $0x268] sm:$0xff]
    %v227 = vld [vmem:[#allocation4 + $0x270] sm:$0xff]
    %v228 = vld [vmem:[#allocation4 + $0x278] sm:$0xff]
    %v229 = vld [vmem:[#allocation4 + $0x280] sm:$0xff]
    %v230 = vld [vmem:[#allocation4 + $0x288] sm:$0xff]
    %v231 = vld [vmem:[#allocation4 + $0x290] sm:$0xff]
    %v232 = vld [vmem:[#allocation4 + $0x298] sm:$0xff]
    %v233 = vld [vmem:[#allocation4 + $0x2a0] sm:$0xff]
    %v234 = vld [vmem:[#allocation4 + $0x2a8] sm:$0xff]
    %v235 = vld [vmem:[#allocation4 + $0x2b0] sm:$0xff]
    %v236 = vld [vmem:[#allocation4 + $0x2b8] sm:$0xff]
    %v237 = vld [vmem:[#allocation4 + $0x2c0] sm:$0xff]
    %v238 = vld [vmem:[#allocation4 + $0x2c8] sm:$0xff]
    %v239 = vld [vmem:[#allocation4 + $0x2d0] sm:$0xff]
    %v240 = vld [vmem:[#allocation4 + $0x2d8] sm:$0xff]
    %v241 = vld [vmem:[#allocation4 + $0x2e0] sm:$0xff]
    %v242 = vld [vmem:[#allocation4 + $0x2e8] sm:$0xff]
    %v243 = vld [vmem:[#allocation4 + $0x2f0] sm:$0xff]
    %v244 = vld [vmem:[#allocation4 + $0x2f8] sm:$0xff]
    %v245 = vld [vmem:[#allocation4 + $0x300] sm:$0xff]
    %v246 = vld [vmem:[#allocation4 + $0x308] sm:$0xff]
    %v247 = vld [vmem:[#allocation4 + $0x310] sm:$0xff]
    %v248 = vld [vmem:[#allocation4 + $0x318] sm:$0xff]
    %v249 = vld [vmem:[#allocation4 + $0x320] sm:$0xff]
    %v250 = vld [vmem:[#allocation4 + $0x328] sm:$0xff]
    %v251 = vld [vmem:[#allocation4 + $0x330] sm:$0xff]
    %v252 = vld [vmem:[#allocation4 + $0x338] sm:$0xff]
    %v253 = vld [vmem:[#allocation4 + $0x340] sm:$0xff]
    %v254 = vld [vmem:[#allocation4 + $0x348] sm:$0xff]
    %v255 = vld [vmem:[#allocation4 + $0x350] sm:$0xff]
    %v256 = vld [vmem:[#allocation4 + $0x358] sm:$0xff]
    %v257 = vld [vmem:[#allocation4 + $0x360] sm:$0xff]
    %v258 = vld [vmem:[#allocation4 + $0x368] sm:$0xff]
    %v259 = vld [vmem:[#allocation4 + $0x370] sm:$0xff]
    %v260 = vld [vmem:[#allocation4 + $0x378] sm:$0xff]
    %v261 = vld [vmem:[#allocation4 + $0x380] sm:$0xff]
    %v262 = vld [vmem:[#allocation4 + $0x388] sm:$0xff]
    %v263 = vld [vmem:[#allocation4 + $0x390] sm:$0xff]
    %v264 = vld [vmem:[#allocation4 + $0x398] sm:$0xff]
    %v265 = vld [vmem:[#allocation4 + $0x3a0] sm:$0xff]
    %v266 = vld [vmem:[#allocation4 + $0x3a8] sm:$0xff]
    %v267 = vld [vmem:[#allocation4 + $0x3b0] sm:$0xff]
    %v268 = vld [vmem:[#allocation4 + $0x3b8] sm:$0xff]
    %v269 = vld [vmem:[#allocation4 + $0x3c0] sm:$0xff]
    %v270 = vld [vmem:[#allocation4 + $0x3c8] sm:$0xff]
    %v271 = vld [vmem:[#allocation4 + $0x3d0] sm:$0xff]
    %v272 = vld [vmem:[#allocation4 + $0x3d8] sm:$0xff]
    %v273 = vld [vmem:[#allocation4 + $0x3e0] sm:$0xff]
    %v274 = vld [vmem:[#allocation4 + $0x3e8] sm:$0xff]
    %v275 = vld [vmem:[#allocation4 + $0x3f0] sm:$0xff]
    %v276 = vld [vmem:[#allocation4 + $0x3f8] sm:$0xff]
    %v277 = vld [vmem:[#allocation4 + $0x400] sm:$0xff]
    %v278 = vld [vmem:[#allocation4 + $0x408] sm:$0xff]
    %v279 = vld [vmem:[#allocation4 + $0x410] sm:$0xff]
    %v280 = vld [vmem:[#allocation4 + $0x418] sm:$0xff]
    %v281 = vld [vmem:[#allocation4 + $0x420] sm:$0xff]
    %v282 = vld [vmem:[#allocation4 + $0x428] sm:$0xff]
    %v283 = vld [vmem:[#allocation4 + $0x430] sm:$0xff]
    %v284 = vld [vmem:[#allocation4 + $0x438] sm:$0xff]
    %v285 = vld [vmem:[#allocation4 + $0x440] sm:$0xff]
    %v286 = vld [vmem:[#allocation4 + $0x448] sm:$0xff]
    %v287 = vld [vmem:[#allocation4 + $0x450] sm:$0xff]
    %v288 = vld [vmem:[#allocation4 + $0x458] sm:$0xff]
    %v289 = vld [vmem:[#allocation4 + $0x460] sm:$0xff]
    %v290 = vld [vmem:[#allocation4 + $0x468] sm:$0xff]
    %v291 = vld [vmem:[#allocation4 + $0x470] sm:$0xff]
    %v292 = vld [vmem:[#allocation4 + $0x478] sm:$0xff]
    %v293 = vld [vmem:[#allocation4 + $0x480] sm:$0xff]
    %v294 = vld [vmem:[#allocation4 + $0x488] sm:$0xff]
    %v295 = vld [vmem:[#allocation4 + $0x490] sm:$0xff]
    %v296 = vld [vmem:[#allocation4 + $0x498] sm:$0xff]
    %v297 = vld [vmem:[#allocation4 + $0x4a0] sm:$0xff]
    %v298 = vld [vmem:[#allocation4 + $0x4a8] sm:$0xff]
    %v299 = vld [vmem:[#allocation4 + $0x4b0] sm:$0xff]
    %v300 = vld [vmem:[#allocation4 + $0x4b8] sm:$0xff]
    %v301 = vld [vmem:[#allocation4 + $0x4c0] sm:$0xff]
    %v302 = vld [vmem:[#allocation4 + $0x4c8] sm:$0xff]
    %v303 = vld [vmem:[#allocation4 + $0x4d0] sm:$0xff]
    %v304 = vld [vmem:[#allocation4 + $0x4d8] sm:$0xff]
    %v305 = vld [vmem:[#allocation4 + $0x4e0] sm:$0xff]
    %v306 = vld [vmem:[#allocation4 + $0x4e8] sm:$0xff]
    %v307 = vld [vmem:[#allocation4 + $0x4f0] sm:$0xff]
    %v308 = vld [vmem:[#allocation4 + $0x4f8] sm:$0xff]
    %v309 = vld [vmem:[#allocation4 + $0x500] sm:$0xff]
    %v310 = vld [vmem:[#allocation4 + $0x508] sm:$0xff]
    %v311 = vld [vmem:[#allocation4 + $0x510] sm:$0xff]
    %v312 = vld [vmem:[#allocation4 + $0x518] sm:$0xff]
    %v313 = vld [vmem:[#allocation4 + $0x520] sm:$0xff]
    %v314 = vld [vmem:[#allocation4 + $0x528] sm:$0xff]
    %v315 = vld [vmem:[#allocation4 + $0x530] sm:$0xff]
    %v316 = vld [vmem:[#allocation4 + $0x538] sm:$0xff]
    %v317 = vld [vmem:[#allocation4 + $0x540] sm:$0xff]
    %v318 = vld [vmem:[#allocation4 + $0x548] sm:$0xff]
    %v319 = vld [vmem:[#allocation4 + $0x550] sm:$0xff]
    %v320 = vld [vmem:[#allocation4 + $0x558] sm:$0xff]
    %v321 = vld [vmem:[#allocation4 + $0x560] sm:$0xff]
    %v322 = vld [vmem:[#allocation4 + $0x568] sm:$0xff]
    %v323 = vld [vmem:[#allocation4 + $0x570] sm:$0xff]
    %v324 = vld [vmem:[#allocation4 + $0x578] sm:$0xff]
    %v325 = vunpack.c.l.s8.bf16 %v149
    %v326 = vunpack.c.l.s8.bf16 %v150
    %v327 = vunpack.c.l.s8.bf16 %v151
    %v328 = vunpack.c.l.s8.bf16 %v152
    %v329 = vunpack.c.h.s8.bf16 %v149
    %v330 = vunpack.c.h.s8.bf16 %v150
    %v331 = vunpack.c.h.s8.bf16 %v151
    %v332 = vunpack.c.h.s8.bf16 %v152
    %v333 = vunpack.c.l.s8.bf16 %v153
    %v334 = vunpack.c.l.s8.bf16 %v154
    %v335 = vunpack.c.l.s8.bf16 %v155
    %v336 = vunpack.c.l.s8.bf16 %v156
    %v337 = vunpack.c.h.s8.bf16 %v153
    %v338 = vunpack.c.h.s8.bf16 %v154
    %v339 = vunpack.c.h.s8.bf16 %v155
    %v340 = vunpack.c.h.s8.bf16 %v156
    %v341 = vunpack.c.l.s8.bf16 %v157
    %v342 = vunpack.c.l.s8.bf16 %v158
    %v343 = vunpack.c.l.s8.bf16 %v159
    %v344 = vunpack.c.l.s8.bf16 %v160
    %v345 = vunpack.c.h.s8.bf16 %v157
    %v346 = vunpack.c.h.s8.bf16 %v158
    %v347 = vunpack.c.h.s8.bf16 %v159
    %v348 = vunpack.c.h.s8.bf16 %v160
    %v349 = vunpack.c.l.s8.bf16 %v161
    %v350 = vunpack.c.l.s8.bf16 %v162
    %v351 = vunpack.c.l.s8.bf16 %v163
    %v352 = vunpack.c.l.s8.bf16 %v164
    %v353 = vunpack.c.h.s8.bf16 %v161
    %v354 = vunpack.c.h.s8.bf16 %v162
    %v355 = vunpack.c.h.s8.bf16 %v163
    %v356 = vunpack.c.h.s8.bf16 %v164
    %v357 = vunpack.c.l.s8.bf16 %v165
    %v358 = vunpack.c.l.s8.bf16 %v166
    %v359 = vunpack.c.l.s8.bf16 %v167
    %v360 = vunpack.c.l.s8.bf16 %v168
    %v361 = vunpack.c.h.s8.bf16 %v165
    %v362 = vunpack.c.h.s8.bf16 %v166
    %v363 = vunpack.c.h.s8.bf16 %v167
    %v364 = vunpack.c.h.s8.bf16 %v168
    %v365 = vunpack.c.l.s8.bf16 %v169
    %v366 = vunpack.c.l.s8.bf16 %v170
    %v367 = vunpack.c.l.s8.bf16 %v171
    %v368 = vunpack.c.l.s8.bf16 %v172
    %v369 = vunpack.c.h.s8.bf16 %v169
    %v370 = vunpack.c.h.s8.bf16 %v170
    %v371 = vunpack.c.h.s8.bf16 %v171
    %v372 = vunpack.c.h.s8.bf16 %v172
    %v373 = vunpack.c.l.s8.bf16 %v173
    %v374 = vunpack.c.l.s8.bf16 %v174
    %v375 = vunpack.c.l.s8.bf16 %v175
    %v376 = vunpack.c.l.s8.bf16 %v176
    %v377 = vunpack.c.h.s8.bf16 %v173
    %v378 = vunpack.c.h.s8.bf16 %v174
    %v379 = vunpack.c.h.s8.bf16 %v175
    %v380 = vunpack.c.h.s8.bf16 %v176
    %v381 = vunpack.c.l.s8.bf16 %v177
    %v382 = vunpack.c.l.s8.bf16 %v178
    %v383 = vunpack.c.l.s8.bf16 %v179
    %v384 = vunpack.c.l.s8.bf16 %v180
    %v385 = vunpack.c.h.s8.bf16 %v177
    %v386 = vunpack.c.h.s8.bf16 %v178
    %v387 = vunpack.c.h.s8.bf16 %v179
    %v388 = vunpack.c.h.s8.bf16 %v180
    %v389 = vunpack.c.l.s8.bf16 %v181
    %v390 = vunpack.c.l.s8.bf16 %v182
    %v391 = vunpack.c.l.s8.bf16 %v183
    %v392 = vunpack.c.l.s8.bf16 %v184
    %v393 = vunpack.c.h.s8.bf16 %v181
    %v394 = vunpack.c.h.s8.bf16 %v182
    %v395 = vunpack.c.h.s8.bf16 %v183
    %v396 = vunpack.c.h.s8.bf16 %v184
    %v397 = vunpack.c.l.s8.bf16 %v185
    %v398 = vunpack.c.l.s8.bf16 %v186
    %v399 = vunpack.c.l.s8.bf16 %v187
    %v400 = vunpack.c.l.s8.bf16 %v188
    %v401 = vunpack.c.h.s8.bf16 %v185
    %v402 = vunpack.c.h.s8.bf16 %v186
    %v403 = vunpack.c.h.s8.bf16 %v187
    %v404 = vunpack.c.h.s8.bf16 %v188
    %v405 = vunpack.c.l.s8.bf16 %v189
    %v406 = vunpack.c.l.s8.bf16 %v190
    %v407 = vunpack.c.l.s8.bf16 %v191
    %v408 = vunpack.c.l.s8.bf16 %v192
    %v409 = vunpack.c.h.s8.bf16 %v189
    %v410 = vunpack.c.h.s8.bf16 %v190
    %v411 = vunpack.c.h.s8.bf16 %v191
    %v412 = vunpack.c.h.s8.bf16 %v192
    %v413 = vunpack.c.l.s8.bf16 %v193
    %v414 = vunpack.c.l.s8.bf16 %v194
    %v415 = vunpack.c.l.s8.bf16 %v195
    %v416 = vunpack.c.l.s8.bf16 %v196
    %v417 = vunpack.c.h.s8.bf16 %v193
    %v418 = vunpack.c.h.s8.bf16 %v194
    %v419 = vunpack.c.h.s8.bf16 %v195
    %v420 = vunpack.c.h.s8.bf16 %v196
    %v421 = vunpack.c.l.s8.bf16 %v197
    %v422 = vunpack.c.l.s8.bf16 %v198
    %v423 = vunpack.c.l.s8.bf16 %v199
    %v424 = vunpack.c.l.s8.bf16 %v200
    %v425 = vunpack.c.h.s8.bf16 %v197
    %v426 = vunpack.c.h.s8.bf16 %v198
    %v427 = vunpack.c.h.s8.bf16 %v199
    %v428 = vunpack.c.h.s8.bf16 %v200
    %v429 = vunpack.c.l.s8.bf16 %v201
    %v430 = vunpack.c.l.s8.bf16 %v202
    %v431 = vunpack.c.l.s8.bf16 %v203
    %v432 = vunpack.c.l.s8.bf16 %v204
    %v433 = vunpack.c.h.s8.bf16 %v201
    %v434 = vunpack.c.h.s8.bf16 %v202
    %v435 = vunpack.c.h.s8.bf16 %v203
    %v436 = vunpack.c.h.s8.bf16 %v204
    %v437 = vunpack.c.l.s8.bf16 %v205
    %v438 = vunpack.c.l.s8.bf16 %v206
    %v439 = vunpack.c.l.s8.bf16 %v207
    %v440 = vunpack.c.l.s8.bf16 %v208
    %v441 = vunpack.c.h.s8.bf16 %v205
    %v442 = vunpack.c.h.s8.bf16 %v206
    %v443 = vunpack.c.h.s8.bf16 %v207
    %v444 = vunpack.c.h.s8.bf16 %v208
    %v445 = vunpack.c.l.s8.bf16 %v209
    %v446 = vunpack.c.l.s8.bf16 %v210
    %v447 = vunpack.c.l.s8.bf16 %v211
    %v448 = vunpack.c.l.s8.bf16 %v212
    %v449 = vunpack.c.h.s8.bf16 %v209
    %v450 = vunpack.c.h.s8.bf16 %v210
    %v451 = vunpack.c.h.s8.bf16 %v211
    %v452 = vunpack.c.h.s8.bf16 %v212
    %v453 = vunpack.c.l.s8.bf16 %v213
    %v454 = vunpack.c.l.s8.bf16 %v214
    %v455 = vunpack.c.l.s8.bf16 %v215
    %v456 = vunpack.c.l.s8.bf16 %v216
    %v457 = vunpack.c.h.s8.bf16 %v213
    %v458 = vunpack.c.h.s8.bf16 %v214
    %v459 = vunpack.c.h.s8.bf16 %v215
    %v460 = vunpack.c.h.s8.bf16 %v216
    %v461 = vunpack.c.l.s8.bf16 %v217
    %v462 = vunpack.c.l.s8.bf16 %v218
    %v463 = vunpack.c.l.s8.bf16 %v219
    %v464 = vunpack.c.l.s8.bf16 %v220
    %v465 = vunpack.c.h.s8.bf16 %v217
    %v466 = vunpack.c.h.s8.bf16 %v218
    %v467 = vunpack.c.h.s8.bf16 %v219
    %v468 = vunpack.c.h.s8.bf16 %v220
    %v469 = vunpack.c.l.s8.bf16 %v221
    %v470 = vunpack.c.l.s8.bf16 %v222
    %v471 = vunpack.c.l.s8.bf16 %v223
    %v472 = vunpack.c.l.s8.bf16 %v224
    %v473 = vunpack.c.h.s8.bf16 %v221
    %v474 = vunpack.c.h.s8.bf16 %v222
    %v475 = vunpack.c.h.s8.bf16 %v223
    %v476 = vunpack.c.h.s8.bf16 %v224
    %v477 = vunpack.c.l.s8.bf16 %v225
    %v478 = vunpack.c.l.s8.bf16 %v226
    %v479 = vunpack.c.l.s8.bf16 %v227
    %v480 = vunpack.c.l.s8.bf16 %v228
    %v481 = vunpack.c.h.s8.bf16 %v225
    %v482 = vunpack.c.h.s8.bf16 %v226
    %v483 = vunpack.c.h.s8.bf16 %v227
    %v484 = vunpack.c.h.s8.bf16 %v228
    %v485 = vunpack.c.l.s8.bf16 %v229
    %v486 = vunpack.c.l.s8.bf16 %v230
    %v487 = vunpack.c.l.s8.bf16 %v231
    %v488 = vunpack.c.l.s8.bf16 %v232
    %v489 = vunpack.c.h.s8.bf16 %v229
    %v490 = vunpack.c.h.s8.bf16 %v230
    %v491 = vunpack.c.h.s8.bf16 %v231
    %v492 = vunpack.c.h.s8.bf16 %v232
    %v493 = vunpack.c.l.s8.bf16 %v233
    %v494 = vunpack.c.l.s8.bf16 %v234
    %v495 = vunpack.c.l.s8.bf16 %v235
    %v496 = vunpack.c.l.s8.bf16 %v236
    %v497 = vunpack.c.h.s8.bf16 %v233
    %v498 = vunpack.c.h.s8.bf16 %v234
    %v499 = vunpack.c.h.s8.bf16 %v235
    %v500 = vunpack.c.h.s8.bf16 %v236
    %v501 = vunpack.c.l.s8.bf16 %v237
    %v502 = vunpack.c.l.s8.bf16 %v238
    %v503 = vunpack.c.l.s8.bf16 %v239
    %v504 = vunpack.c.l.s8.bf16 %v240
    %v505 = vunpack.c.h.s8.bf16 %v237
    %v506 = vunpack.c.h.s8.bf16 %v238
    %v507 = vunpack.c.h.s8.bf16 %v239
    %v508 = vunpack.c.h.s8.bf16 %v240
    %v509 = vunpack.c.l.s8.bf16 %v241
    %v510 = vunpack.c.l.s8.bf16 %v242
    %v511 = vunpack.c.l.s8.bf16 %v243
    %v512 = vunpack.c.l.s8.bf16 %v244
    %v513 = vunpack.c.h.s8.bf16 %v241
    %v514 = vunpack.c.h.s8.bf16 %v242
    %v515 = vunpack.c.h.s8.bf16 %v243
    %v516 = vunpack.c.h.s8.bf16 %v244
    %v517 = vunpack.c.l.s8.bf16 %v245
    %v518 = vunpack.c.l.s8.bf16 %v246
    %v519 = vunpack.c.l.s8.bf16 %v247
    %v520 = vunpack.c.l.s8.bf16 %v248
    %v521 = vunpack.c.h.s8.bf16 %v245
    %v522 = vunpack.c.h.s8.bf16 %v246
    %v523 = vunpack.c.h.s8.bf16 %v247
    %v524 = vunpack.c.h.s8.bf16 %v248
    %v525 = vunpack.c.l.s8.bf16 %v249
    %v526 = vunpack.c.l.s8.bf16 %v250
    %v527 = vunpack.c.l.s8.bf16 %v251
    %v528 = vunpack.c.l.s8.bf16 %v252
    %v529 = vunpack.c.h.s8.bf16 %v249
    %v530 = vunpack.c.h.s8.bf16 %v250
    %v531 = vunpack.c.h.s8.bf16 %v251
    %v532 = vunpack.c.h.s8.bf16 %v252
    %v533 = vunpack.c.l.s8.bf16 %v253
    %v534 = vunpack.c.l.s8.bf16 %v254
    %v535 = vunpack.c.l.s8.bf16 %v255
    %v536 = vunpack.c.l.s8.bf16 %v256
    %v537 = vunpack.c.h.s8.bf16 %v253
    %v538 = vunpack.c.h.s8.bf16 %v254
    %v539 = vunpack.c.h.s8.bf16 %v255
    %v540 = vunpack.c.h.s8.bf16 %v256
    %v541 = vunpack.c.l.s8.bf16 %v257
    %v542 = vunpack.c.l.s8.bf16 %v258
    %v543 = vunpack.c.l.s8.bf16 %v259
    %v544 = vunpack.c.l.s8.bf16 %v260
    %v545 = vunpack.c.h.s8.bf16 %v257
    %v546 = vunpack.c.h.s8.bf16 %v258
    %v547 = vunpack.c.h.s8.bf16 %v259
    %v548 = vunpack.c.h.s8.bf16 %v260
    %v549 = vunpack.c.l.s8.bf16 %v261
    %v550 = vunpack.c.l.s8.bf16 %v262
    %v551 = vunpack.c.l.s8.bf16 %v263
    %v552 = vunpack.c.l.s8.bf16 %v264
    %v553 = vunpack.c.h.s8.bf16 %v261
    %v554 = vunpack.c.h.s8.bf16 %v262
    %v555 = vunpack.c.h.s8.bf16 %v263
    %v556 = vunpack.c.h.s8.bf16 %v264
    %v557 = vunpack.c.l.s8.bf16 %v265
    %v558 = vunpack.c.l.s8.bf16 %v266
    %v559 = vunpack.c.l.s8.bf16 %v267
    %v560 = vunpack.c.l.s8.bf16 %v268
    %v561 = vunpack.c.h.s8.bf16 %v265
    %v562 = vunpack.c.h.s8.bf16 %v266
    %v563 = vunpack.c.h.s8.bf16 %v267
    %v564 = vunpack.c.h.s8.bf16 %v268
    %v565 = vunpack.c.l.s8.bf16 %v269
    %v566 = vunpack.c.l.s8.bf16 %v270
    %v567 = vunpack.c.l.s8.bf16 %v271
    %v568 = vunpack.c.l.s8.bf16 %v272
    %v569 = vunpack.c.h.s8.bf16 %v269
    %v570 = vunpack.c.h.s8.bf16 %v270
    %v571 = vunpack.c.h.s8.bf16 %v271
    %v572 = vunpack.c.h.s8.bf16 %v272
    %v573 = vunpack.c.l.s8.bf16 %v273
    %v574 = vunpack.c.l.s8.bf16 %v274
    %v575 = vunpack.c.l.s8.bf16 %v275
    %v576 = vunpack.c.l.s8.bf16 %v276
    %v577 = vunpack.c.h.s8.bf16 %v273
    %v578 = vunpack.c.h.s8.bf16 %v274
    %v579 = vunpack.c.h.s8.bf16 %v275
    %v580 = vunpack.c.h.s8.bf16 %v276
    %v581 = vunpack.c.l.s8.bf16 %v277
    %v582 = vunpack.c.l.s8.bf16 %v278
    %v583 = vunpack.c.l.s8.bf16 %v279
    %v584 = vunpack.c.l.s8.bf16 %v280
    %v585 = vunpack.c.h.s8.bf16 %v277
    %v586 = vunpack.c.h.s8.bf16 %v278
    %v587 = vunpack.c.h.s8.bf16 %v279
    %v588 = vunpack.c.h.s8.bf16 %v280
    %v589 = vunpack.c.l.s8.bf16 %v281
    %v590 = vunpack.c.l.s8.bf16 %v282
    %v591 = vunpack.c.l.s8.bf16 %v283
    %v592 = vunpack.c.l.s8.bf16 %v284
    %v593 = vunpack.c.h.s8.bf16 %v281
    %v594 = vunpack.c.h.s8.bf16 %v282
    %v595 = vunpack.c.h.s8.bf16 %v283
    %v596 = vunpack.c.h.s8.bf16 %v284
    %v597 = vunpack.c.l.s8.bf16 %v285
    %v598 = vunpack.c.l.s8.bf16 %v286
    %v599 = vunpack.c.l.s8.bf16 %v287
    %v600 = vunpack.c.l.s8.bf16 %v288
    %v601 = vunpack.c.h.s8.bf16 %v285
    %v602 = vunpack.c.h.s8.bf16 %v286
    %v603 = vunpack.c.h.s8.bf16 %v287
    %v604 = vunpack.c.h.s8.bf16 %v288
    %v605 = vunpack.c.l.s8.bf16 %v289
    %v606 = vunpack.c.l.s8.bf16 %v290
    %v607 = vunpack.c.l.s8.bf16 %v291
    %v608 = vunpack.c.l.s8.bf16 %v292
    %v609 = vunpack.c.h.s8.bf16 %v289
    %v610 = vunpack.c.h.s8.bf16 %v290
    %v611 = vunpack.c.h.s8.bf16 %v291
    %v612 = vunpack.c.h.s8.bf16 %v292
    %v613 = vunpack.c.l.s8.bf16 %v293
    %v614 = vunpack.c.l.s8.bf16 %v294
    %v615 = vunpack.c.l.s8.bf16 %v295
    %v616 = vunpack.c.l.s8.bf16 %v296
    %v617 = vunpack.c.h.s8.bf16 %v293
    %v618 = vunpack.c.h.s8.bf16 %v294
    %v619 = vunpack.c.h.s8.bf16 %v295
    %v620 = vunpack.c.h.s8.bf16 %v296
    %v621 = vunpack.c.l.s8.bf16 %v297
    %v622 = vunpack.c.l.s8.bf16 %v298
    %v623 = vunpack.c.l.s8.bf16 %v299
    %v624 = vunpack.c.l.s8.bf16 %v300
    %v625 = vunpack.c.h.s8.bf16 %v297
    %v626 = vunpack.c.h.s8.bf16 %v298
    %v627 = vunpack.c.h.s8.bf16 %v299
    %v628 = vunpack.c.h.s8.bf16 %v300
    %v629 = vunpack.c.l.s8.bf16 %v301
    %v630 = vunpack.c.l.s8.bf16 %v302
    %v631 = vunpack.c.l.s8.bf16 %v303
    %v632 = vunpack.c.l.s8.bf16 %v304
    %v633 = vunpack.c.h.s8.bf16 %v301
    %v634 = vunpack.c.h.s8.bf16 %v302
    %v635 = vunpack.c.h.s8.bf16 %v303
    %v636 = vunpack.c.h.s8.bf16 %v304
    %v637 = vunpack.c.l.s8.bf16 %v305
    %v638 = vunpack.c.l.s8.bf16 %v306
    %v639 = vunpack.c.l.s8.bf16 %v307
    %v640 = vunpack.c.l.s8.bf16 %v308
    %v641 = vunpack.c.h.s8.bf16 %v305
    %v642 = vunpack.c.h.s8.bf16 %v306
    %v643 = vunpack.c.h.s8.bf16 %v307
    %v644 = vunpack.c.h.s8.bf16 %v308
    %v645 = vunpack.c.l.s8.bf16 %v309
    %v646 = vunpack.c.l.s8.bf16 %v310
    %v647 = vunpack.c.l.s8.bf16 %v311
    %v648 = vunpack.c.l.s8.bf16 %v312
    %v649 = vunpack.c.h.s8.bf16 %v309
    %v650 = vunpack.c.h.s8.bf16 %v310
    %v651 = vunpack.c.h.s8.bf16 %v311
    %v652 = vunpack.c.h.s8.bf16 %v312
    %v653 = vunpack.c.l.s8.bf16 %v313
    %v654 = vunpack.c.l.s8.bf16 %v314
    %v655 = vunpack.c.l.s8.bf16 %v315
    %v656 = vunpack.c.l.s8.bf16 %v316
    %v657 = vunpack.c.h.s8.bf16 %v313
    %v658 = vunpack.c.h.s8.bf16 %v314
    %v659 = vunpack.c.h.s8.bf16 %v315
    %v660 = vunpack.c.h.s8.bf16 %v316
    %v661 = vunpack.c.l.s8.bf16 %v317
    %v662 = vunpack.c.l.s8.bf16 %v318
    %v663 = vunpack.c.l.s8.bf16 %v319
    %v664 = vunpack.c.l.s8.bf16 %v320
    %v665 = vunpack.c.h.s8.bf16 %v317
    %v666 = vunpack.c.h.s8.bf16 %v318
    %v667 = vunpack.c.h.s8.bf16 %v319
    %v668 = vunpack.c.h.s8.bf16 %v320
    %v669 = vunpack.c.l.s8.bf16 %v321
    %v670 = vunpack.c.l.s8.bf16 %v322
    %v671 = vunpack.c.l.s8.bf16 %v323
    %v672 = vunpack.c.l.s8.bf16 %v324
    %v673 = vunpack.c.h.s8.bf16 %v321
    %v674 = vunpack.c.h.s8.bf16 %v322
    %v675 = vunpack.c.h.s8.bf16 %v323
    %v676 = vunpack.c.h.s8.bf16 %v324
    %v677 = vld [vmem:[#allocation6] sm:$0xff]
    %v678 = vld [vmem:[#allocation6 + $0x8] sm:$0xff]
    %v679 = vld [vmem:[#allocation6 + $0x10] sm:$0xff]
    %v680 = vld [vmem:[#allocation6 + $0x18] sm:$0xff]
    %v681 = vld [vmem:[#allocation6 + $0x20] sm:$0xff]
    %v682 = vld [vmem:[#allocation6 + $0x28] sm:$0xff]
    %v683 = vld [vmem:[#allocation6 + $0x30] sm:$0xff]
    %v684 = vld [vmem:[#allocation6 + $0x38] sm:$0xff]
    %v685 = vld [vmem:[#allocation6 + $0x40] sm:$0xff]
    %v686 = vld [vmem:[#allocation6 + $0x48] sm:$0xff]
    %v687 = vld [vmem:[#allocation6 + $0x50] sm:$0xff]
    %v688 = vld [vmem:[#allocation6 + $0x58] sm:$0xff]
    %v689 = vld [vmem:[#allocation6 + $0x60] sm:$0xff]
    %v690 = vld [vmem:[#allocation6 + $0x68] sm:$0xff]
    %v691 = vld [vmem:[#allocation6 + $0x70] sm:$0xff]
    %v692 = vld [vmem:[#allocation6 + $0x78] sm:$0xff]
    %v693 = vld [vmem:[#allocation6 + $0x80] sm:$0xff]
    %v694 = vld [vmem:[#allocation6 + $0x88] sm:$0xff]
    %v695 = vld [vmem:[#allocation6 + $0x90] sm:$0xff]
    %v696 = vld [vmem:[#allocation6 + $0x98] sm:$0xff]
    %v697 = vld [vmem:[#allocation6 + $0xa0] sm:$0xff]
    %v698 = vld [vmem:[#allocation6 + $0xa8] sm:$0xff]
    %v699 = vld [vmem:[#allocation6 + $0xb0] sm:$0xff]
    %v700 = vld [vmem:[#allocation6 + $0xb8] sm:$0xff]
    %v701 = vld [vmem:[#allocation6 + $0xc0] sm:$0xff]
    %v702 = vld [vmem:[#allocation6 + $0xc8] sm:$0xff]
    %v703 = vld [vmem:[#allocation6 + $0xd0] sm:$0xff]
    %v704 = vld [vmem:[#allocation6 + $0xd8] sm:$0xff]
    %v705 = vld [vmem:[#allocation6 + $0xe0] sm:$0xff]
    %v706 = vld [vmem:[#allocation6 + $0xe8] sm:$0xff]
    %v707 = vld [vmem:[#allocation6 + $0xf0] sm:$0xff]
    %v708 = vld [vmem:[#allocation6 + $0xf8] sm:$0xff]
    %v709 = vld [vmem:[#allocation6 + $0x100] sm:$0xff]
    %v710 = vld [vmem:[#allocation6 + $0x108] sm:$0xff]
    %v711 = vld [vmem:[#allocation6 + $0x110] sm:$0xff]
    %v712 = vld [vmem:[#allocation6 + $0x118] sm:$0xff]
    %v713 = vld [vmem:[#allocation6 + $0x120] sm:$0xff]
    %v714 = vld [vmem:[#allocation6 + $0x128] sm:$0xff]
    %v715 = vld [vmem:[#allocation6 + $0x130] sm:$0xff]
    %v716 = vld [vmem:[#allocation6 + $0x138] sm:$0xff]
    %v717 = vld [vmem:[#allocation6 + $0x140] sm:$0xff]
    %v718 = vld [vmem:[#allocation6 + $0x148] sm:$0xff]
    %v719 = vld [vmem:[#allocation6 + $0x150] sm:$0xff]
    %v720 = vld [vmem:[#allocation6 + $0x158] sm:$0xff]
    %v721 = vld [vmem:[#allocation6 + $0x160] sm:$0xff]
    %v722 = vld [vmem:[#allocation6 + $0x168] sm:$0xff]
    %v723 = vld [vmem:[#allocation6 + $0x170] sm:$0xff]
    %v724 = vld [vmem:[#allocation6 + $0x178] sm:$0xff]
    %v725 = vld [vmem:[#allocation6 + $0x180] sm:$0xff]
    %v726 = vld [vmem:[#allocation6 + $0x188] sm:$0xff]
    %v727 = vld [vmem:[#allocation6 + $0x190] sm:$0xff]
    %v728 = vld [vmem:[#allocation6 + $0x198] sm:$0xff]
    %v729 = vld [vmem:[#allocation6 + $0x1a0] sm:$0xff]
    %v730 = vld [vmem:[#allocation6 + $0x1a8] sm:$0xff]
    %v731 = vld [vmem:[#allocation6 + $0x1b0] sm:$0xff]
    %v732 = vld [vmem:[#allocation6 + $0x1b8] sm:$0xff]
    %v733 = vld [vmem:[#allocation6 + $0x1c0] sm:$0xff]
    %v734 = vld [vmem:[#allocation6 + $0x1c8] sm:$0xff]
    %v735 = vld [vmem:[#allocation6 + $0x1d0] sm:$0xff]
    %v736 = vld [vmem:[#allocation6 + $0x1d8] sm:$0xff]
    %v737 = vld [vmem:[#allocation6 + $0x1e0] sm:$0xff]
    %v738 = vld [vmem:[#allocation6 + $0x1e8] sm:$0xff]
    %v739 = vld [vmem:[#allocation6 + $0x1f0] sm:$0xff]
    %v740 = vld [vmem:[#allocation6 + $0x1f8] sm:$0xff]
    %v741 = vld [vmem:[#allocation6 + $0x200] sm:$0xff]
    %v742 = vld [vmem:[#allocation6 + $0x208] sm:$0xff]
    %v743 = vld [vmem:[#allocation6 + $0x210] sm:$0xff]
    %v744 = vld [vmem:[#allocation6 + $0x218] sm:$0xff]
    %v745 = vld [vmem:[#allocation6 + $0x220] sm:$0xff]
    %v746 = vld [vmem:[#allocation6 + $0x228] sm:$0xff]
    %v747 = vld [vmem:[#allocation6 + $0x230] sm:$0xff]
    %v748 = vld [vmem:[#allocation6 + $0x238] sm:$0xff]
    %v749 = vld [vmem:[#allocation6 + $0x240] sm:$0xff]
    %v750 = vld [vmem:[#allocation6 + $0x248] sm:$0xff]
    %v751 = vld [vmem:[#allocation6 + $0x250] sm:$0xff]
    %v752 = vld [vmem:[#allocation6 + $0x258] sm:$0xff]
    %v753 = vld [vmem:[#allocation6 + $0x260] sm:$0xff]
    %v754 = vld [vmem:[#allocation6 + $0x268] sm:$0xff]
    %v755 = vld [vmem:[#allocation6 + $0x270] sm:$0xff]
    %v756 = vld [vmem:[#allocation6 + $0x278] sm:$0xff]
    %v757 = vld [vmem:[#allocation6 + $0x280] sm:$0xff]
    %v758 = vld [vmem:[#allocation6 + $0x288] sm:$0xff]
    %v759 = vld [vmem:[#allocation6 + $0x290] sm:$0xff]
    %v760 = vld [vmem:[#allocation6 + $0x298] sm:$0xff]
    %v761 = vld [vmem:[#allocation6 + $0x2a0] sm:$0xff]
    %v762 = vld [vmem:[#allocation6 + $0x2a8] sm:$0xff]
    %v763 = vld [vmem:[#allocation6 + $0x2b0] sm:$0xff]
    %v764 = vld [vmem:[#allocation6 + $0x2b8] sm:$0xff]
    %v765 = vld [vmem:[#allocation6 + $0x2c0] sm:$0xff]
    %v766 = vld [vmem:[#allocation6 + $0x2c8] sm:$0xff]
    %v767 = vld [vmem:[#allocation6 + $0x2d0] sm:$0xff]
    %v768 = vld [vmem:[#allocation6 + $0x2d8] sm:$0xff]
    %v769 = vld [vmem:[#allocation6 + $0x2e0] sm:$0xff]
    %v770 = vld [vmem:[#allocation6 + $0x2e8] sm:$0xff]
    %v771 = vld [vmem:[#allocation6 + $0x2f0] sm:$0xff]
    %v772 = vld [vmem:[#allocation6 + $0x2f8] sm:$0xff]
    %v773 = vunpack.c.l.s8.bf16 %v677
    %v774 = vunpack.c.l.s8.bf16 %v678
    %v775 = vunpack.c.l.s8.bf16 %v679
    %v776 = vunpack.c.l.s8.bf16 %v680
    %v777 = vunpack.c.h.s8.bf16 %v677
    %v778 = vunpack.c.h.s8.bf16 %v678
    %v779 = vunpack.c.h.s8.bf16 %v679
    %v780 = vunpack.c.h.s8.bf16 %v680
    %v781 = vunpack.c.l.s8.bf16 %v681
    %v782 = vunpack.c.l.s8.bf16 %v682
    %v783 = vunpack.c.l.s8.bf16 %v683
    %v784 = vunpack.c.l.s8.bf16 %v684
    %v785 = vunpack.c.h.s8.bf16 %v681
    %v786 = vunpack.c.h.s8.bf16 %v682
    %v787 = vunpack.c.h.s8.bf16 %v683
    %v788 = vunpack.c.h.s8.bf16 %v684
    %v789 = vunpack.c.l.s8.bf16 %v685
    %v790 = vunpack.c.l.s8.bf16 %v686
    %v791 = vunpack.c.l.s8.bf16 %v687
    %v792 = vunpack.c.l.s8.bf16 %v688
    %v793 = vunpack.c.h.s8.bf16 %v685
    %v794 = vunpack.c.h.s8.bf16 %v686
    %v795 = vunpack.c.h.s8.bf16 %v687
    %v796 = vunpack.c.h.s8.bf16 %v688
    %v797 = vunpack.c.l.s8.bf16 %v689
    %v798 = vunpack.c.l.s8.bf16 %v690
    %v799 = vunpack.c.l.s8.bf16 %v691
    %v800 = vunpack.c.l.s8.bf16 %v692
    %v801 = vunpack.c.h.s8.bf16 %v689
    %v802 = vunpack.c.h.s8.bf16 %v690
    %v803 = vunpack.c.h.s8.bf16 %v691
    %v804 = vunpack.c.h.s8.bf16 %v692
    %v805 = vunpack.c.l.s8.bf16 %v693
    %v806 = vunpack.c.l.s8.bf16 %v694
    %v807 = vunpack.c.l.s8.bf16 %v695
    %v808 = vunpack.c.l.s8.bf16 %v696
    %v809 = vunpack.c.h.s8.bf16 %v693
    %v810 = vunpack.c.h.s8.bf16 %v694
    %v811 = vunpack.c.h.s8.bf16 %v695
    %v812 = vunpack.c.h.s8.bf16 %v696
    %v813 = vunpack.c.l.s8.bf16 %v697
    %v814 = vunpack.c.l.s8.bf16 %v698
    %v815 = vunpack.c.l.s8.bf16 %v699
    %v816 = vunpack.c.l.s8.bf16 %v700
    %v817 = vunpack.c.h.s8.bf16 %v697
    %v818 = vunpack.c.h.s8.bf16 %v698
    %v819 = vunpack.c.h.s8.bf16 %v699
    %v820 = vunpack.c.h.s8.bf16 %v700
    %v821 = vunpack.c.l.s8.bf16 %v701
    %v822 = vunpack.c.l.s8.bf16 %v702
    %v823 = vunpack.c.l.s8.bf16 %v703
    %v824 = vunpack.c.l.s8.bf16 %v704
    %v825 = vunpack.c.h.s8.bf16 %v701
    %v826 = vunpack.c.h.s8.bf16 %v702
    %v827 = vunpack.c.h.s8.bf16 %v703
    %v828 = vunpack.c.h.s8.bf16 %v704
    %v829 = vunpack.c.l.s8.bf16 %v705
    %v830 = vunpack.c.l.s8.bf16 %v706
    %v831 = vunpack.c.l.s8.bf16 %v707
    %v832 = vunpack.c.l.s8.bf16 %v708
    %v833 = vunpack.c.h.s8.bf16 %v705
    %v834 = vunpack.c.h.s8.bf16 %v706
    %v835 = vunpack.c.h.s8.bf16 %v707
    %v836 = vunpack.c.h.s8.bf16 %v708
    %v837 = vunpack.c.l.s8.bf16 %v709
    %v838 = vunpack.c.l.s8.bf16 %v710
    %v839 = vunpack.c.l.s8.bf16 %v711
    %v840 = vunpack.c.l.s8.bf16 %v712
    %v841 = vunpack.c.h.s8.bf16 %v709
    %v842 = vunpack.c.h.s8.bf16 %v710
    %v843 = vunpack.c.h.s8.bf16 %v711
    %v844 = vunpack.c.h.s8.bf16 %v712
    %v845 = vunpack.c.l.s8.bf16 %v713
    %v846 = vunpack.c.l.s8.bf16 %v714
    %v847 = vunpack.c.l.s8.bf16 %v715
    %v848 = vunpack.c.l.s8.bf16 %v716
    %v849 = vunpack.c.h.s8.bf16 %v713
    %v850 = vunpack.c.h.s8.bf16 %v714
    %v851 = vunpack.c.h.s8.bf16 %v715
    %v852 = vunpack.c.h.s8.bf16 %v716
    %v853 = vunpack.c.l.s8.bf16 %v717
    %v854 = vunpack.c.l.s8.bf16 %v718
    %v855 = vunpack.c.l.s8.bf16 %v719
    %v856 = vunpack.c.l.s8.bf16 %v720
    %v857 = vunpack.c.h.s8.bf16 %v717
    %v858 = vunpack.c.h.s8.bf16 %v718
    %v859 = vunpack.c.h.s8.bf16 %v719
    %v860 = vunpack.c.h.s8.bf16 %v720
    %v861 = vunpack.c.l.s8.bf16 %v721
    %v862 = vunpack.c.l.s8.bf16 %v722
    %v863 = vunpack.c.l.s8.bf16 %v723
    %v864 = vunpack.c.l.s8.bf16 %v724
    %v865 = vunpack.c.h.s8.bf16 %v721
    %v866 = vunpack.c.h.s8.bf16 %v722
    %v867 = vunpack.c.h.s8.bf16 %v723
    %v868 = vunpack.c.h.s8.bf16 %v724
    %v869 = vunpack.c.l.s8.bf16 %v725
    %v870 = vunpack.c.l.s8.bf16 %v726
    %v871 = vunpack.c.l.s8.bf16 %v727
    %v872 = vunpack.c.l.s8.bf16 %v728
    %v873 = vunpack.c.h.s8.bf16 %v725
    %v874 = vunpack.c.h.s8.bf16 %v726
    %v875 = vunpack.c.h.s8.bf16 %v727
    %v876 = vunpack.c.h.s8.bf16 %v728
    %v877 = vunpack.c.l.s8.bf16 %v729
    %v878 = vunpack.c.l.s8.bf16 %v730
    %v879 = vunpack.c.l.s8.bf16 %v731
    %v880 = vunpack.c.l.s8.bf16 %v732
    %v881 = vunpack.c.h.s8.bf16 %v729
    %v882 = vunpack.c.h.s8.bf16 %v730
    %v883 = vunpack.c.h.s8.bf16 %v731
    %v884 = vunpack.c.h.s8.bf16 %v732
    %v885 = vunpack.c.l.s8.bf16 %v733
    %v886 = vunpack.c.l.s8.bf16 %v734
    %v887 = vunpack.c.l.s8.bf16 %v735
    %v888 = vunpack.c.l.s8.bf16 %v736
    %v889 = vunpack.c.h.s8.bf16 %v733
    %v890 = vunpack.c.h.s8.bf16 %v734
    %v891 = vunpack.c.h.s8.bf16 %v735
    %v892 = vunpack.c.h.s8.bf16 %v736
    %v893 = vunpack.c.l.s8.bf16 %v737
    %v894 = vunpack.c.l.s8.bf16 %v738
    %v895 = vunpack.c.l.s8.bf16 %v739
    %v896 = vunpack.c.l.s8.bf16 %v740
    %v897 = vunpack.c.h.s8.bf16 %v737
    %v898 = vunpack.c.h.s8.bf16 %v738
    %v899 = vunpack.c.h.s8.bf16 %v739
    %v900 = vunpack.c.h.s8.bf16 %v740
    %v901 = vunpack.c.l.s8.bf16 %v741
    %v902 = vunpack.c.l.s8.bf16 %v742
    %v903 = vunpack.c.l.s8.bf16 %v743
    %v904 = vunpack.c.l.s8.bf16 %v744
    %v905 = vunpack.c.h.s8.bf16 %v741
    %v906 = vunpack.c.h.s8.bf16 %v742
    %v907 = vunpack.c.h.s8.bf16 %v743
    %v908 = vunpack.c.h.s8.bf16 %v744
    %v909 = vunpack.c.l.s8.bf16 %v745
    %v910 = vunpack.c.l.s8.bf16 %v746
    %v911 = vunpack.c.l.s8.bf16 %v747
    %v912 = vunpack.c.l.s8.bf16 %v748
    %v913 = vunpack.c.h.s8.bf16 %v745
    %v914 = vunpack.c.h.s8.bf16 %v746
    %v915 = vunpack.c.h.s8.bf16 %v747
    %v916 = vunpack.c.h.s8.bf16 %v748
    %v917 = vunpack.c.l.s8.bf16 %v749
    %v918 = vunpack.c.l.s8.bf16 %v750
    %v919 = vunpack.c.l.s8.bf16 %v751
    %v920 = vunpack.c.l.s8.bf16 %v752
    %v921 = vunpack.c.h.s8.bf16 %v749
    %v922 = vunpack.c.h.s8.bf16 %v750
    %v923 = vunpack.c.h.s8.bf16 %v751
    %v924 = vunpack.c.h.s8.bf16 %v752
    %v925 = vunpack.c.l.s8.bf16 %v753
    %v926 = vunpack.c.l.s8.bf16 %v754
    %v927 = vunpack.c.l.s8.bf16 %v755
    %v928 = vunpack.c.l.s8.bf16 %v756
    %v929 = vunpack.c.h.s8.bf16 %v753
    %v930 = vunpack.c.h.s8.bf16 %v754
    %v931 = vunpack.c.h.s8.bf16 %v755
    %v932 = vunpack.c.h.s8.bf16 %v756
    %v933 = vunpack.c.l.s8.bf16 %v757
    %v934 = vunpack.c.l.s8.bf16 %v758
    %v935 = vunpack.c.l.s8.bf16 %v759
    %v936 = vunpack.c.l.s8.bf16 %v760
    %v937 = vunpack.c.h.s8.bf16 %v757
    %v938 = vunpack.c.h.s8.bf16 %v758
    %v939 = vunpack.c.h.s8.bf16 %v759
    %v940 = vunpack.c.h.s8.bf16 %v760
    %v941 = vunpack.c.l.s8.bf16 %v761
    %v942 = vunpack.c.l.s8.bf16 %v762
    %v943 = vunpack.c.l.s8.bf16 %v763
    %v944 = vunpack.c.l.s8.bf16 %v764
    %v945 = vunpack.c.h.s8.bf16 %v761
    %v946 = vunpack.c.h.s8.bf16 %v762
    %v947 = vunpack.c.h.s8.bf16 %v763
    %v948 = vunpack.c.h.s8.bf16 %v764
    %v949 = vunpack.c.l.s8.bf16 %v765
    %v950 = vunpack.c.l.s8.bf16 %v766
    %v951 = vunpack.c.l.s8.bf16 %v767
    %v952 = vunpack.c.l.s8.bf16 %v768
    %v953 = vunpack.c.h.s8.bf16 %v765
    %v954 = vunpack.c.h.s8.bf16 %v766
    %v955 = vunpack.c.h.s8.bf16 %v767
    %v956 = vunpack.c.h.s8.bf16 %v768
    %v957 = vunpack.c.l.s8.bf16 %v769
    %v958 = vunpack.c.l.s8.bf16 %v770
    %v959 = vunpack.c.l.s8.bf16 %v771
    %v960 = vunpack.c.l.s8.bf16 %v772
    %v961 = vunpack.c.h.s8.bf16 %v769
    %v962 = vunpack.c.h.s8.bf16 %v770
    %v963 = vunpack.c.h.s8.bf16 %v771
    %v964 = vunpack.c.h.s8.bf16 %v772
    %v968 = vunpack.c.l.b16 %v146
    %v969 = vunpack.c.h.b16 %v146
    %v970 = vunpack.c.l.b16 %v147
    %v971 = vunpack.c.h.b16 %v147
    %v972 = vunpack.c.l.b16 %v148
    %v973 = vunpack.c.h.b16 %v148
    %v974 = vpack.c.b16 %v968, %v968
    %v975 = vpack.c.b16 %v969, %v969
    %v976 = vpack.c.b16 %v970, %v970
    %v977 = vpack.c.b16 %v971, %v971
    %v978 = vpack.c.b16 %v972, %v972
    %v979 = vpack.c.b16 %v973, %v973
    %986 = vmatprep.subr.bf16.mxu0 %v802
    %987 = vmatpush1.bf16.msra.mxu0 %v801
    %988 = vmatprep.subr.bf16.mxu0 %v798
    %989 = vmatpush1.bf16.msra.mxu0 %v797
    %990 = vmatprep.subr.bf16.mxu0 %v794
    %991 = vmatpush1.bf16.msra.mxu0 %v793
    %992 = vmatprep.subr.bf16.mxu0 %v790
    %993 = vmatpush1.bf16.msra.mxu0 %v789
    %994 = vmatprep.subr.bf16.mxu0 %v786
    %995 = vmatpush1.bf16.msra.mxu0 %v785
    %996 = vmatprep.subr.bf16.mxu0 %v782
    %997 = vmatpush1.bf16.msra.mxu0 %v781
    %998 = vmatprep.subr.bf16.mxu0 %v778
    %999 = vmatpush1.bf16.msra.mxu0 %v777
    %1000 = vmatprep.subr.bf16.mxu0 %v774
    %1001 = vmatpush1.bf16.msra.mxu0 %v773
    %1002 = vmatprep.subr.bf16.mxu0 %v834
    %1003 = vmatpush2.bf16.msra.mxu0 %v833
    %1004 = vmatprep.subr.bf16.mxu0 %v830
    %1005 = vmatpush2.bf16.msra.mxu0 %v829
    %1006 = vmatprep.subr.bf16.mxu0 %v826
    %1007 = vmatpush2.bf16.msra.mxu0 %v825
    %1008 = vmatprep.subr.bf16.mxu0 %v822
    %1009 = vmatpush2.bf16.msra.mxu0 %v821
    %1010 = vmatprep.subr.bf16.mxu0 %v818
    %1011 = vmatpush2.bf16.msra.mxu0 %v817
    %1012 = vmatprep.subr.bf16.mxu0 %v814
    %1013 = vmatpush2.bf16.msra.mxu0 %v813
    %1014 = vmatprep.subr.bf16.mxu0 %v810
    %1015 = vmatpush2.bf16.msra.mxu0 %v809
    %1016 = vmatprep.subr.bf16.mxu0 %v806
    %1017 = vmatpush2.bf16.msra.mxu0 %v805
    %1018 = vmatprep.mubr.bf16.mxu0 %v975
    %1019 = vmatmul.mubr.bf16.gmra.mxu0 %v974
    %v1020 = vpop.f32.mrf.mxu0
    %v1021 = vadd.f32 0.0, %v1020
    %v1022 = vpop.f32.mrf.mxu0
    %v1023 = vadd.f32 0.0, %v1022
    %v1024 = vpop.f32.mrf.mxu0
    %v1025 = vpop.f32.mrf.mxu0
    %1026 = vdwg.mxu0
    %1027 = vmatprep.subr.bf16.mxu0 %v866
    %1028 = vmatpush1.bf16.msra.mxu0 %v865
    %1029 = vmatprep.subr.bf16.mxu0 %v862
    %1030 = vmatpush1.bf16.msra.mxu0 %v861
    %1031 = vmatprep.subr.bf16.mxu0 %v858
    %1032 = vmatpush1.bf16.msra.mxu0 %v857
    %1033 = vmatprep.subr.bf16.mxu0 %v854
    %1034 = vmatpush1.bf16.msra.mxu0 %v853
    %1035 = vmatprep.subr.bf16.mxu0 %v850
    %1036 = vmatpush1.bf16.msra.mxu0 %v849
    %1037 = vmatprep.subr.bf16.mxu0 %v846
    %1038 = vmatpush1.bf16.msra.mxu0 %v845
    %1039 = vmatprep.subr.bf16.mxu0 %v842
    %1040 = vmatpush1.bf16.msra.mxu0 %v841
    %1041 = vmatprep.subr.bf16.mxu0 %v838
    %1042 = vmatpush1.bf16.msra.mxu0 %v837
    %1043 = vmatprep.subr.bf16.mxu0 %v898
    %1044 = vmatpush2.bf16.msra.mxu0 %v897
    %1045 = vmatprep.subr.bf16.mxu0 %v894
    %1046 = vmatpush2.bf16.msra.mxu0 %v893
    %1047 = vmatprep.subr.bf16.mxu0 %v890
    %1048 = vmatpush2.bf16.msra.mxu0 %v889
    %1049 = vmatprep.subr.bf16.mxu0 %v886
    %1050 = vmatpush2.bf16.msra.mxu0 %v885
    %1051 = vmatprep.subr.bf16.mxu0 %v882
    %1052 = vmatpush2.bf16.msra.mxu0 %v881
    %1053 = vmatprep.subr.bf16.mxu0 %v878
    %1054 = vmatpush2.bf16.msra.mxu0 %v877
    %1055 = vmatprep.subr.bf16.mxu0 %v874
    %1056 = vmatpush2.bf16.msra.mxu0 %v873
    %1057 = vmatprep.subr.bf16.mxu0 %v870
    %1058 = vmatpush2.bf16.msra.mxu0 %v869
    %1059 = vmatprep.mubr.bf16.mxu0 %v977
    %1060 = vmatmul.mubr.bf16.gmra.mxu0 %v976
    %v1061 = vpop.f32.mrf.mxu0
    %v1062 = vadd.f32 %v1021, %v1061
    %v1063 = vpop.f32.mrf.mxu0
    %v1064 = vadd.f32 %v1023, %v1063
    %v1065 = vpop.f32.mrf.mxu0
    %v1066 = vpop.f32.mrf.mxu0
    %1067 = vdwg.mxu0
    %1068 = vmatprep.subr.bf16.mxu0 %v930
    %1069 = vmatpush1.bf16.msra.mxu0 %v929
    %1070 = vmatprep.subr.bf16.mxu0 %v926
    %1071 = vmatpush1.bf16.msra.mxu0 %v925
    %1072 = vmatprep.subr.bf16.mxu0 %v922
    %1073 = vmatpush1.bf16.msra.mxu0 %v921
    %1074 = vmatprep.subr.bf16.mxu0 %v918
    %1075 = vmatpush1.bf16.msra.mxu0 %v917
    %1076 = vmatprep.subr.bf16.mxu0 %v914
    %1077 = vmatpush1.bf16.msra.mxu0 %v913
    %1078 = vmatprep.subr.bf16.mxu0 %v910
    %1079 = vmatpush1.bf16.msra.mxu0 %v909
    %1080 = vmatprep.subr.bf16.mxu0 %v906
    %1081 = vmatpush1.bf16.msra.mxu0 %v905
    %1082 = vmatprep.subr.bf16.mxu0 %v902
    %1083 = vmatpush1.bf16.msra.mxu0 %v901
    %1084 = vmatprep.subr.bf16.mxu0 %v962
    %1085 = vmatpush2.bf16.msra.mxu0 %v961
    %1086 = vmatprep.subr.bf16.mxu0 %v958
    %1087 = vmatpush2.bf16.msra.mxu0 %v957
    %1088 = vmatprep.subr.bf16.mxu0 %v954
    %1089 = vmatpush2.bf16.msra.mxu0 %v953
    %1090 = vmatprep.subr.bf16.mxu0 %v950
    %1091 = vmatpush2.bf16.msra.mxu0 %v949
    %1092 = vmatprep.subr.bf16.mxu0 %v946
    %1093 = vmatpush2.bf16.msra.mxu0 %v945
    %1094 = vmatprep.subr.bf16.mxu0 %v942
    %1095 = vmatpush2.bf16.msra.mxu0 %v941
    %1096 = vmatprep.subr.bf16.mxu0 %v938
    %1097 = vmatpush2.bf16.msra.mxu0 %v937
    %1098 = vmatprep.subr.bf16.mxu0 %v934
    %1099 = vmatpush2.bf16.msra.mxu0 %v933
    %1100 = vmatprep.mubr.bf16.mxu0 %v979
    %1101 = vmatmul.mubr.bf16.gmra.mxu0 %v978
    %v1102 = vpop.f32.mrf.mxu0
    %v1103 = vadd.f32 %v1062, %v1102
    %v1104 = vpop.f32.mrf.mxu0
    %v1105 = vadd.f32 %v1064, %v1104
    %v1106 = vpop.f32.mrf.mxu0
    %v1107 = vpop.f32.mrf.mxu0
    %1108 = vdwg.mxu0
    %1109 = vmatprep.subr.bf16.mxu0 %v804
    %1110 = vmatpush1.bf16.msra.mxu0 %v803
    %1111 = vmatprep.subr.bf16.mxu0 %v800
    %1112 = vmatpush1.bf16.msra.mxu0 %v799
    %1113 = vmatprep.subr.bf16.mxu0 %v796
    %1114 = vmatpush1.bf16.msra.mxu0 %v795
    %1115 = vmatprep.subr.bf16.mxu0 %v792
    %1116 = vmatpush1.bf16.msra.mxu0 %v791
    %1117 = vmatprep.subr.bf16.mxu0 %v788
    %1118 = vmatpush1.bf16.msra.mxu0 %v787
    %1119 = vmatprep.subr.bf16.mxu0 %v784
    %1120 = vmatpush1.bf16.msra.mxu0 %v783
    %1121 = vmatprep.subr.bf16.mxu0 %v780
    %1122 = vmatpush1.bf16.msra.mxu0 %v779
    %1123 = vmatprep.subr.bf16.mxu0 %v776
    %1124 = vmatpush1.bf16.msra.mxu0 %v775
    %1125 = vmatprep.subr.bf16.mxu0 %v836
    %1126 = vmatpush2.bf16.msra.mxu0 %v835
    %1127 = vmatprep.subr.bf16.mxu0 %v832
    %1128 = vmatpush2.bf16.msra.mxu0 %v831
    %1129 = vmatprep.subr.bf16.mxu0 %v828
    %1130 = vmatpush2.bf16.msra.mxu0 %v827
    %1131 = vmatprep.subr.bf16.mxu0 %v824
    %1132 = vmatpush2.bf16.msra.mxu0 %v823
    %1133 = vmatprep.subr.bf16.mxu0 %v820
    %1134 = vmatpush2.bf16.msra.mxu0 %v819
    %1135 = vmatprep.subr.bf16.mxu0 %v816
    %1136 = vmatpush2.bf16.msra.mxu0 %v815
    %1137 = vmatprep.subr.bf16.mxu0 %v812
    %1138 = vmatpush2.bf16.msra.mxu0 %v811
    %1139 = vmatprep.subr.bf16.mxu0 %v808
    %1140 = vmatpush2.bf16.msra.mxu0 %v807
    %1141 = vmatprep.mubr.bf16.mxu0 %v975
    %1142 = vmatmul.mubr.bf16.gmra.mxu0 %v974
    %v1143 = vpop.f32.mrf.mxu0
    %v1144 = vadd.f32 0.0, %v1143
    %v1145 = vpop.f32.mrf.mxu0
    %v1146 = vadd.f32 0.0, %v1145
    %v1147 = vpop.f32.mrf.mxu0
    %v1148 = vpop.f32.mrf.mxu0
    %1149 = vdwg.mxu0
    %1150 = vmatprep.subr.bf16.mxu0 %v868
    %1151 = vmatpush1.bf16.msra.mxu0 %v867
    %1152 = vmatprep.subr.bf16.mxu0 %v864
    %1153 = vmatpush1.bf16.msra.mxu0 %v863
    %1154 = vmatprep.subr.bf16.mxu0 %v860
    %1155 = vmatpush1.bf16.msra.mxu0 %v859
    %1156 = vmatprep.subr.bf16.mxu0 %v856
    %1157 = vmatpush1.bf16.msra.mxu0 %v855
    %1158 = vmatprep.subr.bf16.mxu0 %v852
    %1159 = vmatpush1.bf16.msra.mxu0 %v851
    %1160 = vmatprep.subr.bf16.mxu0 %v848
    %1161 = vmatpush1.bf16.msra.mxu0 %v847
    %1162 = vmatprep.subr.bf16.mxu0 %v844
    %1163 = vmatpush1.bf16.msra.mxu0 %v843
    %1164 = vmatprep.subr.bf16.mxu0 %v840
    %1165 = vmatpush1.bf16.msra.mxu0 %v839
    %1166 = vmatprep.subr.bf16.mxu0 %v900
    %1167 = vmatpush2.bf16.msra.mxu0 %v899
    %1168 = vmatprep.subr.bf16.mxu0 %v896
    %1169 = vmatpush2.bf16.msra.mxu0 %v895
    %1170 = vmatprep.subr.bf16.mxu0 %v892
    %1171 = vmatpush2.bf16.msra.mxu0 %v891
    %1172 = vmatprep.subr.bf16.mxu0 %v888
    %1173 = vmatpush2.bf16.msra.mxu0 %v887
    %1174 = vmatprep.subr.bf16.mxu0 %v884
    %1175 = vmatpush2.bf16.msra.mxu0 %v883
    %1176 = vmatprep.subr.bf16.mxu0 %v880
    %1177 = vmatpush2.bf16.msra.mxu0 %v879
    %1178 = vmatprep.subr.bf16.mxu0 %v876
    %1179 = vmatpush2.bf16.msra.mxu0 %v875
    %1180 = vmatprep.subr.bf16.mxu0 %v872
    %1181 = vmatpush2.bf16.msra.mxu0 %v871
    %1182 = vmatprep.mubr.bf16.mxu0 %v977
    %1183 = vmatmul.mubr.bf16.gmra.mxu0 %v976
    %v1184 = vpop.f32.mrf.mxu0
    %v1185 = vadd.f32 %v1144, %v1184
    %v1186 = vpop.f32.mrf.mxu0
    %v1187 = vadd.f32 %v1146, %v1186
    %v1188 = vpop.f32.mrf.mxu0
    %v1189 = vpop.f32.mrf.mxu0
    %1190 = vdwg.mxu0
    %1191 = vmatprep.subr.bf16.mxu0 %v932
    %1192 = vmatpush1.bf16.msra.mxu0 %v931
    %1193 = vmatprep.subr.bf16.mxu0 %v928
    %1194 = vmatpush1.bf16.msra.mxu0 %v927
    %1195 = vmatprep.subr.bf16.mxu0 %v924
    %1196 = vmatpush1.bf16.msra.mxu0 %v923
    %1197 = vmatprep.subr.bf16.mxu0 %v920
    %1198 = vmatpush1.bf16.msra.mxu0 %v919
    %1199 = vmatprep.subr.bf16.mxu0 %v916
    %1200 = vmatpush1.bf16.msra.mxu0 %v915
    %1201 = vmatprep.subr.bf16.mxu0 %v912
    %1202 = vmatpush1.bf16.msra.mxu0 %v911
    %1203 = vmatprep.subr.bf16.mxu0 %v908
    %1204 = vmatpush1.bf16.msra.mxu0 %v907
    %1205 = vmatprep.subr.bf16.mxu0 %v904
    %1206 = vmatpush1.bf16.msra.mxu0 %v903
    %1207 = vmatprep.subr.bf16.mxu0 %v964
    %1208 = vmatpush2.bf16.msra.mxu0 %v963
    %1209 = vmatprep.subr.bf16.mxu0 %v960
    %1210 = vmatpush2.bf16.msra.mxu0 %v959
    %1211 = vmatprep.subr.bf16.mxu0 %v956
    %1212 = vmatpush2.bf16.msra.mxu0 %v955
    %1213 = vmatprep.subr.bf16.mxu0 %v952
    %1214 = vmatpush2.bf16.msra.mxu0 %v951
    %1215 = vmatprep.subr.bf16.mxu0 %v948
    %1216 = vmatpush2.bf16.msra.mxu0 %v947
    %1217 = vmatprep.subr.bf16.mxu0 %v944
    %1218 = vmatpush2.bf16.msra.mxu0 %v943
    %1219 = vmatprep.subr.bf16.mxu0 %v940
    %1220 = vmatpush2.bf16.msra.mxu0 %v939
    %1221 = vmatprep.subr.bf16.mxu0 %v936
    %1222 = vmatpush2.bf16.msra.mxu0 %v935
    %1223 = vmatprep.mubr.bf16.mxu0 %v979
    %1224 = vmatmul.mubr.bf16.gmra.mxu0 %v978
    %v1225 = vpop.f32.mrf.mxu0
    %v1226 = vadd.f32 %v1185, %v1225
    %v1227 = vpop.f32.mrf.mxu0
    %v1228 = vadd.f32 %v1187, %v1227
    %v1229 = vpop.f32.mrf.mxu0
    %v1230 = vpop.f32.mrf.mxu0
    %1231 = vdwg.mxu0
    %v1238 = vunpack.c.l.b16 %v140
    %v1239 = vunpack.c.h.b16 %v140
    %v1240 = vunpack.c.l.b16 %v141
    %v1241 = vunpack.c.h.b16 %v141
    %v1242 = vunpack.c.l.b16 %v142
    %v1243 = vunpack.c.h.b16 %v142
    %v1244 = vunpack.c.l.b16 %v143
    %v1245 = vunpack.c.h.b16 %v143
    %v1246 = vunpack.c.l.b16 %v144
    %v1247 = vunpack.c.h.b16 %v144
    %v1248 = vunpack.c.l.b16 %v145
    %v1249 = vpack.c.b16 %v1238, %v1238
    %v1250 = vpack.c.b16 %v1239, %v1239
    %v1251 = vpack.c.b16 %v1240, %v1240
    %v1252 = vpack.c.b16 %v1241, %v1241
    %v1253 = vpack.c.b16 %v1242, %v1242
    %v1254 = vpack.c.b16 %v1243, %v1243
    %v1255 = vpack.c.b16 %v1244, %v1244
    %v1256 = vpack.c.b16 %v1245, %v1245
    %v1257 = vpack.c.b16 %v1246, %v1246
    %v1258 = vpack.c.b16 %v1247, %v1247
    %v1259 = vpack.c.b16 %v1248, %v1248
    %1271 = vmatprep.subr.bf16.mxu0 %v354
    %1272 = vmatpush1.bf16.msra.mxu0 %v353
    %1273 = vmatprep.subr.bf16.mxu0 %v350
    %1274 = vmatpush1.bf16.msra.mxu0 %v349
    %1275 = vmatprep.subr.bf16.mxu0 %v346
    %1276 = vmatpush1.bf16.msra.mxu0 %v345
    %1277 = vmatprep.subr.bf16.mxu0 %v342
    %1278 = vmatpush1.bf16.msra.mxu0 %v341
    %1279 = vmatprep.subr.bf16.mxu0 %v338
    %1280 = vmatpush1.bf16.msra.mxu0 %v337
    %1281 = vmatprep.subr.bf16.mxu0 %v334
    %1282 = vmatpush1.bf16.msra.mxu0 %v333
    %1283 = vmatprep.subr.bf16.mxu0 %v330
    %1284 = vmatpush1.bf16.msra.mxu0 %v329
    %1285 = vmatprep.subr.bf16.mxu0 %v326
    %1286 = vmatpush1.bf16.msra.mxu0 %v325
    %1287 = vmatprep.subr.bf16.mxu0 %v386
    %1288 = vmatpush2.bf16.msra.mxu0 %v385
    %1289 = vmatprep.subr.bf16.mxu0 %v382
    %1290 = vmatpush2.bf16.msra.mxu0 %v381
    %1291 = vmatprep.subr.bf16.mxu0 %v378
    %1292 = vmatpush2.bf16.msra.mxu0 %v377
    %1293 = vmatprep.subr.bf16.mxu0 %v374
    %1294 = vmatpush2.bf16.msra.mxu0 %v373
    %1295 = vmatprep.subr.bf16.mxu0 %v370
    %1296 = vmatpush2.bf16.msra.mxu0 %v369
    %1297 = vmatprep.subr.bf16.mxu0 %v366
    %1298 = vmatpush2.bf16.msra.mxu0 %v365
    %1299 = vmatprep.subr.bf16.mxu0 %v362
    %1300 = vmatpush2.bf16.msra.mxu0 %v361
    %1301 = vmatprep.subr.bf16.mxu0 %v358
    %1302 = vmatpush2.bf16.msra.mxu0 %v357
    %1303 = vmatprep.mubr.bf16.mxu0 %v1250
    %1304 = vmatmul.mubr.bf16.gmra.mxu0 %v1249
    %v1305 = vpop.f32.mrf.mxu0
    %v1306 = vadd.f32 %v1103, %v1305
    %v1307 = vpop.f32.mrf.mxu0
    %v1308 = vadd.f32 %v1105, %v1307
    %v1309 = vpop.f32.mrf.mxu0
    %v1310 = vpop.f32.mrf.mxu0
    %1311 = vdwg.mxu0
    %1312 = vmatprep.subr.bf16.mxu0 %v418
    %1313 = vmatpush1.bf16.msra.mxu0 %v417
    %1314 = vmatprep.subr.bf16.mxu0 %v414
    %1315 = vmatpush1.bf16.msra.mxu0 %v413
    %1316 = vmatprep.subr.bf16.mxu0 %v410
    %1317 = vmatpush1.bf16.msra.mxu0 %v409
    %1318 = vmatprep.subr.bf16.mxu0 %v406
    %1319 = vmatpush1.bf16.msra.mxu0 %v405
    %1320 = vmatprep.subr.bf16.mxu0 %v402
    %1321 = vmatpush1.bf16.msra.mxu0 %v401
    %1322 = vmatprep.subr.bf16.mxu0 %v398
    %1323 = vmatpush1.bf16.msra.mxu0 %v397
    %1324 = vmatprep.subr.bf16.mxu0 %v394
    %1325 = vmatpush1.bf16.msra.mxu0 %v393
    %1326 = vmatprep.subr.bf16.mxu0 %v390
    %1327 = vmatpush1.bf16.msra.mxu0 %v389
    %1328 = vmatprep.subr.bf16.mxu0 %v450
    %1329 = vmatpush2.bf16.msra.mxu0 %v449
    %1330 = vmatprep.subr.bf16.mxu0 %v446
    %1331 = vmatpush2.bf16.msra.mxu0 %v445
    %1332 = vmatprep.subr.bf16.mxu0 %v442
    %1333 = vmatpush2.bf16.msra.mxu0 %v441
    %1334 = vmatprep.subr.bf16.mxu0 %v438
    %1335 = vmatpush2.bf16.msra.mxu0 %v437
    %1336 = vmatprep.subr.bf16.mxu0 %v434
    %1337 = vmatpush2.bf16.msra.mxu0 %v433
    %1338 = vmatprep.subr.bf16.mxu0 %v430
    %1339 = vmatpush2.bf16.msra.mxu0 %v429
    %1340 = vmatprep.subr.bf16.mxu0 %v426
    %1341 = vmatpush2.bf16.msra.mxu0 %v425
    %1342 = vmatprep.subr.bf16.mxu0 %v422
    %1343 = vmatpush2.bf16.msra.mxu0 %v421
    %1344 = vmatprep.mubr.bf16.mxu0 %v1252
    %1345 = vmatmul.mubr.bf16.gmra.mxu0 %v1251
    %v1346 = vpop.f32.mrf.mxu0
    %v1347 = vadd.f32 %v1306, %v1346
    %v1348 = vpop.f32.mrf.mxu0
    %v1349 = vadd.f32 %v1308, %v1348
    %v1350 = vpop.f32.mrf.mxu0
    %v1351 = vpop.f32.mrf.mxu0
    %1352 = vdwg.mxu0
    %1353 = vmatprep.subr.bf16.mxu0 %v482
    %1354 = vmatpush1.bf16.msra.mxu0 %v481
    %1355 = vmatprep.subr.bf16.mxu0 %v478
    %1356 = vmatpush1.bf16.msra.mxu0 %v477
    %1357 = vmatprep.subr.bf16.mxu0 %v474
    %1358 = vmatpush1.bf16.msra.mxu0 %v473
    %1359 = vmatprep.subr.bf16.mxu0 %v470
    %1360 = vmatpush1.bf16.msra.mxu0 %v469
    %1361 = vmatprep.subr.bf16.mxu0 %v466
    %1362 = vmatpush1.bf16.msra.mxu0 %v465
    %1363 = vmatprep.subr.bf16.mxu0 %v462
    %1364 = vmatpush1.bf16.msra.mxu0 %v461
    %1365 = vmatprep.subr.bf16.mxu0 %v458
    %1366 = vmatpush1.bf16.msra.mxu0 %v457
    %1367 = vmatprep.subr.bf16.mxu0 %v454
    %1368 = vmatpush1.bf16.msra.mxu0 %v453
    %1369 = vmatprep.subr.bf16.mxu0 %v514
    %1370 = vmatpush2.bf16.msra.mxu0 %v513
    %1371 = vmatprep.subr.bf16.mxu0 %v510
    %1372 = vmatpush2.bf16.msra.mxu0 %v509
    %1373 = vmatprep.subr.bf16.mxu0 %v506
    %1374 = vmatpush2.bf16.msra.mxu0 %v505
    %1375 = vmatprep.subr.bf16.mxu0 %v502
    %1376 = vmatpush2.bf16.msra.mxu0 %v501
    %1377 = vmatprep.subr.bf16.mxu0 %v498
    %1378 = vmatpush2.bf16.msra.mxu0 %v497
    %1379 = vmatprep.subr.bf16.mxu0 %v494
    %1380 = vmatpush2.bf16.msra.mxu0 %v493
    %1381 = vmatprep.subr.bf16.mxu0 %v490
    %1382 = vmatpush2.bf16.msra.mxu0 %v489
    %1383 = vmatprep.subr.bf16.mxu0 %v486
    %1384 = vmatpush2.bf16.msra.mxu0 %v485
    %1385 = vmatprep.mubr.bf16.mxu0 %v1254
    %1386 = vmatmul.mubr.bf16.gmra.mxu0 %v1253
    %v1387 = vpop.f32.mrf.mxu0
    %v1388 = vadd.f32 %v1347, %v1387
    %v1389 = vpop.f32.mrf.mxu0
    %v1390 = vadd.f32 %v1349, %v1389
    %v1391 = vpop.f32.mrf.mxu0
    %v1392 = vpop.f32.mrf.mxu0
    %1393 = vdwg.mxu0
    %1394 = vmatprep.subr.bf16.mxu0 %v546
    %1395 = vmatpush1.bf16.msra.mxu0 %v545
    %1396 = vmatprep.subr.bf16.mxu0 %v542
    %1397 = vmatpush1.bf16.msra.mxu0 %v541
    %1398 = vmatprep.subr.bf16.mxu0 %v538
    %1399 = vmatpush1.bf16.msra.mxu0 %v537
    %1400 = vmatprep.subr.bf16.mxu0 %v534
    %1401 = vmatpush1.bf16.msra.mxu0 %v533
    %1402 = vmatprep.subr.bf16.mxu0 %v530
    %1403 = vmatpush1.bf16.msra.mxu0 %v529
    %1404 = vmatprep.subr.bf16.mxu0 %v526
    %1405 = vmatpush1.bf16.msra.mxu0 %v525
    %1406 = vmatprep.subr.bf16.mxu0 %v522
    %1407 = vmatpush1.bf16.msra.mxu0 %v521
    %1408 = vmatprep.subr.bf16.mxu0 %v518
    %1409 = vmatpush1.bf16.msra.mxu0 %v517
    %1410 = vmatprep.subr.bf16.mxu0 %v578
    %1411 = vmatpush2.bf16.msra.mxu0 %v577
    %1412 = vmatprep.subr.bf16.mxu0 %v574
    %1413 = vmatpush2.bf16.msra.mxu0 %v573
    %1414 = vmatprep.subr.bf16.mxu0 %v570
    %1415 = vmatpush2.bf16.msra.mxu0 %v569
    %1416 = vmatprep.subr.bf16.mxu0 %v566
    %1417 = vmatpush2.bf16.msra.mxu0 %v565
    %1418 = vmatprep.subr.bf16.mxu0 %v562
    %1419 = vmatpush2.bf16.msra.mxu0 %v561
    %1420 = vmatprep.subr.bf16.mxu0 %v558
    %1421 = vmatpush2.bf16.msra.mxu0 %v557
    %1422 = vmatprep.subr.bf16.mxu0 %v554
    %1423 = vmatpush2.bf16.msra.mxu0 %v553
    %1424 = vmatprep.subr.bf16.mxu0 %v550
    %1425 = vmatpush2.bf16.msra.mxu0 %v549
    %1426 = vmatprep.mubr.bf16.mxu0 %v1256
    %1427 = vmatmul.mubr.bf16.gmra.mxu0 %v1255
    %v1428 = vpop.f32.mrf.mxu0
    %v1429 = vadd.f32 %v1388, %v1428
    %v1430 = vpop.f32.mrf.mxu0
    %v1431 = vadd.f32 %v1390, %v1430
    %v1432 = vpop.f32.mrf.mxu0
    %v1433 = vpop.f32.mrf.mxu0
    %1434 = vdwg.mxu0
    %1435 = vmatprep.subr.bf16.mxu0 %v610
    %1436 = vmatpush1.bf16.msra.mxu0 %v609
    %1437 = vmatprep.subr.bf16.mxu0 %v606
    %1438 = vmatpush1.bf16.msra.mxu0 %v605
    %1439 = vmatprep.subr.bf16.mxu0 %v602
    %1440 = vmatpush1.bf16.msra.mxu0 %v601
    %1441 = vmatprep.subr.bf16.mxu0 %v598
    %1442 = vmatpush1.bf16.msra.mxu0 %v597
    %1443 = vmatprep.subr.bf16.mxu0 %v594
    %1444 = vmatpush1.bf16.msra.mxu0 %v593
    %1445 = vmatprep.subr.bf16.mxu0 %v590
    %1446 = vmatpush1.bf16.msra.mxu0 %v589
    %1447 = vmatprep.subr.bf16.mxu0 %v586
    %1448 = vmatpush1.bf16.msra.mxu0 %v585
    %1449 = vmatprep.subr.bf16.mxu0 %v582
    %1450 = vmatpush1.bf16.msra.mxu0 %v581
    %1451 = vmatprep.subr.bf16.mxu0 %v642
    %1452 = vmatpush2.bf16.msra.mxu0 %v641
    %1453 = vmatprep.subr.bf16.mxu0 %v638
    %1454 = vmatpush2.bf16.msra.mxu0 %v637
    %1455 = vmatprep.subr.bf16.mxu0 %v634
    %1456 = vmatpush2.bf16.msra.mxu0 %v633
    %1457 = vmatprep.subr.bf16.mxu0 %v630
    %1458 = vmatpush2.bf16.msra.mxu0 %v629
    %1459 = vmatprep.subr.bf16.mxu0 %v626
    %1460 = vmatpush2.bf16.msra.mxu0 %v625
    %1461 = vmatprep.subr.bf16.mxu0 %v622
    %1462 = vmatpush2.bf16.msra.mxu0 %v621
    %1463 = vmatprep.subr.bf16.mxu0 %v618
    %1464 = vmatpush2.bf16.msra.mxu0 %v617
    %1465 = vmatprep.subr.bf16.mxu0 %v614
    %1466 = vmatpush2.bf16.msra.mxu0 %v613
    %1467 = vmatprep.mubr.bf16.mxu0 %v1258
    %1468 = vmatmul.mubr.bf16.gmra.mxu0 %v1257
    %v1469 = vpop.f32.mrf.mxu0
    %v1470 = vadd.f32 %v1429, %v1469
    %v1471 = vpop.f32.mrf.mxu0
    %v1472 = vadd.f32 %v1431, %v1471
    %v1473 = vpop.f32.mrf.mxu0
    %v1474 = vpop.f32.mrf.mxu0
    %1475 = vdwg.mxu0
    %1476 = vmatprep.subr.bf16.mxu0 %v674
    %1477 = vmatpush1.bf16.msra.mxu0 %v673
    %1478 = vmatprep.subr.bf16.mxu0 %v670
    %1479 = vmatpush1.bf16.msra.mxu0 %v669
    %1480 = vmatprep.subr.bf16.mxu0 %v666
    %1481 = vmatpush1.bf16.msra.mxu0 %v665
    %1482 = vmatprep.subr.bf16.mxu0 %v662
    %1483 = vmatpush1.bf16.msra.mxu0 %v661
    %1484 = vmatprep.subr.bf16.mxu0 %v658
    %1485 = vmatpush1.bf16.msra.mxu0 %v657
    %1486 = vmatprep.subr.bf16.mxu0 %v654
    %1487 = vmatpush1.bf16.msra.mxu0 %v653
    %1488 = vmatprep.subr.bf16.mxu0 %v650
    %1489 = vmatpush1.bf16.msra.mxu0 %v649
    %1490 = vmatprep.subr.bf16.mxu0 %v646
    %1491 = vmatpush1.bf16.msra.mxu0 %v645
    %1492 = vmatprep.subr.bf16.mxu0 0
    %1493 = vmatpush2.bf16.msra.mxu0 0
    %1494 = vmatprep.subr.bf16.mxu0 0
    %1495 = vmatpush2.bf16.msra.mxu0 0
    %1496 = vmatprep.subr.bf16.mxu0 0
    %1497 = vmatpush2.bf16.msra.mxu0 0
    %1498 = vmatprep.subr.bf16.mxu0 0
    %1499 = vmatpush2.bf16.msra.mxu0 0
    %1500 = vmatprep.subr.bf16.mxu0 0
    %1501 = vmatpush2.bf16.msra.mxu0 0
    %1502 = vmatprep.subr.bf16.mxu0 0
    %1503 = vmatpush2.bf16.msra.mxu0 0
    %1504 = vmatprep.subr.bf16.mxu0 0
    %1505 = vmatpush2.bf16.msra.mxu0 0
    %1506 = vmatprep.subr.bf16.mxu0 0
    %1507 = vmatpush2.bf16.msra.mxu0 0
    %1508 = vmatprep.mubr.bf16.mxu0 0
    %1509 = vmatmul.mubr.bf16.gmra.mxu0 %v1259
    %v1510 = vpop.f32.mrf.mxu0
    %v1511 = vadd.f32 %v1470, %v1510
    %v1512 = vpop.f32.mrf.mxu0
    %v1513 = vadd.f32 %v1472, %v1512
    %v1514 = vpop.f32.mrf.mxu0
    %v1515 = vpop.f32.mrf.mxu0
    %1516 = vdwg.mxu0
    %1517 = vmatprep.subr.bf16.mxu0 %v356
    %1518 = vmatpush1.bf16.msra.mxu0 %v355
    %1519 = vmatprep.subr.bf16.mxu0 %v352
    %1520 = vmatpush1.bf16.msra.mxu0 %v351
    %1521 = vmatprep.subr.bf16.mxu0 %v348
    %1522 = vmatpush1.bf16.msra.mxu0 %v347
    %1523 = vmatprep.subr.bf16.mxu0 %v344
    %1524 = vmatpush1.bf16.msra.mxu0 %v343
    %1525 = vmatprep.subr.bf16.mxu0 %v340
    %1526 = vmatpush1.bf16.msra.mxu0 %v339
    %1527 = vmatprep.subr.bf16.mxu0 %v336
    %1528 = vmatpush1.bf16.msra.mxu0 %v335
    %1529 = vmatprep.subr.bf16.mxu0 %v332
    %1530 = vmatpush1.bf16.msra.mxu0 %v331
    %1531 = vmatprep.subr.bf16.mxu0 %v328
    %1532 = vmatpush1.bf16.msra.mxu0 %v327
    %1533 = vmatprep.subr.bf16.mxu0 %v388
    %1534 = vmatpush2.bf16.msra.mxu0 %v387
    %1535 = vmatprep.subr.bf16.mxu0 %v384
    %1536 = vmatpush2.bf16.msra.mxu0 %v383
    %1537 = vmatprep.subr.bf16.mxu0 %v380
    %1538 = vmatpush2.bf16.msra.mxu0 %v379
    %1539 = vmatprep.subr.bf16.mxu0 %v376
    %1540 = vmatpush2.bf16.msra.mxu0 %v375
    %1541 = vmatprep.subr.bf16.mxu0 %v372
    %1542 = vmatpush2.bf16.msra.mxu0 %v371
    %1543 = vmatprep.subr.bf16.mxu0 %v368
    %1544 = vmatpush2.bf16.msra.mxu0 %v367
    %1545 = vmatprep.subr.bf16.mxu0 %v364
    %1546 = vmatpush2.bf16.msra.mxu0 %v363
    %1547 = vmatprep.subr.bf16.mxu0 %v360
    %1548 = vmatpush2.bf16.msra.mxu0 %v359
    %1549 = vmatprep.mubr.bf16.mxu0 %v1250
    %1550 = vmatmul.mubr.bf16.gmra.mxu0 %v1249
    %v1551 = vpop.f32.mrf.mxu0
    %v1552 = vadd.f32 %v1226, %v1551
    %v1553 = vpop.f32.mrf.mxu0
    %v1554 = vadd.f32 %v1228, %v1553
    %v1555 = vpop.f32.mrf.mxu0
    %v1556 = vpop.f32.mrf.mxu0
    %1557 = vdwg.mxu0
    %1558 = vmatprep.subr.bf16.mxu0 %v420
    %1559 = vmatpush1.bf16.msra.mxu0 %v419
    %1560 = vmatprep.subr.bf16.mxu0 %v416
    %1561 = vmatpush1.bf16.msra.mxu0 %v415
    %1562 = vmatprep.subr.bf16.mxu0 %v412
    %1563 = vmatpush1.bf16.msra.mxu0 %v411
    %1564 = vmatprep.subr.bf16.mxu0 %v408
    %1565 = vmatpush1.bf16.msra.mxu0 %v407
    %1566 = vmatprep.subr.bf16.mxu0 %v404
    %1567 = vmatpush1.bf16.msra.mxu0 %v403
    %1568 = vmatprep.subr.bf16.mxu0 %v400
    %1569 = vmatpush1.bf16.msra.mxu0 %v399
    %1570 = vmatprep.subr.bf16.mxu0 %v396
    %1571 = vmatpush1.bf16.msra.mxu0 %v395
    %1572 = vmatprep.subr.bf16.mxu0 %v392
    %1573 = vmatpush1.bf16.msra.mxu0 %v391
    %1574 = vmatprep.subr.bf16.mxu0 %v452
    %1575 = vmatpush2.bf16.msra.mxu0 %v451
    %1576 = vmatprep.subr.bf16.mxu0 %v448
    %1577 = vmatpush2.bf16.msra.mxu0 %v447
    %1578 = vmatprep.subr.bf16.mxu0 %v444
    %1579 = vmatpush2.bf16.msra.mxu0 %v443
    %1580 = vmatprep.subr.bf16.mxu0 %v440
    %1581 = vmatpush2.bf16.msra.mxu0 %v439
    %1582 = vmatprep.subr.bf16.mxu0 %v436
    %1583 = vmatpush2.bf16.msra.mxu0 %v435
    %1584 = vmatprep.subr.bf16.mxu0 %v432
    %1585 = vmatpush2.bf16.msra.mxu0 %v431
    %1586 = vmatprep.subr.bf16.mxu0 %v428
    %1587 = vmatpush2.bf16.msra.mxu0 %v427
    %1588 = vmatprep.subr.bf16.mxu0 %v424
    %1589 = vmatpush2.bf16.msra.mxu0 %v423
    %1590 = vmatprep.mubr.bf16.mxu0 %v1252
    %1591 = vmatmul.mubr.bf16.gmra.mxu0 %v1251
    %v1592 = vpop.f32.mrf.mxu0
    %v1593 = vadd.f32 %v1552, %v1592
    %v1594 = vpop.f32.mrf.mxu0
    %v1595 = vadd.f32 %v1554, %v1594
    %v1596 = vpop.f32.mrf.mxu0
    %v1597 = vpop.f32.mrf.mxu0
    %1598 = vdwg.mxu0
    %1599 = vmatprep.subr.bf16.mxu0 %v484
    %1600 = vmatpush1.bf16.msra.mxu0 %v483
    %1601 = vmatprep.subr.bf16.mxu0 %v480
    %1602 = vmatpush1.bf16.msra.mxu0 %v479
    %1603 = vmatprep.subr.bf16.mxu0 %v476
    %1604 = vmatpush1.bf16.msra.mxu0 %v475
    %1605 = vmatprep.subr.bf16.mxu0 %v472
    %1606 = vmatpush1.bf16.msra.mxu0 %v471
    %1607 = vmatprep.subr.bf16.mxu0 %v468
    %1608 = vmatpush1.bf16.msra.mxu0 %v467
    %1609 = vmatprep.subr.bf16.mxu0 %v464
    %1610 = vmatpush1.bf16.msra.mxu0 %v463
    %1611 = vmatprep.subr.bf16.mxu0 %v460
    %1612 = vmatpush1.bf16.msra.mxu0 %v459
    %1613 = vmatprep.subr.bf16.mxu0 %v456
    %1614 = vmatpush1.bf16.msra.mxu0 %v455
    %1615 = vmatprep.subr.bf16.mxu0 %v516
    %1616 = vmatpush2.bf16.msra.mxu0 %v515
    %1617 = vmatprep.subr.bf16.mxu0 %v512
    %1618 = vmatpush2.bf16.msra.mxu0 %v511
    %1619 = vmatprep.subr.bf16.mxu0 %v508
    %1620 = vmatpush2.bf16.msra.mxu0 %v507
    %1621 = vmatprep.subr.bf16.mxu0 %v504
    %1622 = vmatpush2.bf16.msra.mxu0 %v503
    %1623 = vmatprep.subr.bf16.mxu0 %v500
    %1624 = vmatpush2.bf16.msra.mxu0 %v499
    %1625 = vmatprep.subr.bf16.mxu0 %v496
    %1626 = vmatpush2.bf16.msra.mxu0 %v495
    %1627 = vmatprep.subr.bf16.mxu0 %v492
    %1628 = vmatpush2.bf16.msra.mxu0 %v491
    %1629 = vmatprep.subr.bf16.mxu0 %v488
    %1630 = vmatpush2.bf16.msra.mxu0 %v487
    %1631 = vmatprep.mubr.bf16.mxu0 %v1254
    %1632 = vmatmul.mubr.bf16.gmra.mxu0 %v1253
    %v1633 = vpop.f32.mrf.mxu0
    %v1634 = vadd.f32 %v1593, %v1633
    %v1635 = vpop.f32.mrf.mxu0
    %v1636 = vadd.f32 %v1595, %v1635
    %v1637 = vpop.f32.mrf.mxu0
    %v1638 = vpop.f32.mrf.mxu0
    %1639 = vdwg.mxu0
    %1640 = vmatprep.subr.bf16.mxu0 %v548
    %1641 = vmatpush1.bf16.msra.mxu0 %v547
    %1642 = vmatprep.subr.bf16.mxu0 %v544
    %1643 = vmatpush1.bf16.msra.mxu0 %v543
    %1644 = vmatprep.subr.bf16.mxu0 %v540
    %1645 = vmatpush1.bf16.msra.mxu0 %v539
    %1646 = vmatprep.subr.bf16.mxu0 %v536
    %1647 = vmatpush1.bf16.msra.mxu0 %v535
    %1648 = vmatprep.subr.bf16.mxu0 %v532
    %1649 = vmatpush1.bf16.msra.mxu0 %v531
    %1650 = vmatprep.subr.bf16.mxu0 %v528
    %1651 = vmatpush1.bf16.msra.mxu0 %v527
    %1652 = vmatprep.subr.bf16.mxu0 %v524
    %1653 = vmatpush1.bf16.msra.mxu0 %v523
    %1654 = vmatprep.subr.bf16.mxu0 %v520
    %1655 = vmatpush1.bf16.msra.mxu0 %v519
    %1656 = vmatprep.subr.bf16.mxu0 %v580
    %1657 = vmatpush2.bf16.msra.mxu0 %v579
    %1658 = vmatprep.subr.bf16.mxu0 %v576
    %1659 = vmatpush2.bf16.msra.mxu0 %v575
    %1660 = vmatprep.subr.bf16.mxu0 %v572
    %1661 = vmatpush2.bf16.msra.mxu0 %v571
    %1662 = vmatprep.subr.bf16.mxu0 %v568
    %1663 = vmatpush2.bf16.msra.mxu0 %v567
    %1664 = vmatprep.subr.bf16.mxu0 %v564
    %1665 = vmatpush2.bf16.msra.mxu0 %v563
    %1666 = vmatprep.subr.bf16.mxu0 %v560
    %1667 = vmatpush2.bf16.msra.mxu0 %v559
    %1668 = vmatprep.subr.bf16.mxu0 %v556
    %1669 = vmatpush2.bf16.msra.mxu0 %v555
    %1670 = vmatprep.subr.bf16.mxu0 %v552
    %1671 = vmatpush2.bf16.msra.mxu0 %v551
    %1672 = vmatprep.mubr.bf16.mxu0 %v1256
    %1673 = vmatmul.mubr.bf16.gmra.mxu0 %v1255
    %v1674 = vpop.f32.mrf.mxu0
    %v1675 = vadd.f32 %v1634, %v1674
    %v1676 = vpop.f32.mrf.mxu0
    %v1677 = vadd.f32 %v1636, %v1676
    %v1678 = vpop.f32.mrf.mxu0
    %v1679 = vpop.f32.mrf.mxu0
    %1680 = vdwg.mxu0
    %1681 = vmatprep.subr.bf16.mxu0 %v612
    %1682 = vmatpush1.bf16.msra.mxu0 %v611
    %1683 = vmatprep.subr.bf16.mxu0 %v608
    %1684 = vmatpush1.bf16.msra.mxu0 %v607
    %1685 = vmatprep.subr.bf16.mxu0 %v604
    %1686 = vmatpush1.bf16.msra.mxu0 %v603
    %1687 = vmatprep.subr.bf16.mxu0 %v600
    %1688 = vmatpush1.bf16.msra.mxu0 %v599
    %1689 = vmatprep.subr.bf16.mxu0 %v596
    %1690 = vmatpush1.bf16.msra.mxu0 %v595
    %1691 = vmatprep.subr.bf16.mxu0 %v592
    %1692 = vmatpush1.bf16.msra.mxu0 %v591
    %1693 = vmatprep.subr.bf16.mxu0 %v588
    %1694 = vmatpush1.bf16.msra.mxu0 %v587
    %1695 = vmatprep.subr.bf16.mxu0 %v584
    %1696 = vmatpush1.bf16.msra.mxu0 %v583
    %1697 = vmatprep.subr.bf16.mxu0 %v644
    %1698 = vmatpush2.bf16.msra.mxu0 %v643
    %1699 = vmatprep.subr.bf16.mxu0 %v640
    %1700 = vmatpush2.bf16.msra.mxu0 %v639
    %1701 = vmatprep.subr.bf16.mxu0 %v636
    %1702 = vmatpush2.bf16.msra.mxu0 %v635
    %1703 = vmatprep.subr.bf16.mxu0 %v632
    %1704 = vmatpush2.bf16.msra.mxu0 %v631
    %1705 = vmatprep.subr.bf16.mxu0 %v628
    %1706 = vmatpush2.bf16.msra.mxu0 %v627
    %1707 = vmatprep.subr.bf16.mxu0 %v624
    %1708 = vmatpush2.bf16.msra.mxu0 %v623
    %1709 = vmatprep.subr.bf16.mxu0 %v620
    %1710 = vmatpush2.bf16.msra.mxu0 %v619
    %1711 = vmatprep.subr.bf16.mxu0 %v616
    %1712 = vmatpush2.bf16.msra.mxu0 %v615
    %1713 = vmatprep.mubr.bf16.mxu0 %v1258
    %1714 = vmatmul.mubr.bf16.gmra.mxu0 %v1257
    %v1715 = vpop.f32.mrf.mxu0
    %v1716 = vadd.f32 %v1675, %v1715
    %v1717 = vpop.f32.mrf.mxu0
    %v1718 = vadd.f32 %v1677, %v1717
    %v1719 = vpop.f32.mrf.mxu0
    %v1720 = vpop.f32.mrf.mxu0
    %1721 = vdwg.mxu0
    %1722 = vmatprep.subr.bf16.mxu0 %v676
    %1723 = vmatpush1.bf16.msra.mxu0 %v675
    %1724 = vmatprep.subr.bf16.mxu0 %v672
    %1725 = vmatpush1.bf16.msra.mxu0 %v671
    %1726 = vmatprep.subr.bf16.mxu0 %v668
    %1727 = vmatpush1.bf16.msra.mxu0 %v667
    %1728 = vmatprep.subr.bf16.mxu0 %v664
    %1729 = vmatpush1.bf16.msra.mxu0 %v663
    %1730 = vmatprep.subr.bf16.mxu0 %v660
    %1731 = vmatpush1.bf16.msra.mxu0 %v659
    %1732 = vmatprep.subr.bf16.mxu0 %v656
    %1733 = vmatpush1.bf16.msra.mxu0 %v655
    %1734 = vmatprep.subr.bf16.mxu0 %v652
    %1735 = vmatpush1.bf16.msra.mxu0 %v651
    %1736 = vmatprep.subr.bf16.mxu0 %v648
    %1737 = vmatpush1.bf16.msra.mxu0 %v647
    %1738 = vmatprep.subr.bf16.mxu0 0
    %1739 = vmatpush2.bf16.msra.mxu0 0
    %1740 = vmatprep.subr.bf16.mxu0 0
    %1741 = vmatpush2.bf16.msra.mxu0 0
    %1742 = vmatprep.subr.bf16.mxu0 0
    %1743 = vmatpush2.bf16.msra.mxu0 0
    %1744 = vmatprep.subr.bf16.mxu0 0
    %1745 = vmatpush2.bf16.msra.mxu0 0
    %1746 = vmatprep.subr.bf16.mxu0 0
    %1747 = vmatpush2.bf16.msra.mxu0 0
    %1748 = vmatprep.subr.bf16.mxu0 0
    %1749 = vmatpush2.bf16.msra.mxu0 0
    %1750 = vmatprep.subr.bf16.mxu0 0
    %1751 = vmatpush2.bf16.msra.mxu0 0
    %1752 = vmatprep.subr.bf16.mxu0 0
    %1753 = vmatpush2.bf16.msra.mxu0 0
    %1754 = vmatprep.mubr.bf16.mxu0 0
    %1755 = vmatmul.mubr.bf16.gmra.mxu0 %v1259
    %v1756 = vpop.f32.mrf.mxu0
    %v1757 = vadd.f32 %v1716, %v1756
    %v1758 = vpop.f32.mrf.mxu0
    %v1759 = vadd.f32 %v1718, %v1758
    %v1760 = vpop.f32.mrf.mxu0
    %v1761 = vpop.f32.mrf.mxu0
    %1762 = vdwg.mxu0
    %v1763 = vld [vmem:[%s4] sm:$0xf]
    %v1765 = vlaneseq
    %v1766 = vshrl.u32 %v1765, 7
    %v1767 = vsub.s32 0, %v1766
    %v1768 = vrot.slane %v1763, %v1767
    %v1769 = vlaneseq
    %v1770 = vshrl.u32 %v1769, 7
    %v1771 = vsub.s32 1, %v1770
    %v1772 = vrot.slane %v1763, %v1771
    %v1773 = vlaneseq
    %v1774 = vshrl.u32 %v1773, 7
    %v1775 = vsub.s32 2, %v1774
    %v1776 = vrot.slane %v1763, %v1775
    %v1777 = vlaneseq
    %v1778 = vshrl.u32 %v1777, 7
    %v1779 = vsub.s32 3, %v1778
    %v1780 = vrot.slane %v1763, %v1779
    %v1785 = vmul.f32 %v1511, %v1768
    %v1786 = vmul.f32 %v1513, %v1772
    %v1787 = vmul.f32 %v1757, %v1776
    %v1788 = vmul.f32 %v1759, %v1780
    %v1789 = vld [vmem:[%s5] sm:$0xf]
    %v1791 = vlaneseq
    %v1792 = vshrl.u32 %v1791, 7
    %v1793 = vsub.s32 0, %v1792
    %v1794 = vrot.slane %v1789, %v1793
    %v1795 = vlaneseq
    %v1796 = vshrl.u32 %v1795, 7
    %v1797 = vsub.s32 1, %v1796
    %v1798 = vrot.slane %v1789, %v1797
    %v1799 = vlaneseq
    %v1800 = vshrl.u32 %v1799, 7
    %v1801 = vsub.s32 2, %v1800
    %v1802 = vrot.slane %v1789, %v1801
    %v1803 = vlaneseq
    %v1804 = vshrl.u32 %v1803, 7
    %v1805 = vsub.s32 3, %v1804
    %v1806 = vrot.slane %v1789, %v1805
    %v1811 = vadd.f32 %v1785, %v1794
    %v1812 = vadd.f32 %v1786, %v1798
    %v1813 = vadd.f32 %v1787, %v1802
    %v1814 = vadd.f32 %v1788, %v1806
    %v1815 = vpack.c.bf16 %v1811, %v1811
    %v1816 = vpack.c.bf16 %v1812, %v1812
    %v1817 = vpack.c.bf16 %v1813, %v1813
    %v1818 = vpack.c.bf16 %v1814, %v1814
    %v1819 = vld [vmem:[#allocation8] sm:$0xf]
    %v1820 = vld [vmem:[#allocation8 + $0x4] sm:$0xf]
    %v1821 = vld [vmem:[#allocation8 + $0x8] sm:$0xf]
    %v1822 = vld [vmem:[#allocation8 + $0xc] sm:$0xf]
    %v1823 = vld [vmem:[#allocation8 + $0x10] sm:$0xf]
    %v1824 = vld [vmem:[#allocation8 + $0x14] sm:$0xf]
    %v1825 = vld [vmem:[#allocation8 + $0x18] sm:$0xf]
    %v1826 = vld [vmem:[#allocation8 + $0x1c] sm:$0xf]
    %v1827 = vld [vmem:[#allocation8 + $0x20] sm:$0xf]
    %v1828 = vld [vmem:[#allocation8 + $0x24] sm:$0xf]
    %v1829 = vld [vmem:[#allocation8 + $0x28] sm:$0xf]
    %v1830 = vld [vmem:[#allocation8 + $0x2c] sm:$0xf]
    %v1831 = vld [vmem:[#allocation8 + $0x30] sm:$0xf]
    %v1832 = vld [vmem:[#allocation8 + $0x34] sm:$0xf]
    %v1833 = vld [vmem:[#allocation8 + $0x38] sm:$0xf]
    %v1834 = vld [vmem:[#allocation8 + $0x3c] sm:$0xf]
    %v1835 = vld [vmem:[#allocation8 + $0x40] sm:$0xf]
    %v1836 = vld [vmem:[#allocation8 + $0x44] sm:$0xf]
    %v1837 = vld [vmem:[#allocation8 + $0x48] sm:$0xf]
    %v1838 = vld [vmem:[#allocation8 + $0x4c] sm:$0xf]
    %v1839 = vld [vmem:[#allocation8 + $0x50] sm:$0xf]
    %v1840 = vld [vmem:[#allocation8 + $0x54] sm:$0xf]
    %v1841 = vld [vmem:[#allocation8 + $0x58] sm:$0xf]
    %v1842 = vld [vmem:[#allocation8 + $0x5c] sm:$0xf]
    %v1843 = vld [vmem:[#allocation8 + $0x60] sm:$0xf]
    %v1844 = vld [vmem:[#allocation8 + $0x64] sm:$0xf]
    %v1845 = vld [vmem:[#allocation8 + $0x68] sm:$0xf]
    %v1846 = vld [vmem:[#allocation8 + $0x6c] sm:$0xf]
    %v1847 = vld [vmem:[#allocation8 + $0x70] sm:$0xf]
    %v1848 = vld [vmem:[#allocation8 + $0x74] sm:$0xf]
    %v1849 = vld [vmem:[#allocation8 + $0x78] sm:$0xf]
    %v1850 = vld [vmem:[#allocation8 + $0x7c] sm:$0xf]
    %v1851 = vld [vmem:[#allocation8 + $0x80] sm:$0xf]
    %v1852 = vld [vmem:[#allocation8 + $0x84] sm:$0xf]
    %v1853 = vld [vmem:[#allocation8 + $0x88] sm:$0xf]
    %v1854 = vld [vmem:[#allocation8 + $0x8c] sm:$0xf]
    %v1855 = vld [vmem:[#allocation8 + $0x90] sm:$0xf]
    %v1856 = vld [vmem:[#allocation8 + $0x94] sm:$0xf]
    %v1857 = vld [vmem:[#allocation8 + $0x98] sm:$0xf]
    %v1858 = vld [vmem:[#allocation8 + $0x9c] sm:$0xf]
    %v1859 = vld [vmem:[#allocation8 + $0xa0] sm:$0xf]
    %v1860 = vld [vmem:[#allocation8 + $0xa4] sm:$0xf]
    %v1861 = vld [vmem:[#allocation8 + $0xa8] sm:$0xf]
    %v1862 = vld [vmem:[#allocation8 + $0xac] sm:$0xf]
    %v1863 = vld [vmem:[#allocation8 + $0xb0] sm:$0xf]
    %v1864 = vld [vmem:[#allocation8 + $0xb4] sm:$0xf]
    %v1865 = vld [vmem:[#allocation8 + $0xb8] sm:$0xf]
    %v1866 = vld [vmem:[#allocation8 + $0xbc] sm:$0xf]
    %v1867 = vld [vmem:[#allocation8 + $0xc0] sm:$0xf]
    %v1868 = vld [vmem:[#allocation8 + $0xc4] sm:$0xf]
    %v1869 = vld [vmem:[#allocation8 + $0xc8] sm:$0xf]
    %v1870 = vld [vmem:[#allocation8 + $0xcc] sm:$0xf]
    %v1871 = vld [vmem:[#allocation8 + $0xd0] sm:$0xf]
    %v1872 = vld [vmem:[#allocation8 + $0xd4] sm:$0xf]
    %v1873 = vld [vmem:[#allocation8 + $0xd8] sm:$0xf]
    %v1874 = vld [vmem:[#allocation8 + $0xdc] sm:$0xf]
    %v1875 = vld [vmem:[#allocation8 + $0xe0] sm:$0xf]
    %v1876 = vld [vmem:[#allocation8 + $0xe4] sm:$0xf]
    %v1877 = vld [vmem:[#allocation8 + $0xe8] sm:$0xf]
    %v1878 = vld [vmem:[#allocation8 + $0xec] sm:$0xf]
    %v1879 = vld [vmem:[#allocation8 + $0xf0] sm:$0xf]
    %v1880 = vld [vmem:[#allocation8 + $0xf4] sm:$0xf]
    %v1881 = vld [vmem:[#allocation8 + $0xf8] sm:$0xf]
    %v1882 = vld [vmem:[#allocation8 + $0xfc] sm:$0xf]
    %v1883 = vld [vmem:[%s7] sm:$0x1]
    %v1885 = vlaneseq
    %v1886 = vshrl.u32 %v1885, 7
    %v1887 = vsub.s32 0, %v1886
    %v1888 = vrot.slane %v1883, %v1887
    %v1954 = vunpack.c.l.b16 %v1819
    %v1955 = vunpack.c.l.b16 %v1820
    %v1956 = vunpack.c.l.b16 %v1821
    %v1957 = vunpack.c.l.b16 %v1822
    %v1958 = vunpack.c.l.b16 %v1823
    %v1959 = vunpack.c.l.b16 %v1824
    %v1960 = vunpack.c.l.b16 %v1825
    %v1961 = vunpack.c.l.b16 %v1826
    %v1962 = vunpack.c.l.b16 %v1827
    %v1963 = vunpack.c.l.b16 %v1828
    %v1964 = vunpack.c.l.b16 %v1829
    %v1965 = vunpack.c.l.b16 %v1830
    %v1966 = vunpack.c.l.b16 %v1831
    %v1967 = vunpack.c.l.b16 %v1832
    %v1968 = vunpack.c.l.b16 %v1833
    %v1969 = vunpack.c.l.b16 %v1834
    %v1970 = vunpack.c.l.b16 %v1835
    %v1971 = vunpack.c.l.b16 %v1836
    %v1972 = vunpack.c.l.b16 %v1837
    %v1973 = vunpack.c.l.b16 %v1838
    %v1974 = vunpack.c.l.b16 %v1839
    %v1975 = vunpack.c.l.b16 %v1840
    %v1976 = vunpack.c.l.b16 %v1841
    %v1977 = vunpack.c.l.b16 %v1842
    %v1978 = vunpack.c.l.b16 %v1843
    %v1979 = vunpack.c.l.b16 %v1844
    %v1980 = vunpack.c.l.b16 %v1845
    %v1981 = vunpack.c.l.b16 %v1846
    %v1982 = vunpack.c.l.b16 %v1847
    %v1983 = vunpack.c.l.b16 %v1848
    %v1984 = vunpack.c.l.b16 %v1849
    %v1985 = vunpack.c.l.b16 %v1850
    %v1986 = vunpack.c.l.b16 %v1851
    %v1987 = vunpack.c.l.b16 %v1852
    %v1988 = vunpack.c.l.b16 %v1853
    %v1989 = vunpack.c.l.b16 %v1854
    %v1990 = vunpack.c.l.b16 %v1855
    %v1991 = vunpack.c.l.b16 %v1856
    %v1992 = vunpack.c.l.b16 %v1857
    %v1993 = vunpack.c.l.b16 %v1858
    %v1994 = vunpack.c.l.b16 %v1859
    %v1995 = vunpack.c.l.b16 %v1860
    %v1996 = vunpack.c.l.b16 %v1861
    %v1997 = vunpack.c.l.b16 %v1862
    %v1998 = vunpack.c.l.b16 %v1863
    %v1999 = vunpack.c.l.b16 %v1864
    %v2000 = vunpack.c.l.b16 %v1865
    %v2001 = vunpack.c.l.b16 %v1866
    %v2002 = vunpack.c.l.b16 %v1867
    %v2003 = vunpack.c.l.b16 %v1868
    %v2004 = vunpack.c.l.b16 %v1869
    %v2005 = vunpack.c.l.b16 %v1870
    %v2006 = vunpack.c.l.b16 %v1871
    %v2007 = vunpack.c.l.b16 %v1872
    %v2008 = vunpack.c.l.b16 %v1873
    %v2009 = vunpack.c.l.b16 %v1874
    %v2010 = vunpack.c.l.b16 %v1875
    %v2011 = vunpack.c.l.b16 %v1876
    %v2012 = vunpack.c.l.b16 %v1877
    %v2013 = vunpack.c.l.b16 %v1878
    %v2014 = vunpack.c.l.b16 %v1879
    %v2015 = vunpack.c.l.b16 %v1880
    %v2016 = vunpack.c.l.b16 %v1881
    %v2017 = vunpack.c.l.b16 %v1882
    %v2018 = vpack.c.b16 %v1955, %v1954
    %v2019 = vpack.c.b16 %v1957, %v1956
    %v2020 = vpack.c.b16 %v1959, %v1958
    %v2021 = vpack.c.b16 %v1961, %v1960
    %v2022 = vpack.c.b16 %v1963, %v1962
    %v2023 = vpack.c.b16 %v1965, %v1964
    %v2024 = vpack.c.b16 %v1967, %v1966
    %v2025 = vpack.c.b16 %v1969, %v1968
    %v2026 = vpack.c.b16 %v1971, %v1970
    %v2027 = vpack.c.b16 %v1973, %v1972
    %v2028 = vpack.c.b16 %v1975, %v1974
    %v2029 = vpack.c.b16 %v1977, %v1976
    %v2030 = vpack.c.b16 %v1979, %v1978
    %v2031 = vpack.c.b16 %v1981, %v1980
    %v2032 = vpack.c.b16 %v1983, %v1982
    %v2033 = vpack.c.b16 %v1985, %v1984
    %v2034 = vpack.c.b16 %v1987, %v1986
    %v2035 = vpack.c.b16 %v1989, %v1988
    %v2036 = vpack.c.b16 %v1991, %v1990
    %v2037 = vpack.c.b16 %v1993, %v1992
    %v2038 = vpack.c.b16 %v1995, %v1994
    %v2039 = vpack.c.b16 %v1997, %v1996
    %v2040 = vpack.c.b16 %v1999, %v1998
    %v2041 = vpack.c.b16 %v2001, %v2000
    %v2042 = vpack.c.b16 %v2003, %v2002
    %v2043 = vpack.c.b16 %v2005, %v2004
    %v2044 = vpack.c.b16 %v2007, %v2006
    %v2045 = vpack.c.b16 %v2009, %v2008
    %v2046 = vpack.c.b16 %v2011, %v2010
    %v2047 = vpack.c.b16 %v2013, %v2012
    %v2048 = vpack.c.b16 %v2015, %v2014
    %v2049 = vpack.c.b16 %v2017, %v2016
    %2082 = vmatprep.subr.bf16.mxu0 0
    %2083 = vmatpush1.bf16.msra.mxu0 %v2025
    %2084 = vmatprep.subr.bf16.mxu0 0
    %2085 = vmatpush1.bf16.msra.mxu0 %v2024
    %2086 = vmatprep.subr.bf16.mxu0 0
    %2087 = vmatpush1.bf16.msra.mxu0 %v2023
    %2088 = vmatprep.subr.bf16.mxu0 0
    %2089 = vmatpush1.bf16.msra.mxu0 %v2022
    %2090 = vmatprep.subr.bf16.mxu0 0
    %2091 = vmatpush1.bf16.msra.mxu0 %v2021
    %2092 = vmatprep.subr.bf16.mxu0 0
    %2093 = vmatpush1.bf16.msra.mxu0 %v2020
    %2094 = vmatprep.subr.bf16.mxu0 0
    %2095 = vmatpush1.bf16.msra.mxu0 %v2019
    %2096 = vmatprep.subr.bf16.mxu0 0
    %2097 = vmatpush1.bf16.msra.mxu0 %v2018
    %2098 = vmatprep.subr.bf16.mxu0 0
    %2099 = vmatpush2.bf16.msra.mxu0 %v2033
    %2100 = vmatprep.subr.bf16.mxu0 0
    %2101 = vmatpush2.bf16.msra.mxu0 %v2032
    %2102 = vmatprep.subr.bf16.mxu0 0
    %2103 = vmatpush2.bf16.msra.mxu0 %v2031
    %2104 = vmatprep.subr.bf16.mxu0 0
    %2105 = vmatpush2.bf16.msra.mxu0 %v2030
    %2106 = vmatprep.subr.bf16.mxu0 0
    %2107 = vmatpush2.bf16.msra.mxu0 %v2029
    %2108 = vmatprep.subr.bf16.mxu0 0
    %2109 = vmatpush2.bf16.msra.mxu0 %v2028
    %2110 = vmatprep.subr.bf16.mxu0 0
    %2111 = vmatpush2.bf16.msra.mxu0 %v2027
    %2112 = vmatprep.subr.bf16.mxu0 0
    %2113 = vmatpush2.bf16.msra.mxu0 %v2026
    %2114 = vmatprep.mubr.bf16.mxu0 %v1816
    %2115 = vmatmul.mubr.bf16.gmra.mxu0 %v1815
    %v2116 = vpop.f32.mrf.mxu0
    %v2117 = vadd.f32 %v1888, %v2116
    %v2118 = vpop.f32.mrf.mxu0
    %v2119 = vpop.f32.mrf.mxu0
    %v2120 = vpop.f32.mrf.mxu0
    %2121 = vdwg.mxu0
    %2122 = vmatprep.subr.bf16.mxu0 0
    %2123 = vmatpush1.bf16.msra.mxu0 %v2041
    %2124 = vmatprep.subr.bf16.mxu0 0
    %2125 = vmatpush1.bf16.msra.mxu0 %v2040
    %2126 = vmatprep.subr.bf16.mxu0 0
    %2127 = vmatpush1.bf16.msra.mxu0 %v2039
    %2128 = vmatprep.subr.bf16.mxu0 0
    %2129 = vmatpush1.bf16.msra.mxu0 %v2038
    %2130 = vmatprep.subr.bf16.mxu0 0
    %2131 = vmatpush1.bf16.msra.mxu0 %v2037
    %2132 = vmatprep.subr.bf16.mxu0 0
    %2133 = vmatpush1.bf16.msra.mxu0 %v2036
    %2134 = vmatprep.subr.bf16.mxu0 0
    %2135 = vmatpush1.bf16.msra.mxu0 %v2035
    %2136 = vmatprep.subr.bf16.mxu0 0
    %2137 = vmatpush1.bf16.msra.mxu0 %v2034
    %2138 = vmatprep.subr.bf16.mxu0 0
    %2139 = vmatpush2.bf16.msra.mxu0 %v2049
    %2140 = vmatprep.subr.bf16.mxu0 0
    %2141 = vmatpush2.bf16.msra.mxu0 %v2048
    %2142 = vmatprep.subr.bf16.mxu0 0
    %2143 = vmatpush2.bf16.msra.mxu0 %v2047
    %2144 = vmatprep.subr.bf16.mxu0 0
    %2145 = vmatpush2.bf16.msra.mxu0 %v2046
    %2146 = vmatprep.subr.bf16.mxu0 0
    %2147 = vmatpush2.bf16.msra.mxu0 %v2045
    %2148 = vmatprep.subr.bf16.mxu0 0
    %2149 = vmatpush2.bf16.msra.mxu0 %v2044
    %2150 = vmatprep.subr.bf16.mxu0 0
    %2151 = vmatpush2.bf16.msra.mxu0 %v2043
    %2152 = vmatprep.subr.bf16.mxu0 0
    %2153 = vmatpush2.bf16.msra.mxu0 %v2042
    %2154 = vmatprep.mubr.bf16.mxu0 %v1818
    %2155 = vmatmul.mubr.bf16.gmra.mxu0 %v1817
    %v2156 = vpop.f32.mrf.mxu0
    %v2157 = vadd.f32 %v2117, %v2156
    %v2158 = vpop.f32.mrf.mxu0
    %v2159 = vpop.f32.mrf.mxu0
    %v2160 = vpop.f32.mrf.mxu0
    %2161 = vdwg.mxu0
    %vm2162 = vcmp.gt.f32.partialorder %v2157, 0.0
    %v2163 = vmul.f32 %v2157, 0.1
    %v2164 = vsel %vm2162, %v2157, %v2163
    %v2165 = vpack.c.bf16 %v2164, %v2164
    %v2166 = vld [vmem:[#allocation9] sm:$0xf]
    %v2167 = vld [vmem:[#allocation9 + $0x4] sm:$0xf]
    %v2168 = vld [vmem:[#allocation9 + $0x8] sm:$0xf]
    %v2169 = vld [vmem:[#allocation9 + $0xc] sm:$0xf]
    %v2170 = vld [vmem:[#allocation9 + $0x10] sm:$0xf]
    %v2171 = vld [vmem:[#allocation9 + $0x14] sm:$0xf]
    %v2172 = vld [vmem:[#allocation9 + $0x18] sm:$0xf]
    %v2173 = vld [vmem:[#allocation9 + $0x1c] sm:$0xf]
    %v2174 = vld [vmem:[#allocation9 + $0x20] sm:$0xf]
    %v2175 = vld [vmem:[#allocation9 + $0x24] sm:$0xf]
    %v2176 = vld [vmem:[#allocation9 + $0x28] sm:$0xf]
    %v2177 = vld [vmem:[#allocation9 + $0x2c] sm:$0xf]
    %v2178 = vld [vmem:[#allocation9 + $0x30] sm:$0xf]
    %v2179 = vld [vmem:[#allocation9 + $0x34] sm:$0xf]
    %v2180 = vld [vmem:[#allocation9 + $0x38] sm:$0xf]
    %v2181 = vld [vmem:[#allocation9 + $0x3c] sm:$0xf]
    %v2182 = vld [vmem:[#allocation2] sm:$0x1]
    %v2184 = vlaneseq
    %v2185 = vshrl.u32 %v2184, 7
    %v2186 = vsub.s32 0, %v2185
    %v2187 = vrot.slane %v2182, %v2186
    %v2205 = vunpack.c.l.b16 %v2166
    %v2206 = vunpack.c.l.b16 %v2167
    %v2207 = vunpack.c.l.b16 %v2168
    %v2208 = vunpack.c.l.b16 %v2169
    %v2209 = vunpack.c.l.b16 %v2170
    %v2210 = vunpack.c.l.b16 %v2171
    %v2211 = vunpack.c.l.b16 %v2172
    %v2212 = vunpack.c.l.b16 %v2173
    %v2213 = vunpack.c.l.b16 %v2174
    %v2214 = vunpack.c.l.b16 %v2175
    %v2215 = vunpack.c.l.b16 %v2176
    %v2216 = vunpack.c.l.b16 %v2177
    %v2217 = vunpack.c.l.b16 %v2178
    %v2218 = vunpack.c.l.b16 %v2179
    %v2219 = vunpack.c.l.b16 %v2180
    %v2220 = vunpack.c.l.b16 %v2181
    %v2221 = vpack.c.b16 %v2206, %v2205
    %v2222 = vpack.c.b16 %v2208, %v2207
    %v2223 = vpack.c.b16 %v2210, %v2209
    %v2224 = vpack.c.b16 %v2212, %v2211
    %v2225 = vpack.c.b16 %v2214, %v2213
    %v2226 = vpack.c.b16 %v2216, %v2215
    %v2227 = vpack.c.b16 %v2218, %v2217
    %v2228 = vpack.c.b16 %v2220, %v2219
    %2237 = vmatprep.subr.bf16.mxu0 0
    %2238 = vmatpush1.bf16.msra.mxu0 %v2228
    %2239 = vmatprep.subr.bf16.mxu0 0
    %2240 = vmatpush1.bf16.msra.mxu0 %v2227
    %2241 = vmatprep.subr.bf16.mxu0 0
    %2242 = vmatpush1.bf16.msra.mxu0 %v2226
    %2243 = vmatprep.subr.bf16.mxu0 0
    %2244 = vmatpush1.bf16.msra.mxu0 %v2225
    %2245 = vmatprep.subr.bf16.mxu0 0
    %2246 = vmatpush1.bf16.msra.mxu0 %v2224
    %2247 = vmatprep.subr.bf16.mxu0 0
    %2248 = vmatpush1.bf16.msra.mxu0 %v2223
    %2249 = vmatprep.subr.bf16.mxu0 0
    %2250 = vmatpush1.bf16.msra.mxu0 %v2222
    %2251 = vmatprep.subr.bf16.mxu0 0
    %2252 = vmatpush1.bf16.msra.mxu0 %v2221
    %2253 = vmatprep.subr.bf16.mxu0 0
    %2254 = vmatpush2.bf16.msra.mxu0 0
    %2255 = vmatprep.subr.bf16.mxu0 0
    %2256 = vmatpush2.bf16.msra.mxu0 0
    %2257 = vmatprep.subr.bf16.mxu0 0
    %2258 = vmatpush2.bf16.msra.mxu0 0
    %2259 = vmatprep.subr.bf16.mxu0 0
    %2260 = vmatpush2.bf16.msra.mxu0 0
    %2261 = vmatprep.subr.bf16.mxu0 0
    %2262 = vmatpush2.bf16.msra.mxu0 0
    %2263 = vmatprep.subr.bf16.mxu0 0
    %2264 = vmatpush2.bf16.msra.mxu0 0
    %2265 = vmatprep.subr.bf16.mxu0 0
    %2266 = vmatpush2.bf16.msra.mxu0 0
    %2267 = vmatprep.subr.bf16.mxu0 0
    %2268 = vmatpush2.bf16.msra.mxu0 0
    %2269 = vmatprep.mubr.bf16.mxu0 0
    %2270 = vmatmul.mubr.bf16.gmra.mxu0 %v2165
    %v2271 = vpop.f32.mrf.mxu0
    %v2272 = vadd.f32 %v2187, %v2271
    %v2273 = vpop.f32.mrf.mxu0
    %v2274 = vpop.f32.mrf.mxu0
    %v2275 = vpop.f32.mrf.mxu0
    %2276 = vdwg.mxu0
    %v2277 = vld [vmem:[#allocation11] sm:$0xff]
    %v2278 = vld [vmem:[#allocation11 + $0x8] sm:$0xff]
    %v2279 = vld [vmem:[#allocation11 + $0x10] sm:$0xff]
    %v2280 = vld [vmem:[#allocation11 + $0x18] sm:$0xff]
    %v2281 = vld [vmem:[#allocation11 + $0x20] sm:$0xff]
    %v2282 = vld [vmem:[#allocation11 + $0x28] sm:$0xff]
    %v2283 = vld [vmem:[#allocation11 + $0x30] sm:$0xff]
    %v2284 = vld [vmem:[#allocation11 + $0x38] sm:$0xff]
    %v2285 = vld [vmem:[#allocation11 + $0x40] sm:$0xff]
    %v2286 = vld [vmem:[#allocation11 + $0x48] sm:$0xff]
    %v2287 = vld [vmem:[#allocation11 + $0x50] sm:$0xff]
    %v2288 = vld [vmem:[#allocation11 + $0x58] sm:$0xff]
    %v2289 = vld [vmem:[#allocation11 + $0x60] sm:$0xff]
    %v2290 = vld [vmem:[#allocation11 + $0x68] sm:$0xff]
    %v2291 = vld [vmem:[#allocation11 + $0x70] sm:$0xff]
    %v2292 = vld [vmem:[#allocation11 + $0x78] sm:$0xff]
    %v2293 = vld [vmem:[#allocation11 + $0x80] sm:$0xff]
    %v2294 = vld [vmem:[#allocation11 + $0x88] sm:$0xff]
    %v2295 = vld [vmem:[#allocation11 + $0x90] sm:$0xff]
    %v2296 = vld [vmem:[#allocation11 + $0x98] sm:$0xff]
    %v2297 = vld [vmem:[#allocation11 + $0xa0] sm:$0xff]
    %v2298 = vld [vmem:[#allocation11 + $0xa8] sm:$0xff]
    %v2299 = vld [vmem:[#allocation11 + $0xb0] sm:$0xff]
    %v2300 = vld [vmem:[#allocation11 + $0xb8] sm:$0xff]
    %v2301 = vld [vmem:[#allocation11 + $0xc0] sm:$0xff]
    %v2302 = vld [vmem:[#allocation11 + $0xc8] sm:$0xff]
    %v2303 = vld [vmem:[#allocation11 + $0xd0] sm:$0xff]
    %v2304 = vld [vmem:[#allocation11 + $0xd8] sm:$0xff]
    %v2305 = vld [vmem:[#allocation11 + $0xe0] sm:$0xff]
    %v2306 = vld [vmem:[#allocation11 + $0xe8] sm:$0xff]
    %v2307 = vld [vmem:[#allocation11 + $0xf0] sm:$0xff]
    %v2308 = vld [vmem:[#allocation11 + $0xf8] sm:$0xff]
    %v2309 = vld [vmem:[#allocation11 + $0x100] sm:$0xff]
    %v2310 = vld [vmem:[#allocation11 + $0x108] sm:$0xff]
    %v2311 = vld [vmem:[#allocation11 + $0x110] sm:$0xff]
    %v2312 = vld [vmem:[#allocation11 + $0x118] sm:$0xff]
    %v2313 = vld [vmem:[#allocation11 + $0x120] sm:$0xff]
    %v2314 = vld [vmem:[#allocation11 + $0x128] sm:$0xff]
    %v2315 = vld [vmem:[#allocation11 + $0x130] sm:$0xff]
    %v2316 = vld [vmem:[#allocation11 + $0x138] sm:$0xff]
    %v2317 = vld [vmem:[#allocation11 + $0x140] sm:$0xff]
    %v2318 = vld [vmem:[#allocation11 + $0x148] sm:$0xff]
    %v2319 = vld [vmem:[#allocation11 + $0x150] sm:$0xff]
    %v2320 = vld [vmem:[#allocation11 + $0x158] sm:$0xff]
    %v2321 = vunpack.c.l.s8.bf16 %v2277
    %v2322 = vunpack.c.h.s8.bf16 %v2277
    %v2323 = vunpack.c.l.s8.bf16 %v2278
    %v2324 = vunpack.c.h.s8.bf16 %v2278
    %v2325 = vunpack.c.l.s8.bf16 %v2279
    %v2326 = vunpack.c.h.s8.bf16 %v2279
    %v2327 = vunpack.c.l.s8.bf16 %v2280
    %v2328 = vunpack.c.h.s8.bf16 %v2280
    %v2329 = vunpack.c.l.s8.bf16 %v2281
    %v2330 = vunpack.c.h.s8.bf16 %v2281
    %v2331 = vunpack.c.l.s8.bf16 %v2282
    %v2332 = vunpack.c.h.s8.bf16 %v2282
    %v2333 = vunpack.c.l.s8.bf16 %v2283
    %v2334 = vunpack.c.h.s8.bf16 %v2283
    %v2335 = vunpack.c.l.s8.bf16 %v2284
    %v2336 = vunpack.c.h.s8.bf16 %v2284
    %v2337 = vunpack.c.l.s8.bf16 %v2285
    %v2338 = vunpack.c.h.s8.bf16 %v2285
    %v2339 = vunpack.c.l.s8.bf16 %v2286
    %v2340 = vunpack.c.h.s8.bf16 %v2286
    %v2341 = vunpack.c.l.s8.bf16 %v2287
    %v2342 = vunpack.c.h.s8.bf16 %v2287
    %v2343 = vunpack.c.l.s8.bf16 %v2288
    %v2344 = vunpack.c.h.s8.bf16 %v2288
    %v2345 = vunpack.c.l.s8.bf16 %v2289
    %v2346 = vunpack.c.h.s8.bf16 %v2289
    %v2347 = vunpack.c.l.s8.bf16 %v2290
    %v2348 = vunpack.c.h.s8.bf16 %v2290
    %v2349 = vunpack.c.l.s8.bf16 %v2291
    %v2350 = vunpack.c.h.s8.bf16 %v2291
    %v2351 = vunpack.c.l.s8.bf16 %v2292
    %v2352 = vunpack.c.h.s8.bf16 %v2292
    %v2353 = vunpack.c.l.s8.bf16 %v2293
    %v2354 = vunpack.c.h.s8.bf16 %v2293
    %v2355 = vunpack.c.l.s8.bf16 %v2294
    %v2356 = vunpack.c.h.s8.bf16 %v2294
    %v2357 = vunpack.c.l.s8.bf16 %v2295
    %v2358 = vunpack.c.h.s8.bf16 %v2295
    %v2359 = vunpack.c.l.s8.bf16 %v2296
    %v2360 = vunpack.c.h.s8.bf16 %v2296
    %v2361 = vunpack.c.l.s8.bf16 %v2297
    %v2362 = vunpack.c.h.s8.bf16 %v2297
    %v2363 = vunpack.c.l.s8.bf16 %v2298
    %v2364 = vunpack.c.h.s8.bf16 %v2298
    %v2365 = vunpack.c.l.s8.bf16 %v2299
    %v2366 = vunpack.c.h.s8.bf16 %v2299
    %v2367 = vunpack.c.l.s8.bf16 %v2300
    %v2368 = vunpack.c.h.s8.bf16 %v2300
    %v2369 = vunpack.c.l.s8.bf16 %v2301
    %v2370 = vunpack.c.h.s8.bf16 %v2301
    %v2371 = vunpack.c.l.s8.bf16 %v2302
    %v2372 = vunpack.c.h.s8.bf16 %v2302
    %v2373 = vunpack.c.l.s8.bf16 %v2303
    %v2374 = vunpack.c.h.s8.bf16 %v2303
    %v2375 = vunpack.c.l.s8.bf16 %v2304
    %v2376 = vunpack.c.h.s8.bf16 %v2304
    %v2377 = vunpack.c.l.s8.bf16 %v2305
    %v2378 = vunpack.c.h.s8.bf16 %v2305
    %v2379 = vunpack.c.l.s8.bf16 %v2306
    %v2380 = vunpack.c.h.s8.bf16 %v2306
    %v2381 = vunpack.c.l.s8.bf16 %v2307
    %v2382 = vunpack.c.h.s8.bf16 %v2307
    %v2383 = vunpack.c.l.s8.bf16 %v2308
    %v2384 = vunpack.c.h.s8.bf16 %v2308
    %v2385 = vunpack.c.l.s8.bf16 %v2309
    %v2386 = vunpack.c.h.s8.bf16 %v2309
    %v2387 = vunpack.c.l.s8.bf16 %v2310
    %v2388 = vunpack.c.h.s8.bf16 %v2310
    %v2389 = vunpack.c.l.s8.bf16 %v2311
    %v2390 = vunpack.c.h.s8.bf16 %v2311
    %v2391 = vunpack.c.l.s8.bf16 %v2312
    %v2392 = vunpack.c.h.s8.bf16 %v2312
    %v2393 = vunpack.c.l.s8.bf16 %v2313
    %v2394 = vunpack.c.h.s8.bf16 %v2313
    %v2395 = vunpack.c.l.s8.bf16 %v2314
    %v2396 = vunpack.c.h.s8.bf16 %v2314
    %v2397 = vunpack.c.l.s8.bf16 %v2315
    %v2398 = vunpack.c.h.s8.bf16 %v2315
    %v2399 = vunpack.c.l.s8.bf16 %v2316
    %v2400 = vunpack.c.h.s8.bf16 %v2316
    %v2401 = vunpack.c.l.s8.bf16 %v2317
    %v2402 = vunpack.c.h.s8.bf16 %v2317
    %v2403 = vunpack.c.l.s8.bf16 %v2318
    %v2404 = vunpack.c.h.s8.bf16 %v2318
    %v2405 = vunpack.c.l.s8.bf16 %v2319
    %v2406 = vunpack.c.h.s8.bf16 %v2319
    %v2407 = vunpack.c.l.s8.bf16 %v2320
    %v2408 = vunpack.c.h.s8.bf16 %v2320
    %v2409 = vld [vmem:[%s11] sm:$0xff]
    %v2410 = vld [vmem:[%s11 + $0x8] sm:$0xff]
    %v2411 = vld [vmem:[%s11 + $0x10] sm:$0xff]
    %v2412 = vld [vmem:[%s11 + $0x18] sm:$0xff]
    %v2413 = vld [vmem:[%s11 + $0x20] sm:$0xff]
    %v2414 = vld [vmem:[%s11 + $0x28] sm:$0xff]
    %v2415 = vld [vmem:[%s11 + $0x30] sm:$0xff]
    %v2416 = vld [vmem:[%s11 + $0x38] sm:$0xff]
    %v2417 = vld [vmem:[%s11 + $0x40] sm:$0xff]
    %v2418 = vld [vmem:[%s11 + $0x48] sm:$0xff]
    %v2419 = vld [vmem:[%s11 + $0x50] sm:$0xff]
    %v2420 = vld [vmem:[%s11 + $0x58] sm:$0xff]
    %v2421 = vld [vmem:[%s11 + $0x60] sm:$0xff]
    %v2422 = vld [vmem:[%s11 + $0x68] sm:$0xff]
    %v2423 = vld [vmem:[%s11 + $0x70] sm:$0xff]
    %v2424 = vld [vmem:[%s11 + $0x78] sm:$0xff]
    %v2425 = vld [vmem:[%s11 + $0x80] sm:$0xff]
    %v2426 = vld [vmem:[%s11 + $0x88] sm:$0xff]
    %v2427 = vld [vmem:[%s11 + $0x90] sm:$0xff]
    %v2428 = vld [vmem:[%s11 + $0x98] sm:$0xff]
    %v2429 = vld [vmem:[%s11 + $0xa0] sm:$0xff]
    %v2430 = vld [vmem:[%s11 + $0xa8] sm:$0xff]
    %v2431 = vld [vmem:[%s11 + $0xb0] sm:$0xff]
    %v2432 = vld [vmem:[%s11 + $0xb8] sm:$0xff]
    %v2433 = vunpack.c.l.s8.bf16 %v2409
    %v2434 = vunpack.c.h.s8.bf16 %v2409
    %v2435 = vunpack.c.l.s8.bf16 %v2410
    %v2436 = vunpack.c.h.s8.bf16 %v2410
    %v2437 = vunpack.c.l.s8.bf16 %v2411
    %v2438 = vunpack.c.h.s8.bf16 %v2411
    %v2439 = vunpack.c.l.s8.bf16 %v2412
    %v2440 = vunpack.c.h.s8.bf16 %v2412
    %v2441 = vunpack.c.l.s8.bf16 %v2413
    %v2442 = vunpack.c.h.s8.bf16 %v2413
    %v2443 = vunpack.c.l.s8.bf16 %v2414
    %v2444 = vunpack.c.h.s8.bf16 %v2414
    %v2445 = vunpack.c.l.s8.bf16 %v2415
    %v2446 = vunpack.c.h.s8.bf16 %v2415
    %v2447 = vunpack.c.l.s8.bf16 %v2416
    %v2448 = vunpack.c.h.s8.bf16 %v2416
    %v2449 = vunpack.c.l.s8.bf16 %v2417
    %v2450 = vunpack.c.h.s8.bf16 %v2417
    %v2451 = vunpack.c.l.s8.bf16 %v2418
    %v2452 = vunpack.c.h.s8.bf16 %v2418
    %v2453 = vunpack.c.l.s8.bf16 %v2419
    %v2454 = vunpack.c.h.s8.bf16 %v2419
    %v2455 = vunpack.c.l.s8.bf16 %v2420
    %v2456 = vunpack.c.h.s8.bf16 %v2420
    %v2457 = vunpack.c.l.s8.bf16 %v2421
    %v2458 = vunpack.c.h.s8.bf16 %v2421
    %v2459 = vunpack.c.l.s8.bf16 %v2422
    %v2460 = vunpack.c.h.s8.bf16 %v2422
    %v2461 = vunpack.c.l.s8.bf16 %v2423
    %v2462 = vunpack.c.h.s8.bf16 %v2423
    %v2463 = vunpack.c.l.s8.bf16 %v2424
    %v2464 = vunpack.c.h.s8.bf16 %v2424
    %v2465 = vunpack.c.l.s8.bf16 %v2425
    %v2466 = vunpack.c.h.s8.bf16 %v2425
    %v2467 = vunpack.c.l.s8.bf16 %v2426
    %v2468 = vunpack.c.h.s8.bf16 %v2426
    %v2469 = vunpack.c.l.s8.bf16 %v2427
    %v2470 = vunpack.c.h.s8.bf16 %v2427
    %v2471 = vunpack.c.l.s8.bf16 %v2428
    %v2472 = vunpack.c.h.s8.bf16 %v2428
    %v2473 = vunpack.c.l.s8.bf16 %v2429
    %v2474 = vunpack.c.h.s8.bf16 %v2429
    %v2475 = vunpack.c.l.s8.bf16 %v2430
    %v2476 = vunpack.c.h.s8.bf16 %v2430
    %v2477 = vunpack.c.l.s8.bf16 %v2431
    %v2478 = vunpack.c.h.s8.bf16 %v2431
    %v2479 = vunpack.c.l.s8.bf16 %v2432
    %v2480 = vunpack.c.h.s8.bf16 %v2432
    %2481 = vmatprep.subr.bf16.mxu0 0
    %2482 = vmatpush1.bf16.msra.mxu0 %v2440
    %2483 = vmatprep.subr.bf16.mxu0 0
    %2484 = vmatpush1.bf16.msra.mxu0 %v2439
    %2485 = vmatprep.subr.bf16.mxu0 0
    %2486 = vmatpush1.bf16.msra.mxu0 %v2438
    %2487 = vmatprep.subr.bf16.mxu0 0
    %2488 = vmatpush1.bf16.msra.mxu0 %v2437
    %2489 = vmatprep.subr.bf16.mxu0 0
    %2490 = vmatpush1.bf16.msra.mxu0 %v2436
    %2491 = vmatprep.subr.bf16.mxu0 0
    %2492 = vmatpush1.bf16.msra.mxu0 %v2435
    %2493 = vmatprep.subr.bf16.mxu0 0
    %2494 = vmatpush1.bf16.msra.mxu0 %v2434
    %2495 = vmatprep.subr.bf16.mxu0 0
    %2496 = vmatpush1.bf16.msra.mxu0 %v2433
    %2497 = vmatprep.subr.bf16.mxu0 0
    %2498 = vmatpush2.bf16.msra.mxu0 %v2448
    %2499 = vmatprep.subr.bf16.mxu0 0
    %2500 = vmatpush2.bf16.msra.mxu0 %v2447
    %2501 = vmatprep.subr.bf16.mxu0 0
    %2502 = vmatpush2.bf16.msra.mxu0 %v2446
    %2503 = vmatprep.subr.bf16.mxu0 0
    %2504 = vmatpush2.bf16.msra.mxu0 %v2445
    %2505 = vmatprep.subr.bf16.mxu0 0
    %2506 = vmatpush2.bf16.msra.mxu0 %v2444
    %2507 = vmatprep.subr.bf16.mxu0 0
    %2508 = vmatpush2.bf16.msra.mxu0 %v2443
    %2509 = vmatprep.subr.bf16.mxu0 0
    %2510 = vmatpush2.bf16.msra.mxu0 %v2442
    %2511 = vmatprep.subr.bf16.mxu0 0
    %2512 = vmatpush2.bf16.msra.mxu0 %v2441
    %2513 = vmatprep.mubr.bf16.mxu0 %v975
    %2514 = vmatmul.mubr.bf16.gmra.mxu0 %v974
    %v2515 = vpop.f32.mrf.mxu0
    %v2516 = vadd.f32 0.0, %v2515
    %v2517 = vpop.f32.mrf.mxu0
    %v2518 = vpop.f32.mrf.mxu0
    %v2519 = vpop.f32.mrf.mxu0
    %2520 = vdwg.mxu0
    %2521 = vmatprep.subr.bf16.mxu0 0
    %2522 = vmatpush1.bf16.msra.mxu0 %v2456
    %2523 = vmatprep.subr.bf16.mxu0 0
    %2524 = vmatpush1.bf16.msra.mxu0 %v2455
    %2525 = vmatprep.subr.bf16.mxu0 0
    %2526 = vmatpush1.bf16.msra.mxu0 %v2454
    %2527 = vmatprep.subr.bf16.mxu0 0
    %2528 = vmatpush1.bf16.msra.mxu0 %v2453
    %2529 = vmatprep.subr.bf16.mxu0 0
    %2530 = vmatpush1.bf16.msra.mxu0 %v2452
    %2531 = vmatprep.subr.bf16.mxu0 0
    %2532 = vmatpush1.bf16.msra.mxu0 %v2451
    %2533 = vmatprep.subr.bf16.mxu0 0
    %2534 = vmatpush1.bf16.msra.mxu0 %v2450
    %2535 = vmatprep.subr.bf16.mxu0 0
    %2536 = vmatpush1.bf16.msra.mxu0 %v2449
    %2537 = vmatprep.subr.bf16.mxu0 0
    %2538 = vmatpush2.bf16.msra.mxu0 %v2464
    %2539 = vmatprep.subr.bf16.mxu0 0
    %2540 = vmatpush2.bf16.msra.mxu0 %v2463
    %2541 = vmatprep.subr.bf16.mxu0 0
    %2542 = vmatpush2.bf16.msra.mxu0 %v2462
    %2543 = vmatprep.subr.bf16.mxu0 0
    %2544 = vmatpush2.bf16.msra.mxu0 %v2461
    %2545 = vmatprep.subr.bf16.mxu0 0
    %2546 = vmatpush2.bf16.msra.mxu0 %v2460
    %2547 = vmatprep.subr.bf16.mxu0 0
    %2548 = vmatpush2.bf16.msra.mxu0 %v2459
    %2549 = vmatprep.subr.bf16.mxu0 0
    %2550 = vmatpush2.bf16.msra.mxu0 %v2458
    %2551 = vmatprep.subr.bf16.mxu0 0
    %2552 = vmatpush2.bf16.msra.mxu0 %v2457
    %2553 = vmatprep.mubr.bf16.mxu0 %v977
    %2554 = vmatmul.mubr.bf16.gmra.mxu0 %v976
    %v2555 = vpop.f32.mrf.mxu0
    %v2556 = vadd.f32 %v2516, %v2555
    %v2557 = vpop.f32.mrf.mxu0
    %v2558 = vpop.f32.mrf.mxu0
    %v2559 = vpop.f32.mrf.mxu0
    %2560 = vdwg.mxu0
    %2561 = vmatprep.subr.bf16.mxu0 0
    %2562 = vmatpush1.bf16.msra.mxu0 %v2472
    %2563 = vmatprep.subr.bf16.mxu0 0
    %2564 = vmatpush1.bf16.msra.mxu0 %v2471
    %2565 = vmatprep.subr.bf16.mxu0 0
    %2566 = vmatpush1.bf16.msra.mxu0 %v2470
    %2567 = vmatprep.subr.bf16.mxu0 0
    %2568 = vmatpush1.bf16.msra.mxu0 %v2469
    %2569 = vmatprep.subr.bf16.mxu0 0
    %2570 = vmatpush1.bf16.msra.mxu0 %v2468
    %2571 = vmatprep.subr.bf16.mxu0 0
    %2572 = vmatpush1.bf16.msra.mxu0 %v2467
    %2573 = vmatprep.subr.bf16.mxu0 0
    %2574 = vmatpush1.bf16.msra.mxu0 %v2466
    %2575 = vmatprep.subr.bf16.mxu0 0
    %2576 = vmatpush1.bf16.msra.mxu0 %v2465
    %2577 = vmatprep.subr.bf16.mxu0 0
    %2578 = vmatpush2.bf16.msra.mxu0 %v2480
    %2579 = vmatprep.subr.bf16.mxu0 0
    %2580 = vmatpush2.bf16.msra.mxu0 %v2479
    %2581 = vmatprep.subr.bf16.mxu0 0
    %2582 = vmatpush2.bf16.msra.mxu0 %v2478
    %2583 = vmatprep.subr.bf16.mxu0 0
    %2584 = vmatpush2.bf16.msra.mxu0 %v2477
    %2585 = vmatprep.subr.bf16.mxu0 0
    %2586 = vmatpush2.bf16.msra.mxu0 %v2476
    %2587 = vmatprep.subr.bf16.mxu0 0
    %2588 = vmatpush2.bf16.msra.mxu0 %v2475
    %2589 = vmatprep.subr.bf16.mxu0 0
    %2590 = vmatpush2.bf16.msra.mxu0 %v2474
    %2591 = vmatprep.subr.bf16.mxu0 0
    %2592 = vmatpush2.bf16.msra.mxu0 %v2473
    %2593 = vmatprep.mubr.bf16.mxu0 %v979
    %2594 = vmatmul.mubr.bf16.gmra.mxu0 %v978
    %v2595 = vpop.f32.mrf.mxu0
    %v2596 = vadd.f32 %v2556, %v2595
    %v2597 = vpop.f32.mrf.mxu0
    %v2598 = vpop.f32.mrf.mxu0
    %v2599 = vpop.f32.mrf.mxu0
    %2600 = vdwg.mxu0
    %2601 = vmatprep.subr.bf16.mxu0 0
    %2602 = vmatpush1.bf16.msra.mxu0 %v2328
    %2603 = vmatprep.subr.bf16.mxu0 0
    %2604 = vmatpush1.bf16.msra.mxu0 %v2327
    %2605 = vmatprep.subr.bf16.mxu0 0
    %2606 = vmatpush1.bf16.msra.mxu0 %v2326
    %2607 = vmatprep.subr.bf16.mxu0 0
    %2608 = vmatpush1.bf16.msra.mxu0 %v2325
    %2609 = vmatprep.subr.bf16.mxu0 0
    %2610 = vmatpush1.bf16.msra.mxu0 %v2324
    %2611 = vmatprep.subr.bf16.mxu0 0
    %2612 = vmatpush1.bf16.msra.mxu0 %v2323
    %2613 = vmatprep.subr.bf16.mxu0 0
    %2614 = vmatpush1.bf16.msra.mxu0 %v2322
    %2615 = vmatprep.subr.bf16.mxu0 0
    %2616 = vmatpush1.bf16.msra.mxu0 %v2321
    %2617 = vmatprep.subr.bf16.mxu0 0
    %2618 = vmatpush2.bf16.msra.mxu0 %v2336
    %2619 = vmatprep.subr.bf16.mxu0 0
    %2620 = vmatpush2.bf16.msra.mxu0 %v2335
    %2621 = vmatprep.subr.bf16.mxu0 0
    %2622 = vmatpush2.bf16.msra.mxu0 %v2334
    %2623 = vmatprep.subr.bf16.mxu0 0
    %2624 = vmatpush2.bf16.msra.mxu0 %v2333
    %2625 = vmatprep.subr.bf16.mxu0 0
    %2626 = vmatpush2.bf16.msra.mxu0 %v2332
    %2627 = vmatprep.subr.bf16.mxu0 0
    %2628 = vmatpush2.bf16.msra.mxu0 %v2331
    %2629 = vmatprep.subr.bf16.mxu0 0
    %2630 = vmatpush2.bf16.msra.mxu0 %v2330
    %2631 = vmatprep.subr.bf16.mxu0 0
    %2632 = vmatpush2.bf16.msra.mxu0 %v2329
    %2633 = vmatprep.mubr.bf16.mxu0 %v1250
    %2634 = vmatmul.mubr.bf16.gmra.mxu0 %v1249
    %v2635 = vpop.f32.mrf.mxu0
    %v2636 = vadd.f32 %v2596, %v2635
    %v2637 = vpop.f32.mrf.mxu0
    %v2638 = vpop.f32.mrf.mxu0
    %v2639 = vpop.f32.mrf.mxu0
    %2640 = vdwg.mxu0
    %2641 = vmatprep.subr.bf16.mxu0 0
    %2642 = vmatpush1.bf16.msra.mxu0 %v2344
    %2643 = vmatprep.subr.bf16.mxu0 0
    %2644 = vmatpush1.bf16.msra.mxu0 %v2343
    %2645 = vmatprep.subr.bf16.mxu0 0
    %2646 = vmatpush1.bf16.msra.mxu0 %v2342
    %2647 = vmatprep.subr.bf16.mxu0 0
    %2648 = vmatpush1.bf16.msra.mxu0 %v2341
    %2649 = vmatprep.subr.bf16.mxu0 0
    %2650 = vmatpush1.bf16.msra.mxu0 %v2340
    %2651 = vmatprep.subr.bf16.mxu0 0
    %2652 = vmatpush1.bf16.msra.mxu0 %v2339
    %2653 = vmatprep.subr.bf16.mxu0 0
    %2654 = vmatpush1.bf16.msra.mxu0 %v2338
    %2655 = vmatprep.subr.bf16.mxu0 0
    %2656 = vmatpush1.bf16.msra.mxu0 %v2337
    %2657 = vmatprep.subr.bf16.mxu0 0
    %2658 = vmatpush2.bf16.msra.mxu0 %v2352
    %2659 = vmatprep.subr.bf16.mxu0 0
    %2660 = vmatpush2.bf16.msra.mxu0 %v2351
    %2661 = vmatprep.subr.bf16.mxu0 0
    %2662 = vmatpush2.bf16.msra.mxu0 %v2350
    %2663 = vmatprep.subr.bf16.mxu0 0
    %2664 = vmatpush2.bf16.msra.mxu0 %v2349
    %2665 = vmatprep.subr.bf16.mxu0 0
    %2666 = vmatpush2.bf16.msra.mxu0 %v2348
    %2667 = vmatprep.subr.bf16.mxu0 0
    %2668 = vmatpush2.bf16.msra.mxu0 %v2347
    %2669 = vmatprep.subr.bf16.mxu0 0
    %2670 = vmatpush2.bf16.msra.mxu0 %v2346
    %2671 = vmatprep.subr.bf16.mxu0 0
    %2672 = vmatpush2.bf16.msra.mxu0 %v2345
    %2673 = vmatprep.mubr.bf16.mxu0 %v1252
    %2674 = vmatmul.mubr.bf16.gmra.mxu0 %v1251
    %v2675 = vpop.f32.mrf.mxu0
    %v2676 = vadd.f32 %v2636, %v2675
    %v2677 = vpop.f32.mrf.mxu0
    %v2678 = vpop.f32.mrf.mxu0
    %v2679 = vpop.f32.mrf.mxu0
    %2680 = vdwg.mxu0
    %2681 = vmatprep.subr.bf16.mxu0 0
    %2682 = vmatpush1.bf16.msra.mxu0 %v2360
    %2683 = vmatprep.subr.bf16.mxu0 0
    %2684 = vmatpush1.bf16.msra.mxu0 %v2359
    %2685 = vmatprep.subr.bf16.mxu0 0
    %2686 = vmatpush1.bf16.msra.mxu0 %v2358
    %2687 = vmatprep.subr.bf16.mxu0 0
    %2688 = vmatpush1.bf16.msra.mxu0 %v2357
    %2689 = vmatprep.subr.bf16.mxu0 0
    %2690 = vmatpush1.bf16.msra.mxu0 %v2356
    %2691 = vmatprep.subr.bf16.mxu0 0
    %2692 = vmatpush1.bf16.msra.mxu0 %v2355
    %2693 = vmatprep.subr.bf16.mxu0 0
    %2694 = vmatpush1.bf16.msra.mxu0 %v2354
    %2695 = vmatprep.subr.bf16.mxu0 0
    %2696 = vmatpush1.bf16.msra.mxu0 %v2353
    %2697 = vmatprep.subr.bf16.mxu0 0
    %2698 = vmatpush2.bf16.msra.mxu0 %v2368
    %2699 = vmatprep.subr.bf16.mxu0 0
    %2700 = vmatpush2.bf16.msra.mxu0 %v2367
    %2701 = vmatprep.subr.bf16.mxu0 0
    %2702 = vmatpush2.bf16.msra.mxu0 %v2366
    %2703 = vmatprep.subr.bf16.mxu0 0
    %2704 = vmatpush2.bf16.msra.mxu0 %v2365
    %2705 = vmatprep.subr.bf16.mxu0 0
    %2706 = vmatpush2.bf16.msra.mxu0 %v2364
    %2707 = vmatprep.subr.bf16.mxu0 0
    %2708 = vmatpush2.bf16.msra.mxu0 %v2363
    %2709 = vmatprep.subr.bf16.mxu0 0
    %2710 = vmatpush2.bf16.msra.mxu0 %v2362
    %2711 = vmatprep.subr.bf16.mxu0 0
    %2712 = vmatpush2.bf16.msra.mxu0 %v2361
    %2713 = vmatprep.mubr.bf16.mxu0 %v1254
    %2714 = vmatmul.mubr.bf16.gmra.mxu0 %v1253
    %v2715 = vpop.f32.mrf.mxu0
    %v2716 = vadd.f32 %v2676, %v2715
    %v2717 = vpop.f32.mrf.mxu0
    %v2718 = vpop.f32.mrf.mxu0
    %v2719 = vpop.f32.mrf.mxu0
    %2720 = vdwg.mxu0
    %2721 = vmatprep.subr.bf16.mxu0 0
    %2722 = vmatpush1.bf16.msra.mxu0 %v2376
    %2723 = vmatprep.subr.bf16.mxu0 0
    %2724 = vmatpush1.bf16.msra.mxu0 %v2375
    %2725 = vmatprep.subr.bf16.mxu0 0
    %2726 = vmatpush1.bf16.msra.mxu0 %v2374
    %2727 = vmatprep.subr.bf16.mxu0 0
    %2728 = vmatpush1.bf16.msra.mxu0 %v2373
    %2729 = vmatprep.subr.bf16.mxu0 0
    %2730 = vmatpush1.bf16.msra.mxu0 %v2372
    %2731 = vmatprep.subr.bf16.mxu0 0
    %2732 = vmatpush1.bf16.msra.mxu0 %v2371
    %2733 = vmatprep.subr.bf16.mxu0 0
    %2734 = vmatpush1.bf16.msra.mxu0 %v2370
    %2735 = vmatprep.subr.bf16.mxu0 0
    %2736 = vmatpush1.bf16.msra.mxu0 %v2369
    %2737 = vmatprep.subr.bf16.mxu0 0
    %2738 = vmatpush2.bf16.msra.mxu0 %v2384
    %2739 = vmatprep.subr.bf16.mxu0 0
    %2740 = vmatpush2.bf16.msra.mxu0 %v2383
    %2741 = vmatprep.subr.bf16.mxu0 0
    %2742 = vmatpush2.bf16.msra.mxu0 %v2382
    %2743 = vmatprep.subr.bf16.mxu0 0
    %2744 = vmatpush2.bf16.msra.mxu0 %v2381
    %2745 = vmatprep.subr.bf16.mxu0 0
    %2746 = vmatpush2.bf16.msra.mxu0 %v2380
    %2747 = vmatprep.subr.bf16.mxu0 0
    %2748 = vmatpush2.bf16.msra.mxu0 %v2379
    %2749 = vmatprep.subr.bf16.mxu0 0
    %2750 = vmatpush2.bf16.msra.mxu0 %v2378
    %2751 = vmatprep.subr.bf16.mxu0 0
    %2752 = vmatpush2.bf16.msra.mxu0 %v2377
    %2753 = vmatprep.mubr.bf16.mxu0 %v1256
    %2754 = vmatmul.mubr.bf16.gmra.mxu0 %v1255
    %v2755 = vpop.f32.mrf.mxu0
    %v2756 = vadd.f32 %v2716, %v2755
    %v2757 = vpop.f32.mrf.mxu0
    %v2758 = vpop.f32.mrf.mxu0
    %v2759 = vpop.f32.mrf.mxu0
    %2760 = vdwg.mxu0
    %2761 = vmatprep.subr.bf16.mxu0 0
    %2762 = vmatpush1.bf16.msra.mxu0 %v2392
    %2763 = vmatprep.subr.bf16.mxu0 0
    %2764 = vmatpush1.bf16.msra.mxu0 %v2391
    %2765 = vmatprep.subr.bf16.mxu0 0
    %2766 = vmatpush1.bf16.msra.mxu0 %v2390
    %2767 = vmatprep.subr.bf16.mxu0 0
    %2768 = vmatpush1.bf16.msra.mxu0 %v2389
    %2769 = vmatprep.subr.bf16.mxu0 0
    %2770 = vmatpush1.bf16.msra.mxu0 %v2388
    %2771 = vmatprep.subr.bf16.mxu0 0
    %2772 = vmatpush1.bf16.msra.mxu0 %v2387
    %2773 = vmatprep.subr.bf16.mxu0 0
    %2774 = vmatpush1.bf16.msra.mxu0 %v2386
    %2775 = vmatprep.subr.bf16.mxu0 0
    %2776 = vmatpush1.bf16.msra.mxu0 %v2385
    %2777 = vmatprep.subr.bf16.mxu0 0
    %2778 = vmatpush2.bf16.msra.mxu0 %v2400
    %2779 = vmatprep.subr.bf16.mxu0 0
    %2780 = vmatpush2.bf16.msra.mxu0 %v2399
    %2781 = vmatprep.subr.bf16.mxu0 0
    %2782 = vmatpush2.bf16.msra.mxu0 %v2398
    %2783 = vmatprep.subr.bf16.mxu0 0
    %2784 = vmatpush2.bf16.msra.mxu0 %v2397
    %2785 = vmatprep.subr.bf16.mxu0 0
    %2786 = vmatpush2.bf16.msra.mxu0 %v2396
    %2787 = vmatprep.subr.bf16.mxu0 0
    %2788 = vmatpush2.bf16.msra.mxu0 %v2395
    %2789 = vmatprep.subr.bf16.mxu0 0
    %2790 = vmatpush2.bf16.msra.mxu0 %v2394
    %2791 = vmatprep.subr.bf16.mxu0 0
    %2792 = vmatpush2.bf16.msra.mxu0 %v2393
    %2793 = vmatprep.mubr.bf16.mxu0 %v1258
    %2794 = vmatmul.mubr.bf16.gmra.mxu0 %v1257
    %v2795 = vpop.f32.mrf.mxu0
    %v2796 = vadd.f32 %v2756, %v2795
    %v2797 = vpop.f32.mrf.mxu0
    %v2798 = vpop.f32.mrf.mxu0
    %v2799 = vpop.f32.mrf.mxu0
    %2800 = vdwg.mxu0
    %2801 = vmatprep.subr.bf16.mxu0 0
    %2802 = vmatpush1.bf16.msra.mxu0 %v2408
    %2803 = vmatprep.subr.bf16.mxu0 0
    %2804 = vmatpush1.bf16.msra.mxu0 %v2407
    %2805 = vmatprep.subr.bf16.mxu0 0
    %2806 = vmatpush1.bf16.msra.mxu0 %v2406
    %2807 = vmatprep.subr.bf16.mxu0 0
    %2808 = vmatpush1.bf16.msra.mxu0 %v2405
    %2809 = vmatprep.subr.bf16.mxu0 0
    %2810 = vmatpush1.bf16.msra.mxu0 %v2404
    %2811 = vmatprep.subr.bf16.mxu0 0
    %2812 = vmatpush1.bf16.msra.mxu0 %v2403
    %2813 = vmatprep.subr.bf16.mxu0 0
    %2814 = vmatpush1.bf16.msra.mxu0 %v2402
    %2815 = vmatprep.subr.bf16.mxu0 0
    %2816 = vmatpush1.bf16.msra.mxu0 %v2401
    %2817 = vmatprep.subr.bf16.mxu0 0
    %2818 = vmatpush2.bf16.msra.mxu0 0
    %2819 = vmatprep.subr.bf16.mxu0 0
    %2820 = vmatpush2.bf16.msra.mxu0 0
    %2821 = vmatprep.subr.bf16.mxu0 0
    %2822 = vmatpush2.bf16.msra.mxu0 0
    %2823 = vmatprep.subr.bf16.mxu0 0
    %2824 = vmatpush2.bf16.msra.mxu0 0
    %2825 = vmatprep.subr.bf16.mxu0 0
    %2826 = vmatpush2.bf16.msra.mxu0 0
    %2827 = vmatprep.subr.bf16.mxu0 0
    %2828 = vmatpush2.bf16.msra.mxu0 0
    %2829 = vmatprep.subr.bf16.mxu0 0
    %2830 = vmatpush2.bf16.msra.mxu0 0
    %2831 = vmatprep.subr.bf16.mxu0 0
    %2832 = vmatpush2.bf16.msra.mxu0 0
    %2833 = vmatprep.mubr.bf16.mxu0 0
    %2834 = vmatmul.mubr.bf16.gmra.mxu0 %v1259
    %v2835 = vpop.f32.mrf.mxu0
    %v2836 = vadd.f32 %v2796, %v2835
    %v2837 = vpop.f32.mrf.mxu0
    %v2838 = vpop.f32.mrf.mxu0
    %v2839 = vpop.f32.mrf.mxu0
    %2840 = vdwg.mxu0
    %v2841 = vld [vmem:[%s12] sm:$0x1]
    %v2843 = vlaneseq
    %v2844 = vshrl.u32 %v2843, 7
    %v2845 = vsub.s32 0, %v2844
    %v2846 = vrot.slane %v2841, %v2845
    %v2848 = vmul.f32 %v2836, %v2846
    %v2849 = vld [vmem:[%s13] sm:$0x1]
    %v2851 = vlaneseq
    %v2852 = vshrl.u32 %v2851, 7
    %v2853 = vsub.s32 0, %v2852
    %v2854 = vrot.slane %v2849, %v2853
    %v2856 = vadd.f32 %v2848, %v2854
    %v2857 = vpack.c.bf16 %v2856, %v2856
    %v2858 = vld [vmem:[#allocation12] sm:$0xf]
    %v2859 = vld [vmem:[#allocation12 + $0x4] sm:$0xf]
    %v2860 = vld [vmem:[#allocation12 + $0x8] sm:$0xf]
    %v2861 = vld [vmem:[#allocation12 + $0xc] sm:$0xf]
    %v2862 = vld [vmem:[#allocation12 + $0x10] sm:$0xf]
    %v2863 = vld [vmem:[#allocation12 + $0x14] sm:$0xf]
    %v2864 = vld [vmem:[#allocation12 + $0x18] sm:$0xf]
    %v2865 = vld [vmem:[#allocation12 + $0x1c] sm:$0xf]
    %v2866 = vld [vmem:[#allocation12 + $0x20] sm:$0xf]
    %v2867 = vld [vmem:[#allocation12 + $0x24] sm:$0xf]
    %v2868 = vld [vmem:[#allocation12 + $0x28] sm:$0xf]
    %v2869 = vld [vmem:[#allocation12 + $0x2c] sm:$0xf]
    %v2870 = vld [vmem:[#allocation12 + $0x30] sm:$0xf]
    %v2871 = vld [vmem:[#allocation12 + $0x34] sm:$0xf]
    %v2872 = vld [vmem:[#allocation12 + $0x38] sm:$0xf]
    %v2873 = vld [vmem:[#allocation12 + $0x3c] sm:$0xf]
    %v2874 = vld [vmem:[#allocation3] sm:$0x1]
    %v2876 = vlaneseq
    %v2877 = vshrl.u32 %v2876, 7
    %v2878 = vsub.s32 0, %v2877
    %v2879 = vrot.slane %v2874, %v2878
    %v2897 = vunpack.c.l.b16 %v2858
    %v2898 = vunpack.c.l.b16 %v2859
    %v2899 = vunpack.c.l.b16 %v2860
    %v2900 = vunpack.c.l.b16 %v2861
    %v2901 = vunpack.c.l.b16 %v2862
    %v2902 = vunpack.c.l.b16 %v2863
    %v2903 = vunpack.c.l.b16 %v2864
    %v2904 = vunpack.c.l.b16 %v2865
    %v2905 = vunpack.c.l.b16 %v2866
    %v2906 = vunpack.c.l.b16 %v2867
    %v2907 = vunpack.c.l.b16 %v2868
    %v2908 = vunpack.c.l.b16 %v2869
    %v2909 = vunpack.c.l.b16 %v2870
    %v2910 = vunpack.c.l.b16 %v2871
    %v2911 = vunpack.c.l.b16 %v2872
    %v2912 = vunpack.c.l.b16 %v2873
    %v2913 = vpack.c.b16 %v2898, %v2897
    %v2914 = vpack.c.b16 %v2900, %v2899
    %v2915 = vpack.c.b16 %v2902, %v2901
    %v2916 = vpack.c.b16 %v2904, %v2903
    %v2917 = vpack.c.b16 %v2906, %v2905
    %v2918 = vpack.c.b16 %v2908, %v2907
    %v2919 = vpack.c.b16 %v2910, %v2909
    %v2920 = vpack.c.b16 %v2912, %v2911
    %2929 = vmatprep.subr.bf16.mxu0 0
    %2930 = vmatpush1.bf16.msra.mxu0 %v2920
    %2931 = vmatprep.subr.bf16.mxu0 0
    %2932 = vmatpush1.bf16.msra.mxu0 %v2919
    %2933 = vmatprep.subr.bf16.mxu0 0
    %2934 = vmatpush1.bf16.msra.mxu0 %v2918
    %2935 = vmatprep.subr.bf16.mxu0 0
    %2936 = vmatpush1.bf16.msra.mxu0 %v2917
    %2937 = vmatprep.subr.bf16.mxu0 0
    %2938 = vmatpush1.bf16.msra.mxu0 %v2916
    %2939 = vmatprep.subr.bf16.mxu0 0
    %2940 = vmatpush1.bf16.msra.mxu0 %v2915
    %2941 = vmatprep.subr.bf16.mxu0 0
    %2942 = vmatpush1.bf16.msra.mxu0 %v2914
    %2943 = vmatprep.subr.bf16.mxu0 0
    %2944 = vmatpush1.bf16.msra.mxu0 %v2913
    %2945 = vmatprep.subr.bf16.mxu0 0
    %2946 = vmatpush2.bf16.msra.mxu0 0
    %2947 = vmatprep.subr.bf16.mxu0 0
    %2948 = vmatpush2.bf16.msra.mxu0 0
    %2949 = vmatprep.subr.bf16.mxu0 0
    %2950 = vmatpush2.bf16.msra.mxu0 0
    %2951 = vmatprep.subr.bf16.mxu0 0
    %2952 = vmatpush2.bf16.msra.mxu0 0
    %2953 = vmatprep.subr.bf16.mxu0 0
    %2954 = vmatpush2.bf16.msra.mxu0 0
    %2955 = vmatprep.subr.bf16.mxu0 0
    %2956 = vmatpush2.bf16.msra.mxu0 0
    %2957 = vmatprep.subr.bf16.mxu0 0
    %2958 = vmatpush2.bf16.msra.mxu0 0
    %2959 = vmatprep.subr.bf16.mxu0 0
    %2960 = vmatpush2.bf16.msra.mxu0 0
    %2961 = vmatprep.mubr.bf16.mxu0 0
    %2962 = vmatmul.mubr.bf16.gmra.mxu0 %v2857
    %v2963 = vpop.f32.mrf.mxu0
    %v2964 = vadd.f32 %v2879, %v2963
    %v2965 = vpop.f32.mrf.mxu0
    %v2966 = vpop.f32.mrf.mxu0
    %v2967 = vpop.f32.mrf.mxu0
    %2968 = vdwg.mxu0
    %v2969 = vtanh.pop %v2272
    %v2970 = vtanh.pop %v2964
    %2972 = vrot.lane.b32.xlu0 %v2964, 1
    %v2973 = vpop.permute.xlu0 %2972
    %2976 = vrot.lane.b32.xlu0 %v2969, 2
    %v2977 = vpop.permute.xlu0 %2976
    %2980 = vrot.lane.b32.xlu0 %v2970, 3
    %v2981 = vpop.permute.xlu0 %2980
    %vm2983 = vcmask 7168
    %v2984 = vsel %vm2983, %v2272, %v2973
    %vm2985 = vcmask 15360
    %v2986 = vsel %vm2985, %v2984, %v2977
    %vm2987 = vcmask 23552
    %v2988 = vsel %vm2987, %v2986, %v2981
    %vm2989 = vcmask 31744
    %2990 = vst.msk [vmem:[%s16] sm:$0xff] %vm2989, %v2988
    // Predicated region
    $region90: #{mlp_forward.1} parent=1 // pred_check
      _
    $region91: #{mlp_forward.1} parent=1 // pred_check_branch
      %2992 = sbr.rel (0) target = $region93
    $region92: #{mlp_forward.1} parent=1 // pred_region
      _
    $region93: #{mlp_forward.1} parent=1 // pred_fallthru
      _
    // Predicated region
    $region94: #{mlp_forward.1} parent=1 // pred_check
      _
    $region95: #{mlp_forward.1} parent=1 // pred_check_branch
      %2994 = sbr.rel (0) target = $region97
    $region96: #{mlp_forward.1} parent=1 // pred_region
      _
    $region97: #{mlp_forward.1} parent=1 // pred_fallthru
      _
    %2995 = vsyncpa [#allocation5], 1
    %2996 = vsyncpa [#allocation7], 1
    %2997 = vsyncpa [#allocation10], 1
    %2998 = vsyncpa [#allocation13], 1

</llo_original>
